<compile_context>
chip_gen: v6e
topology: v6e:2x2x1
jax: 0.10.0
libtpu: 0.0.40
codegen_flags: <defaults>
</compile_context>

<pallas_src>
import functools

import jax
import jax.numpy as jnp
from jax import lax
from jax.experimental import pallas as pl
from jax.experimental.pallas import tpu as pltpu

LANE = 128


# ---------------------------------------------------------------------------
# Wrapper-side layout helpers (padding / tiling only, no compute hoisted)
# ---------------------------------------------------------------------------
def _round_up(x, m):
    return (x + m - 1) // m * m


def _pad_last(x, target):
    pad = target - x.shape[-1]
    if pad == 0:
        return x
    widths = [(0, 0)] * (x.ndim - 1) + [(0, pad)]
    return jnp.pad(x, widths)


def _pad_2d(x, rows, cols):
    pr, pc = rows - x.shape[0], cols - x.shape[1]
    if pr == 0 and pc == 0:
        return x
    return jnp.pad(x, ((0, pr), (0, pc)))


def _pick_tile_rows(n):
    # Prefer 256-row tiles (v6e/v7x MXU depth), then 128 (v5e native);
    # else a single full-height tile.
    for t in (512, 256, 128):
        if n % t == 0 and n // t >= 2:
            return t
    return n


# ---------------------------------------------------------------------------
# Fused Pallas kernel: entire multi-layer GCN forward in one pallas_call
#   grid = (layer, row_tile); both sequential (scratch + BN dependencies).
# ---------------------------------------------------------------------------
def _fused_gcn_kernel(a_ref, feat_ref, w_ref, gamma_ref, beta_ref, bias_ref,
                      o_ref, h_scr, hw_scr, agg_scr,
                      *, n_layers, n_tiles, tile_rows, n_nodes, eps):
    l = pl.program_id(0)            # layer index
    j = pl.program_id(1)            # A row-tile index
    last_layer = l == n_layers - 1
    last_tile = j == n_tiles - 1

    # Load the (padded, f32) input features into the persistent h scratch once.
    @pl.when((l == 0) & (j == 0))
    def _():
        h_scr[...] = feat_ref[...]

    # Dense projection H @ W_l, computed once per layer (first row tile).
    # bf16 MXU operands, f32 accumulate; kept bf16 as the next matmul's operand.
    @pl.when(j == 0)
    def _():
        hw = jnp.dot(h_scr[...].astype(jnp.bfloat16), w_ref[0],
                     preferred_element_type=jnp.float32)
        hw_scr[...] = hw.astype(jnp.bfloat16)

    # Row-tiled graph aggregation: agg[rows_j] = A_norm[rows_j, :] @ (H W_l).
    # A row tiles arrive as bf16, double-buffered by the BlockSpec pipeline.
    row0 = pl.multiple_of(j * tile_rows, tile_rows)
    agg_scr[pl.ds(row0, tile_rows), :] = jnp.dot(
        a_ref[...], hw_scr[...], preferred_element_type=jnp.float32)

    # Hidden-layer epilogue once every row tile of this layer is aggregated:
    # one-pass BatchNorm (training-mode batch statistics) + ReLU, all f32 (VPU).
    @pl.when(last_tile & jnp.logical_not(last_layer))
    def _():
        agg = agg_scr[...]
        inv_n = 1.0 / n_nodes                       # true node count (no row padding)
        mean = jnp.sum(agg, axis=0, keepdims=True) * inv_n
        ex2 = jnp.sum(agg * agg, axis=0, keepdims=True) * inv_n
        var = jnp.maximum(ex2 - mean * mean, 0.0)   # clamp: cancellation can go < 0
        bn = (agg - mean) * lax.rsqrt(var + eps) * gamma_ref[0] + beta_ref[0]
        h_scr[...] = jnp.maximum(bn, 0.0)           # ReLU; dropout = identity (eval)

    # Output-layer epilogue: add bias and fill the VMEM-resident output block
    # (flushed to HBM once at the end of the grid).
    @pl.when(last_tile & last_layer)
    def _():
        c_pad = o_ref.shape[1]
        o_ref[...] = (agg_scr[...][:, :c_pad]
                      + bias_ref[0][:, :c_pad]).astype(o_ref.dtype)


# ---------------------------------------------------------------------------
# Wrapper: pad to lane-dense widths, stack per-layer params, one pallas_call
# ---------------------------------------------------------------------------
def gcn_forward(a_norm, feat, params, eps=1e-5, tile_rows=None):
    """params: list of dicts, one per layer ({'w','gamma','beta'} or {'w','b'})."""
    n = a_norm.shape[0]
    n_layers = len(params)
    n_classes = params[-1]["w"].shape[1]

    # One lane-dense feature width for all layers so the weights stack cleanly.
    dims = [feat.shape[1]] + [p["w"].shape[1] for p in params]
    f_pad = max(_round_up(d, LANE) for d in dims)
    c_pad = _round_up(n_classes, LANE)

    if tile_rows is None:
        tile_rows = _pick_tile_rows(n)
    assert n % tile_rows == 0, (n, tile_rows)
    n_tiles = n // tile_rows

    # bf16 MXU operands prepared wrapper-side (halves A's DMA + VMEM footprint).
    a_bf16 = a_norm.astype(jnp.bfloat16)
    feat_p = _pad_last(feat.astype(jnp.float32), f_pad)

    w_list, g_list, be_list, bias_list = [], [], [], []
    for i, p in enumerate(params):
        w_list.append(_pad_2d(p["w"].astype(jnp.bfloat16), f_pad, f_pad))
        if i < n_layers - 1:
            # zero-pad gamma/beta so padded lanes stay exactly zero after BN+ReLU
            g_list.append(_pad_last(p["gamma"].astype(jnp.float32), f_pad))
            be_list.append(_pad_last(p["beta"].astype(jnp.float32), f_pad))
            bias_list.append(jnp.zeros((1, f_pad), jnp.float32))   # unused
        else:
            g_list.append(jnp.ones((1, f_pad), jnp.float32))       # unused
            be_list.append(jnp.zeros((1, f_pad), jnp.float32))     # unused
            bias_list.append(_pad_last(p["b"].astype(jnp.float32), f_pad))
    w_stack = jnp.stack(w_list)           # [L, F_pad, F_pad] bf16
    gamma_stack = jnp.stack(g_list)       # [L, 1, F_pad]     f32
    beta_stack = jnp.stack(be_list)
    bias_stack = jnp.stack(bias_list)

    # VMEM budget: double-buffered A tiles + resident feat/out + W blocks + scratch.
    resident = (2 * tile_rows * n * 2            # A row tiles (bf16, 2 buffers)
                + 2 * n * f_pad * 4              # feat (resident)
                + 2 * f_pad * f_pad * 2          # W block (bf16, 2 buffers)
                + 6 * f_pad * 4                  # gamma/beta/bias blocks
                + n * f_pad * (4 + 2 + 4)        # h / hw / agg scratches
                + 2 * n * c_pad * 4)             # output block
    vmem_limit = int(min(max(int(1.5 * resident), 32 * 2**20), 64 * 2**20))

    flops = n_layers * (2 * n * f_pad * f_pad + 2 * n * n * f_pad)
    bytes_accessed = int(n_layers * a_bf16.size * 2 + feat_p.size * 4
                         + w_stack.size * 2
                         + (gamma_stack.size + beta_stack.size + bias_stack.size) * 4
                         + n * c_pad * 4)

    kernel = functools.partial(
        _fused_gcn_kernel, n_layers=n_layers, n_tiles=n_tiles,
        tile_rows=tile_rows, n_nodes=n, eps=eps)

    grid_spec = pltpu.PrefetchScalarGridSpec(
        num_scalar_prefetch=0,
        grid=(n_layers, n_tiles),
        in_specs=[
            pl.BlockSpec((tile_rows, n), lambda l, j: (j, 0)),        # A (bf16 row tiles)
            pl.BlockSpec((n, f_pad), lambda l, j: (0, 0)),            # feat (resident)
            pl.BlockSpec((1, f_pad, f_pad), lambda l, j: (l, 0, 0)),  # W_l
            pl.BlockSpec((1, 1, f_pad), lambda l, j: (l, 0, 0)),      # gamma_l
            pl.BlockSpec((1, 1, f_pad), lambda l, j: (l, 0, 0)),      # beta_l
            pl.BlockSpec((1, 1, f_pad), lambda l, j: (l, 0, 0)),      # bias_l
        ],
        out_specs=pl.BlockSpec((n, c_pad), lambda l, j: (0, 0)),      # resident output
        scratch_shapes=[
            pltpu.VMEM((n, f_pad), jnp.float32),    # h   (current layer input, f32)
            pltpu.VMEM((n, f_pad), jnp.bfloat16),   # H@W (bf16 MXU operand)
            pltpu.VMEM((n, f_pad), jnp.float32),    # agg (f32 accumulator)
        ],
    )

    out_p = pl.pallas_call(
        kernel,
        out_shape=jax.ShapeDtypeStruct((n, c_pad), jnp.float32),
        grid_spec=grid_spec,
        compiler_params=pltpu.CompilerParams(
            # Both axes are sequential: layer l+1 consumes layer l's h, and the
            # BN column statistics need every row tile of the layer first.
            dimension_semantics=("arbitrary", "arbitrary"),
            vmem_limit_bytes=vmem_limit),
        cost_estimate=pl.CostEstimate(flops=flops, transcendentals=0,
                                      bytes_accessed=bytes_accessed),
    )(a_bf16, feat_p, w_stack, gamma_stack, beta_stack, bias_stack)

    return out_p[:, :n_classes]


# ---------------------------------------------------------------------------
# Pure-JAX f32 reference (same math, same batch-stat BN, no bf16)
# ---------------------------------------------------------------------------
def gcn_reference(a_norm, feat, params, eps=1e-5):
    h = feat.astype(jnp.float32)
    a = a_norm.astype(jnp.float32)
    for i, p in enumerate(params):
        h = a @ (h @ p["w"].astype(jnp.float32))
        if i < len(params) - 1:
            mean = jnp.mean(h, axis=0, keepdims=True)
            var = jnp.mean(h * h, axis=0, keepdims=True) - mean * mean
            h = (h - mean) * lax.rsqrt(var + eps) * p["gamma"] + p["beta"]
            h = jnp.maximum(h, 0.0)
        else:
            h = h + p["b"]
    return h


# ---------------------------------------------------------------------------
# Deterministic setup + run
# ---------------------------------------------------------------------------
def _make_params(key, in_feats, n_hidden, n_classes, n_layers):
    params = []
    for i in range(n_layers):
        in_h = n_hidden if i > 0 else in_feats
        out_h = n_hidden if i < n_layers - 1 else n_classes
        key, kw = jax.random.split(key)
        limit = (6.0 / (in_h + out_h)) ** 0.5
        w = jax.random.uniform(kw, (in_h, out_h), jnp.float32, -limit, limit)
        if i < n_layers - 1:
            params.append({
                "w": w,
                "gamma": jnp.ones((1, out_h), jnp.float32),
                "beta": jnp.zeros((1, out_h), jnp.float32),
            })
        else:
            params.append({
                "w": w,
                "b": jnp.zeros((1, out_h), jnp.float32),
            })
    return params


def _make_graph(key, n_nodes):
    """Symmetric adjacency with self-loops and its 'both'-normalized dense matrix."""
    logits = jax.random.uniform(key, (n_nodes, n_nodes), jnp.float32)
    adj = (logits > 0.85).astype(jnp.float32)
    adj = jnp.maximum(adj, adj.T)                                # undirected
    adj = jnp.maximum(adj, jnp.eye(n_nodes, dtype=jnp.float32))  # self-loops
    deg = jnp.sum(adj, axis=1)
    d_inv_sqrt = 1.0 / jnp.sqrt(deg)
    return adj * d_inv_sqrt[:, None] * d_inv_sqrt[None, :]


if __name__ == "__main__":
    key = jax.random.PRNGKey(0)
    k_graph, k_feat, k_params = jax.random.split(key, 3)

    N = 512          # nodes: multiple of 256 -> two 256-row A tiles (grid row axis)
    IN_FEATS = 32
    N_HIDDEN = 64
    N_CLASSES = 16
    N_LAYERS = 3

    a_norm = _make_graph(k_graph, N)
    feat = jax.random.normal(k_feat, (N, IN_FEATS), jnp.float32)
    params = _make_params(k_params, IN_FEATS, N_HIDDEN, N_CLASSES, N_LAYERS)

    out = gcn_forward(a_norm, feat, params)
    out = jax.block_until_ready(out)
    assert out.shape == (N, N_CLASSES), out.shape
    assert bool(jnp.all(jnp.isfinite(out)))

    ref = gcn_reference(a_norm, feat, params)
    max_err = float(jnp.max(jnp.abs(out - ref)))
    assert max_err < 5e-2, f"max |kernel - reference| = {max_err}"

    print("KERNEL_OK")
</pallas_src>

<mosaic_0001>
module attributes {stable_mosaic.version = 11 : i64} {
  func.func @_fused_gcn_kernel(%arg0: i32, %arg1: i32, %arg2: memref<256x512xbf16, #tpu.memory_space<vmem>>, %arg3: memref<512x128xf32, #tpu.memory_space<vmem>>, %arg4: memref<1x128x128xbf16, #tpu.memory_space<vmem>>, %arg5: memref<1x1x128xf32, #tpu.memory_space<vmem>>, %arg6: memref<1x1x128xf32, #tpu.memory_space<vmem>>, %arg7: memref<1x1x128xf32, #tpu.memory_space<vmem>>, %arg8: memref<512x128xf32, #tpu.memory_space<vmem>>, %arg9: memref<512x128xf32, #tpu.memory_space<vmem>>, %arg10: memref<512x128xbf16, #tpu.memory_space<vmem>>, %arg11: memref<512x128xf32, #tpu.memory_space<vmem>>) attributes {dimension_semantics = [#tpu.dimension_semantics<arbitrary>, #tpu.dimension_semantics<arbitrary>], iteration_bounds = array<i64: 3, 2>, scalar_prefetch = 0 : i64, scratch_operands = 3 : i64, tpu.core_type = #tpu.core_type<tc>, window_params = [{transform_indices = @transform_0, window_bounds = array<i64: 256, 512>}, {pipeline_mode = #tpu.pipeline_mode<synchronous>, transform_indices = @transform_1, window_bounds = array<i64: 512, 128>}, {transform_indices = @transform_2, window_bounds = array<i64: 1, 128, 128>}, {transform_indices = @transform_3, window_bounds = array<i64: 1, 1, 128>}, {transform_indices = @transform_4, window_bounds = array<i64: 1, 1, 128>}, {transform_indices = @transform_5, window_bounds = array<i64: 1, 1, 128>}, {pipeline_mode = #tpu.pipeline_mode<synchronous>, transform_indices = @transform_6, window_bounds = array<i64: 512, 128>}]} {
    %c2_i32 = arith.constant 2 : i32
    %0 = arith.cmpi eq, %arg0, %c2_i32 : i32
    %c1_i32 = arith.constant 1 : i32
    %1 = arith.cmpi eq, %arg1, %c1_i32 : i32
    %c0_i32 = arith.constant 0 : i32
    %2 = arith.cmpi eq, %arg0, %c0_i32 : i32
    %c0_i32_0 = arith.constant 0 : i32
    %3 = arith.cmpi eq, %arg1, %c0_i32_0 : i32
    %4 = arith.andi %2, %3 : i1
    %5 = arith.extui %4 : i1 to i32
    %c0_i32_1 = arith.constant 0 : i32
    %6 = arith.cmpi ne, %5, %c0_i32_1 : i32
    scf.if %6 {
      %c0_10 = arith.constant 0 : index
      %c0_11 = arith.constant 0 : index
      %24 = vector.load %arg3[%c0_10, %c0_11] : memref<512x128xf32, #tpu.memory_space<vmem>>, vector<512x128xf32>
      %c0_12 = arith.constant 0 : index
      %c0_13 = arith.constant 0 : index
      %25 = vector.load %arg9[%c0_12, %c0_13] : memref<512x128xf32, #tpu.memory_space<vmem>>, vector<512x128xf32>
      tpu.vector_store %arg9[%c0_12, %c0_13], %24 {strides = array<i32>} : memref<512x128xf32, #tpu.memory_space<vmem>>, vector<512x128xf32>,
    } else {
    }
    %c0_i32_2 = arith.constant 0 : i32
    %7 = arith.cmpi eq, %arg1, %c0_i32_2 : i32
    %8 = arith.extui %7 : i1 to i32
    %c0_i32_3 = arith.constant 0 : i32
    %9 = arith.cmpi ne, %8, %c0_i32_3 : i32
    scf.if %9 {
      %c0_10 = arith.constant 0 : index
      %c0_11 = arith.constant 0 : index
      %24 = vector.load %arg9[%c0_10, %c0_11] : memref<512x128xf32, #tpu.memory_space<vmem>>, vector<512x128xf32>
      %25 = arith.truncf %24 : vector<512x128xf32> to vector<512x128xbf16>
      %c0_12 = arith.constant 0 : index
      %c0_13 = arith.constant 0 : index
      %c0_14 = arith.constant 0 : index
      %26 = vector.load %arg4[%c0_12, %c0_13, %c0_14] : memref<1x128x128xbf16, #tpu.memory_space<vmem>>, vector<1x128x128xbf16>
      %27 = vector.shape_cast %26 : vector<1x128x128xbf16> to vector<128x128xbf16>
      %cst_15 = arith.constant dense<0.000000e+00> : vector<512x128xf32>
      %28 = tpu.matmul %25, %27, %cst_15 {dimension_numbers = #tpu.dot_dimension_numbers<[1], [0], [0], [1], [0, 0, 1, 1], [], []>} : vector<512x128xbf16>, vector<128x128xbf16>, vector<512x128xf32> -> vector<512x128xf32>
      %29 = arith.truncf %28 : vector<512x128xf32> to vector<512x128xbf16>
      %c0_16 = arith.constant 0 : index
      %c0_17 = arith.constant 0 : index
      %30 = vector.load %arg10[%c0_16, %c0_17] : memref<512x128xbf16, #tpu.memory_space<vmem>>, vector<512x128xbf16>
      tpu.vector_store %arg10[%c0_16, %c0_17], %29 {strides = array<i32>} : memref<512x128xbf16, #tpu.memory_space<vmem>>, vector<512x128xbf16>,
    } else {
    }
    %c256_i32 = arith.constant 256 : i32
    %10 = arith.muli %arg1, %c256_i32 : i32
    %11 = tpu.assume_multiple %10, 256 : i32
    %c0 = arith.constant 0 : index
    %c0_4 = arith.constant 0 : index
    %12 = vector.load %arg2[%c0, %c0_4] : memref<256x512xbf16, #tpu.memory_space<vmem>>, vector<256x512xbf16>
    %c0_5 = arith.constant 0 : index
    %c0_6 = arith.constant 0 : index
    %13 = vector.load %arg10[%c0_5, %c0_6] : memref<512x128xbf16, #tpu.memory_space<vmem>>, vector<512x128xbf16>
    %cst = arith.constant dense<0.000000e+00> : vector<256x128xf32>
    %14 = tpu.matmul %12, %13, %cst {dimension_numbers = #tpu.dot_dimension_numbers<[1], [0], [0], [1], [0, 0, 1, 1], [], []>} : vector<256x512xbf16>, vector<512x128xbf16>, vector<256x128xf32> -> vector<256x128xf32>
    %15 = arith.index_cast %11 : i32 to index
    %c0_7 = arith.constant 0 : index
    %16 = vector.load %arg11[%15, %c0_7] : memref<512x128xf32, #tpu.memory_space<vmem>>, vector<256x128xf32>
    tpu.vector_store %arg11[%15, %c0_7], %14 {strides = array<i32>} : memref<512x128xf32, #tpu.memory_space<vmem>>, vector<256x128xf32>,
    %true = arith.constant true
    %17 = arith.xori %0, %true : i1
    %18 = arith.andi %1, %17 : i1
    %19 = arith.extui %18 : i1 to i32
    %c0_i32_8 = arith.constant 0 : i32
    %20 = arith.cmpi ne, %19, %c0_i32_8 : i32
    scf.if %20 {
      %c0_10 = arith.constant 0 : index
      %c0_11 = arith.constant 0 : index
      %24 = vector.load %arg11[%c0_10, %c0_11] : memref<512x128xf32, #tpu.memory_space<vmem>>, vector<512x128xf32>
      %cst_12 = arith.constant dense<0.000000e+00> : vector<128xf32>
      %25 = vector.multi_reduction <add>, %24, %cst_12 [0] : vector<512x128xf32> to vector<128xf32>
      %26 = vector.shape_cast %25 : vector<128xf32> to vector<1x128xf32>
      %cst_13 = arith.constant 0.001953125 : f32
      %27 = vector.broadcast %cst_13 : f32 to vector<1x128xf32>
      %28 = arith.mulf %26, %27 : vector<1x128xf32>
      %29 = arith.mulf %24, %24 : vector<512x128xf32>
      %cst_14 = arith.constant dense<0.000000e+00> : vector<128xf32>
      %30 = vector.multi_reduction <add>, %29, %cst_14 [0] : vector<512x128xf32> to vector<128xf32>
      %31 = vector.shape_cast %30 : vector<128xf32> to vector<1x128xf32>
      %cst_15 = arith.constant 0.001953125 : f32
      %32 = vector.broadcast %cst_15 : f32 to vector<1x128xf32>
      %33 = arith.mulf %31, %32 : vector<1x128xf32>
      %34 = arith.mulf %28, %28 : vector<1x128xf32>
      %35 = arith.subf %33, %34 : vector<1x128xf32>
      %cst_16 = arith.constant 0.000000e+00 : f32
      %36 = vector.broadcast %cst_16 : f32 to vector<1x128xf32>
      %37 = arith.maximumf %35, %36 : vector<1x128xf32>
      %38 = vector.broadcast %28 : vector<1x128xf32> to vector<512x128xf32>
      %39 = arith.subf %24, %38 : vector<512x128xf32>
      %cst_17 = arith.constant 9.99999974E-6 : f32
      %40 = vector.broadcast %cst_17 : f32 to vector<1x128xf32>
      %41 = arith.addf %37, %40 : vector<1x128xf32>
      %42 = math.rsqrt %41 : vector<1x128xf32>
      %43 = vector.broadcast %42 : vector<1x128xf32> to vector<512x128xf32>
      %44 = arith.mulf %39, %43 : vector<512x128xf32>
      %c0_18 = arith.constant 0 : index
      %c0_19 = arith.constant 0 : index
      %c0_20 = arith.constant 0 : index
      %45 = vector.load %arg5[%c0_18, %c0_19, %c0_20] : memref<1x1x128xf32, #tpu.memory_space<vmem>>, vector<1x1x128xf32>
      %46 = vector.shape_cast %45 : vector<1x1x128xf32> to vector<1x128xf32>
      %47 = vector.broadcast %46 : vector<1x128xf32> to vector<512x128xf32>
      %48 = arith.mulf %44, %47 : vector<512x128xf32>
      %c0_21 = arith.constant 0 : index
      %c0_22 = arith.constant 0 : index
      %c0_23 = arith.constant 0 : index
      %49 = vector.load %arg6[%c0_21, %c0_22, %c0_23] : memref<1x1x128xf32, #tpu.memory_space<vmem>>, vector<1x1x128xf32>
      %50 = vector.shape_cast %49 : vector<1x1x128xf32> to vector<1x128xf32>
      %51 = vector.broadcast %50 : vector<1x128xf32> to vector<512x128xf32>
      %52 = arith.addf %48, %51 : vector<512x128xf32>
      %cst_24 = arith.constant 0.000000e+00 : f32
      %53 = vector.broadcast %cst_24 : f32 to vector<512x128xf32>
      %54 = arith.maximumf %52, %53 : vector<512x128xf32>
      %c0_25 = arith.constant 0 : index
      %c0_26 = arith.constant 0 : index
      %55 = vector.load %arg9[%c0_25, %c0_26] : memref<512x128xf32, #tpu.memory_space<vmem>>, vector<512x128xf32>
      tpu.vector_store %arg9[%c0_25, %c0_26], %54 {strides = array<i32>} : memref<512x128xf32, #tpu.memory_space<vmem>>, vector<512x128xf32>,
    } else {
    }
    %21 = arith.andi %1, %0 : i1
    %22 = arith.extui %21 : i1 to i32
    %c0_i32_9 = arith.constant 0 : i32
    %23 = arith.cmpi ne, %22, %c0_i32_9 : i32
    scf.if %23 {
      %c0_10 = arith.constant 0 : index
      %c0_11 = arith.constant 0 : index
      %24 = vector.load %arg11[%c0_10, %c0_11] : memref<512x128xf32, #tpu.memory_space<vmem>>, vector<512x128xf32>
      %c0_12 = arith.constant 0 : index
      %c0_13 = arith.constant 0 : index
      %c0_14 = arith.constant 0 : index
      %25 = vector.load %arg7[%c0_12, %c0_13, %c0_14] : memref<1x1x128xf32, #tpu.memory_space<vmem>>, vector<1x1x128xf32>
      %26 = vector.shape_cast %25 : vector<1x1x128xf32> to vector<1x128xf32>
      %27 = vector.broadcast %26 : vector<1x128xf32> to vector<512x128xf32>
      %28 = arith.addf %24, %27 : vector<512x128xf32>
      %c0_15 = arith.constant 0 : index
      %c0_16 = arith.constant 0 : index
      %29 = vector.load %arg8[%c0_15, %c0_16] : memref<512x128xf32, #tpu.memory_space<vmem>>, vector<512x128xf32>
      tpu.vector_store %arg8[%c0_15, %c0_16], %28 {strides = array<i32>} : memref<512x128xf32, #tpu.memory_space<vmem>>, vector<512x128xf32>,
    } else {
    }
    return
  }
  func.func @transform_0(%arg0: i32, %arg1: i32) -> (i32, i32) {
    %c0_i32 = arith.constant 0 : i32
    %c0_i32_0 = arith.constant 0 : i32
    return %arg1, %c0_i32 : i32, i32
  }
  func.func @transform_1(%arg0: i32, %arg1: i32) -> (i32, i32) {
    %c0_i32 = arith.constant 0 : i32
    %c0_i32_0 = arith.constant 0 : i32
    %c0_i32_1 = arith.constant 0 : i32
    return %c0_i32, %c0_i32_0 : i32, i32
  }
  func.func @transform_2(%arg0: i32, %arg1: i32) -> (i32, i32, i32) {
    %c0_i32 = arith.constant 0 : i32
    %c0_i32_0 = arith.constant 0 : i32
    %c0_i32_1 = arith.constant 0 : i32
    return %arg0, %c0_i32, %c0_i32_0 : i32, i32, i32
  }
  func.func @transform_3(%arg0: i32, %arg1: i32) -> (i32, i32, i32) {
    %c0_i32 = arith.constant 0 : i32
    %c0_i32_0 = arith.constant 0 : i32
    %c0_i32_1 = arith.constant 0 : i32
    return %arg0, %c0_i32, %c0_i32_0 : i32, i32, i32
  }
  func.func @transform_4(%arg0: i32, %arg1: i32) -> (i32, i32, i32) {
    %c0_i32 = arith.constant 0 : i32
    %c0_i32_0 = arith.constant 0 : i32
    %c0_i32_1 = arith.constant 0 : i32
    return %arg0, %c0_i32, %c0_i32_0 : i32, i32, i32
  }
  func.func @transform_5(%arg0: i32, %arg1: i32) -> (i32, i32, i32) {
    %c0_i32 = arith.constant 0 : i32
    %c0_i32_0 = arith.constant 0 : i32
    %c0_i32_1 = arith.constant 0 : i32
    return %arg0, %c0_i32, %c0_i32_0 : i32, i32, i32
  }
  func.func @transform_6(%arg0: i32, %arg1: i32) -> (i32, i32) {
    %c0_i32 = arith.constant 0 : i32
    %c0_i32_0 = arith.constant 0 : i32
    %c0_i32_1 = arith.constant 0 : i32
    return %c0_i32, %c0_i32_0 : i32, i32
  }
}

</mosaic_0001>

<llo_original>
// kernel: tpu_custom_call.1
$region0: #{tpu_custom_call.1}
  #allocation0 [shape = 'u32[]', space=smem, size = 0x4, offset = 0x4, fixed_abs, tag = 'smem constant byte address 0x4 - core index']
  #allocation1 [shape = 'u32[144,128]{1,0:T(1,128)}', space=vmem, size = 0x12000, scoped, tag = 'internal scratch']
  #allocation2 [shape = 'f32[512,128]{1,0:T(8,128)}', space=vmem, size = 0x40000, scoped, tag = 'scratch operand']
  #allocation3 [shape = 'bf16[512,128]{1,0:T(8,128)(2,1)}', space=vmem, size = 0x20000, scoped, tag = 'scratch operand']
  #allocation4 [shape = 'f32[512,128]{1,0:T(8,128)}', space=vmem, size = 0x40000, scoped, tag = 'scratch operand']
  %s0 = inlined_call_operand.hbm [shape: bf16[512,512], index: 0, kind: input, shape index: {}]
  %s1 = inlined_call_operand.hbm [shape: f32[512,128], index: 1, kind: input, shape index: {}]
  %s2 = inlined_call_operand.hbm [shape: bf16[3,128,128], index: 2, kind: input, shape index: {}]
  %s3 = inlined_call_operand.vmem [shape: f32[3,1,128], index: 3, kind: input, shape index: {}]
  %s4 = inlined_call_operand.vmem [shape: f32[3,1,128], index: 4, kind: input, shape index: {}]
  %s5 = inlined_call_operand.vmem [shape: f32[3,1,128], index: 5, kind: input, shape index: {}]
  %s6 = inlined_call_operand.hbm [shape: f32[512,128], index: 6, kind: output, shape index: {}]
  %s7 = sld [smem:[#allocation0]]
  $region85: #{tpu_custom_call.1} parent=0
    _
  %s9 = ssub.s32 1, %s7
  %s10 = scalar_select 0, %s9, %s7
  $region1: #{tpu_custom_call.1} parent=0
    #allocation5 [shape = 'u8[524288]{0}', space=vmem, size = 0x80000, scoped, tag = 'input window, operand 0']
    #allocation6 [shape = 's32[2]{0}', space=sflag, size = 0x8, scoped, tag = 'scoped memory for tpu_custom_call.1']
    #allocation7 [shape = 's32[2]{0}', space=sflag, size = 0x8, scoped, tag = 'scoped memory for tpu_custom_call.1']
    #allocation8 [shape = 'u8[262144]{0}', space=vmem, size = 0x40000, scoped, tag = 'input window, operand 1, single buffered']
    #allocation9 [shape = 's32[1]{0}', space=sflag, size = 0x4, scoped, tag = 'scoped memory for tpu_custom_call.1']
    #allocation10 [shape = 'u8[65536]{0}', space=vmem, size = 0x10000, scoped, tag = 'input window, operand 2']
    #allocation11 [shape = 'u8[262144]{0}', space=vmem, size = 0x40000, scoped, tag = 'output window, operand 0, single buffered']
    %11 = vsyncpa [#allocation6], 0
    %s12 = scalar_lea.sflag [#allocation6], 1
    %13 = vsyncpa %s12, 0
    %14 = vsyncpa [#allocation9], 0
    %15 = vsyncpa [#allocation7], 0
    loop: start=0, step=1, limit=8
    $region2: #{tpu_custom_call.1} parent=1 // loop_pre_header
      _
    $region3: #{tpu_custom_call.1} parent=1 // loop_header
      %s17 = sphi 0, %s21
      %p18 = scmp.ge.s32.totalorder %s17, 8
      %s24 = sphi 0, %s36
      %s25 = sphi 0, %s32
      %s26 = sphi 0, %s24
      %s27 = sphi 0, %s25
      %s28 = sphi 0, %s26
      %s29 = sphi 0, %s27
      %s39 = sphi 0, %s41
      %s42 = sphi 0, %s39
      %s43 = sphi 0, %s42
      %s59 = sphi 0, %s43
      %s63 = sphi 0, %s63
      %s65 = sphi 0, %s63
      %s66 = sphi 0, %s65
      %s80 = sphi 0, %s66
      %s86 = sphi 0, %s88
      %s89 = sphi 0, %s86
      %s90 = sphi 0, %s89
      %s106 = sphi 0, %s90
      %s112 = sphi 0, %s114
      %s115 = sphi 0, %s112
      %s116 = sphi 0, %s115
      %s132 = sphi 0, %s116
      %s138 = sphi 0, %s140
      %s141 = sphi 0, %s138
      %s142 = sphi 0, %s141
      %s158 = sphi 0, %s142
      %s164 = sphi 0, %s166
      %s167 = sphi 0, %s164
      %s168 = sphi 0, %s167
      %s184 = sphi 0, %s168
      %s188 = sphi 0, %s188
      %s190 = sphi 0, %s188
      %s191 = sphi 0, %s190
      %s205 = sphi 0, %s191
    $region4: #{tpu_custom_call.1} parent=1 // loop_header_branch
      %20 = sbr.rel (%p18) target = $region8
    $region5: #{tpu_custom_call.1} parent=1 // loop_body
      %s22 = ssub.s32 %s17, 1
      %s23 = ssub.s32 %s17, 2
      %s30 = sadd.s32 1, %s25
      %p31 = scmp.ge.s32.totalorder %s30, 2
      %s32 = scalar_select %p31, 0, %s30
      %s33 = sadd.s32 1, %s24
      %s34 = scalar_select %p31, %s33, %s24
      %p35 = scmp.ge.s32.totalorder %s34, 3
      %s36 = scalar_select %p35, 0, %s34
      %s37 = ssub.s32 %s25, %s32
      %p38 = scmp.eq.s32.totalorder %s37, 0
      %s40 = sadd.s32 %s39, 1
      %s41 = scalar_select %p38, %s39, %s40
      %p44 = pneg %p38
      %p45 = scmp.eq.s32.totalorder %s17, 5
      %p46 = por %p44, %p45
      %p47 = scmp.ne.s32.totalorder %s39, %s42
      %p48 = scmp.eq.s32.totalorder %s17, 0
      %p49 = por %p47, %p48
      %p50 = scmp.ne.s32.totalorder %s39, %s42
      %p51 = scmp.eq.s32.totalorder %s22, 5
      %p52 = por %p50, %p51
      %p53 = scmp.ne.s32.totalorder %s42, %s43
      %p54 = scmp.eq.s32.totalorder %s22, 0
      %p55 = por %p53, %p54
      %p56 = scmp.ne.s32.totalorder %s42, %s43
      %p57 = scmp.eq.s32.totalorder %s23, 5
      %p58 = por %p56, %p57
      %p60 = scmp.ne.s32.totalorder %s43, %s59
      %p61 = scmp.eq.s32.totalorder %s23, 0
      %p62 = por %p60, %p61
      %s64 = sadd.s32 %s63, 1
      %p67 = scmp.eq.s32.totalorder %s17, 5
      %p68 = scmp.ne.s32.totalorder %s63, %s65
      %p69 = scmp.eq.s32.totalorder %s17, 0
      %p70 = por %p68, %p69
      %p71 = scmp.ne.s32.totalorder %s63, %s65
      %p72 = scmp.eq.s32.totalorder %s22, 5
      %p73 = por %p71, %p72
      %p74 = scmp.ne.s32.totalorder %s65, %s66
      %p75 = scmp.eq.s32.totalorder %s22, 0
      %p76 = por %p74, %p75
      %p77 = scmp.ne.s32.totalorder %s65, %s66
      %p78 = scmp.eq.s32.totalorder %s23, 5
      %p79 = por %p77, %p78
      %p81 = scmp.ne.s32.totalorder %s66, %s80
      %p82 = scmp.eq.s32.totalorder %s23, 0
      %p83 = por %p81, %p82
      %s84 = ssub.s32 %s24, %s36
      %p85 = scmp.eq.s32.totalorder %s84, 0
      %s87 = sadd.s32 %s86, 1
      %s88 = scalar_select %p85, %s86, %s87
      %p91 = pneg %p85
      %p92 = scmp.eq.s32.totalorder %s17, 5
      %p93 = por %p91, %p92
      %p94 = scmp.ne.s32.totalorder %s86, %s89
      %p95 = scmp.eq.s32.totalorder %s17, 0
      %p96 = por %p94, %p95
      %p97 = scmp.ne.s32.totalorder %s86, %s89
      %p98 = scmp.eq.s32.totalorder %s22, 5
      %p99 = por %p97, %p98
      %p100 = scmp.ne.s32.totalorder %s89, %s90
      %p101 = scmp.eq.s32.totalorder %s22, 0
      %p102 = por %p100, %p101
      %p103 = scmp.ne.s32.totalorder %s89, %s90
      %p104 = scmp.eq.s32.totalorder %s23, 5
      %p105 = por %p103, %p104
      %p107 = scmp.ne.s32.totalorder %s90, %s106
      %p108 = scmp.eq.s32.totalorder %s23, 0
      %p109 = por %p107, %p108
      %s110 = ssub.s32 %s24, %s36
      %p111 = scmp.eq.s32.totalorder %s110, 0
      %s113 = sadd.s32 %s112, 1
      %s114 = scalar_select %p111, %s112, %s113
      %p117 = pneg %p111
      %p118 = scmp.eq.s32.totalorder %s17, 5
      %p119 = por %p117, %p118
      %p120 = scmp.ne.s32.totalorder %s112, %s115
      %p121 = scmp.eq.s32.totalorder %s17, 0
      %p122 = por %p120, %p121
      %p123 = scmp.ne.s32.totalorder %s112, %s115
      %p124 = scmp.eq.s32.totalorder %s22, 5
      %p125 = por %p123, %p124
      %p126 = scmp.ne.s32.totalorder %s115, %s116
      %p127 = scmp.eq.s32.totalorder %s22, 0
      %p128 = por %p126, %p127
      %p129 = scmp.ne.s32.totalorder %s115, %s116
      %p130 = scmp.eq.s32.totalorder %s23, 5
      %p131 = por %p129, %p130
      %p133 = scmp.ne.s32.totalorder %s116, %s132
      %p134 = scmp.eq.s32.totalorder %s23, 0
      %p135 = por %p133, %p134
      %s136 = ssub.s32 %s24, %s36
      %p137 = scmp.eq.s32.totalorder %s136, 0
      %s139 = sadd.s32 %s138, 1
      %s140 = scalar_select %p137, %s138, %s139
      %p143 = pneg %p137
      %p144 = scmp.eq.s32.totalorder %s17, 5
      %p145 = por %p143, %p144
      %p146 = scmp.ne.s32.totalorder %s138, %s141
      %p147 = scmp.eq.s32.totalorder %s17, 0
      %p148 = por %p146, %p147
      %p149 = scmp.ne.s32.totalorder %s138, %s141
      %p150 = scmp.eq.s32.totalorder %s22, 5
      %p151 = por %p149, %p150
      %p152 = scmp.ne.s32.totalorder %s141, %s142
      %p153 = scmp.eq.s32.totalorder %s22, 0
      %p154 = por %p152, %p153
      %p155 = scmp.ne.s32.totalorder %s141, %s142
      %p156 = scmp.eq.s32.totalorder %s23, 5
      %p157 = por %p155, %p156
      %p159 = scmp.ne.s32.totalorder %s142, %s158
      %p160 = scmp.eq.s32.totalorder %s23, 0
      %p161 = por %p159, %p160
      %s162 = ssub.s32 %s24, %s36
      %p163 = scmp.eq.s32.totalorder %s162, 0
      %s165 = sadd.s32 %s164, 1
      %s166 = scalar_select %p163, %s164, %s165
      %p169 = pneg %p163
      %p170 = scmp.eq.s32.totalorder %s17, 5
      %p171 = por %p169, %p170
      %p172 = scmp.ne.s32.totalorder %s164, %s167
      %p173 = scmp.eq.s32.totalorder %s17, 0
      %p174 = por %p172, %p173
      %p175 = scmp.ne.s32.totalorder %s164, %s167
      %p176 = scmp.eq.s32.totalorder %s22, 5
      %p177 = por %p175, %p176
      %p178 = scmp.ne.s32.totalorder %s167, %s168
      %p179 = scmp.eq.s32.totalorder %s22, 0
      %p180 = por %p178, %p179
      %p181 = scmp.ne.s32.totalorder %s167, %s168
      %p182 = scmp.eq.s32.totalorder %s23, 5
      %p183 = por %p181, %p182
      %p185 = scmp.ne.s32.totalorder %s168, %s184
      %p186 = scmp.eq.s32.totalorder %s23, 0
      %p187 = por %p185, %p186
      %s189 = sadd.s32 %s188, 1
      %p192 = scmp.eq.s32.totalorder %s17, 5
      %p193 = scmp.ne.s32.totalorder %s188, %s190
      %p194 = scmp.eq.s32.totalorder %s17, 0
      %p195 = por %p193, %p194
      %p196 = scmp.ne.s32.totalorder %s188, %s190
      %p197 = scmp.eq.s32.totalorder %s22, 5
      %p198 = por %p196, %p197
      %p199 = scmp.ne.s32.totalorder %s190, %s191
      %p200 = scmp.eq.s32.totalorder %s22, 0
      %p201 = por %p199, %p200
      %p202 = scmp.ne.s32.totalorder %s190, %s191
      %p203 = scmp.eq.s32.totalorder %s23, 5
      %p204 = por %p202, %p203
      %p206 = scmp.ne.s32.totalorder %s191, %s205
      %p207 = scmp.eq.s32.totalorder %s23, 0
      %p208 = por %p206, %p207
      %p209 = scmp.le.s32.totalorder 1, %s17
      %p210 = scmp.lt.s32.totalorder %s17, 7
      %p211 = pnand %p209, %p210
      %p212 = pneg %p211
      // Predicated region
      $region9: #{tpu_custom_call.1} parent=5 // pred_check
        _
      $region10: #{tpu_custom_call.1} parent=5 // pred_check_branch
        %214 = sbr.rel (%p211) target = $region12
      $region11: #{tpu_custom_call.1} parent=5 // pred_region
        %s215 = ssub.s32 %s17, 1
        // Predicated region
        $region13: #{tpu_custom_call.1} parent=11 // pred_check
          %p216 = pneg %p76
        $region14: #{tpu_custom_call.1} parent=11 // pred_check_branch
          %218 = sbr.rel (%p216) target = $region16
        $region15: #{tpu_custom_call.1} parent=11 // pred_region
          %s220 = ssub.s32 8192, 8192
          %221 = vsyncadd [#allocation9], %s220
          %s222 = sshll.u32 [#allocation8], 4
          %s223 = int_to_ptr.vmem [resolvable:$true] %s222
          %228 = dma.hbm_to_vmem [thread:$0]  %s1, 8192, %s223, [#allocation9], 128, 128, 8
        $region16: #{tpu_custom_call.1} parent=11 // pred_fallthru
          _
      $region12: #{tpu_custom_call.1} parent=5 // pred_fallthru
        _
      %p229 = scmp.lt.s32.totalorder %s17, 6
      // Predicated region
      $region17: #{tpu_custom_call.1} parent=5 // pred_check
        %p230 = pneg %p229
      $region18: #{tpu_custom_call.1} parent=5 // pred_check_branch
        %232 = sbr.rel (%p230) target = $region20
      $region19: #{tpu_custom_call.1} parent=5 // pred_region
        // Predicated region
        $region21: #{tpu_custom_call.1} parent=19 // pred_check
          %p233 = pneg %p49
        $region22: #{tpu_custom_call.1} parent=19 // pred_check_branch
          %235 = sbr.rel (%p233) target = $region24
        $region23: #{tpu_custom_call.1} parent=19 // pred_region
          %s236 = sand.u32 %s17, 1
          %s237 = scalar_lea.sflag [#allocation6], %s236
          %s238 = sand.u32 %s39, 1
          %s239 = smul.addr %s238, 512
          %s240 = scalar_lea.vmem [#allocation5], %s239
          %s241 = smul.u32 32, %s25
          %s243 = ssub.s32 8192, 8192
          %244 = vsyncadd %s237, %s243
          %s245 = smul.addr %s241, 4
          %s246 = smul.addr %s245, 64
          %s247 = scalar_lea.hbm %s0, %s246
          %s248 = sshll.u32 %s240, 4
          %s249 = int_to_ptr.vmem [resolvable:$true] %s248
          %254 = dma.hbm_to_vmem [thread:$0]  %s247, 8192, %s249, %s237, 256, 256, 16
        $region24: #{tpu_custom_call.1} parent=19 // pred_fallthru
          _
        // Predicated region
        $region25: #{tpu_custom_call.1} parent=19 // pred_check
          %p255 = pneg %p96
        $region26: #{tpu_custom_call.1} parent=19 // pred_check_branch
          %257 = sbr.rel (%p255) target = $region28
        $region27: #{tpu_custom_call.1} parent=19 // pred_region
          %s258 = sand.u32 %s17, 1
          %s259 = scalar_lea.sflag [#allocation6], %s258
          %s260 = sand.u32 %s86, 1
          %s261 = smul.addr %s260, 64
          %s262 = scalar_lea.vmem [#allocation10], %s261
          %s264 = ssub.s32 1024, 1024
          %265 = vsyncadd %s259, %s264
          %s266 = smul.addr %s24, 16
          %s267 = smul.addr %s266, 64
          %s268 = scalar_lea.hbm %s2, %s267
          %s269 = sshll.u32 %s262, 4
          %s270 = int_to_ptr.vmem [resolvable:$true] %s269
          %275 = dma.hbm_to_vmem [thread:$0]  %s268, 1024, %s270, %s259, 64, 64, 4
        $region28: #{tpu_custom_call.1} parent=19 // pred_fallthru
          _
        // Predicated region
        $region29: #{tpu_custom_call.1} parent=19 // pred_check
          %p276 = pneg %p122
        $region30: #{tpu_custom_call.1} parent=19 // pred_check_branch
          %278 = sbr.rel (%p276) target = $region32
        $region31: #{tpu_custom_call.1} parent=19 // pred_region
          %p279 = scmp.lt.s32.totalorder %s24, 2
          %s280 = scalar_select %p279, %s24, 2
          %s281 = scalar_lea.vmem %s3, %s280
        $region32: #{tpu_custom_call.1} parent=19 // pred_fallthru
          _
        // Predicated region
        $region33: #{tpu_custom_call.1} parent=19 // pred_check
          %p282 = pneg %p148
        $region34: #{tpu_custom_call.1} parent=19 // pred_check_branch
          %284 = sbr.rel (%p282) target = $region36
        $region35: #{tpu_custom_call.1} parent=19 // pred_region
          %p285 = scmp.lt.s32.totalorder %s24, 2
          %s286 = scalar_select %p285, %s24, 2
          %s287 = scalar_lea.vmem %s4, %s286
        $region36: #{tpu_custom_call.1} parent=19 // pred_fallthru
          _
        // Predicated region
        $region37: #{tpu_custom_call.1} parent=19 // pred_check
          %p288 = pneg %p174
        $region38: #{tpu_custom_call.1} parent=19 // pred_check_branch
          %290 = sbr.rel (%p288) target = $region40
        $region39: #{tpu_custom_call.1} parent=19 // pred_region
          %p291 = scmp.lt.s32.totalorder %s24, 2
          %s292 = scalar_select %p291, %s24, 2
          %s293 = scalar_lea.vmem %s5, %s292
        $region40: #{tpu_custom_call.1} parent=19 // pred_fallthru
          _
      $region20: #{tpu_custom_call.1} parent=5 // pred_fallthru
        _
      %p294 = scmp.le.s32.totalorder 1, %s17
      %p295 = scmp.lt.s32.totalorder %s17, 7
      %p296 = pnand %p294, %p295
      %p297 = pneg %p296
      // Predicated region
      $region41: #{tpu_custom_call.1} parent=5 // pred_check
        _
      $region42: #{tpu_custom_call.1} parent=5 // pred_check_branch
        %299 = sbr.rel (%p296) target = $region44
      $region43: #{tpu_custom_call.1} parent=5 // pred_region
        %s300 = ssub.s32 %s17, 1
        %s301 = sand.u32 %s22, 1
        %s302 = scalar_lea.sflag [#allocation6], %s301
        %s303 = sand.u32 %s42, 1
        %s304 = smul.addr %s303, 512
        %s305 = scalar_lea.vmem [#allocation5], %s304
        // Predicated region
        $region45: #{tpu_custom_call.1} parent=43 // pred_check
          %p306 = pneg %p55
        $region46: #{tpu_custom_call.1} parent=43 // pred_check_branch
          %308 = sbr.rel (%p306) target = $region48
        $region47: #{tpu_custom_call.1} parent=43 // pred_region
          %309 = dma.done %s302, 8192
        $region48: #{tpu_custom_call.1} parent=43 // pred_fallthru
          _
        // Predicated region
        $region49: #{tpu_custom_call.1} parent=43 // pred_check
          %p310 = pneg %p76
        $region50: #{tpu_custom_call.1} parent=43 // pred_check_branch
          %312 = sbr.rel (%p310) target = $region52
        $region51: #{tpu_custom_call.1} parent=43 // pred_region
          %313 = dma.done [#allocation9], 8192
        $region52: #{tpu_custom_call.1} parent=43 // pred_fallthru
          _
        %s314 = sand.u32 %s22, 1
        %s315 = scalar_lea.sflag [#allocation6], %s314
        %s316 = sand.u32 %s89, 1
        %s317 = smul.addr %s316, 64
        %s318 = scalar_lea.vmem [#allocation10], %s317
        // Predicated region
        $region53: #{tpu_custom_call.1} parent=43 // pred_check
          %p319 = pneg %p102
        $region54: #{tpu_custom_call.1} parent=43 // pred_check_branch
          %321 = sbr.rel (%p319) target = $region56
        $region55: #{tpu_custom_call.1} parent=43 // pred_region
          %322 = dma.done %s315, 1024
        $region56: #{tpu_custom_call.1} parent=43 // pred_fallthru
          _
        %s323 = sand.u32 %s22, 1
        %s324 = scalar_lea.sflag [#allocation6], %s323
        %s325 = sand.u32 %s42, 1
        %s326 = smul.addr %s325, 512
        %s327 = scalar_lea.vmem [#allocation5], %s326
        %p328 = pneg %p55
        %p329 = pneg %p52
        %p330 = pneg %p76
        %p331 = pneg %p73
        %s332 = sand.u32 %s22, 1
        %s333 = scalar_lea.sflag [#allocation6], %s332
        %s334 = sand.u32 %s89, 1
        %s335 = smul.addr %s334, 64
        %s336 = scalar_lea.vmem [#allocation10], %s335
        %p337 = pneg %p102
        %p338 = pneg %p99
        %p339 = scmp.lt.s32.totalorder %s26, 2
        %s340 = scalar_select %p339, %s26, 2
        %s341 = scalar_lea.vmem %s3, %s340
        %p342 = pneg %p128
        %p343 = pneg %p125
        %p344 = scmp.lt.s32.totalorder %s26, 2
        %s345 = scalar_select %p344, %s26, 2
        %s346 = scalar_lea.vmem %s4, %s345
        %p347 = pneg %p154
        %p348 = pneg %p151
        %p349 = scmp.lt.s32.totalorder %s26, 2
        %s350 = scalar_select %p349, %s26, 2
        %s351 = scalar_lea.vmem %s5, %s350
        %p352 = pneg %p180
        %p353 = pneg %p177
        %p354 = pneg %p201
        %p355 = pneg %p198
        %s356 = smul.u32 32, %s27
        %p357 = scmp.lt.s32.totalorder %s26, 2
        %s358 = scalar_select %p357, %s26, 2
        %s359 = scalar_lea.vmem %s3, %s358
        %p360 = scmp.lt.s32.totalorder %s26, 2
        %s361 = scalar_select %p360, %s26, 2
        %s362 = scalar_lea.vmem %s4, %s361
        %p363 = scmp.lt.s32.totalorder %s26, 2
        %s364 = scalar_select %p363, %s26, 2
        %s365 = scalar_lea.vmem %s5, %s364
        %p367 = scmp.eq.s32.totalorder %s26, 2
        %p368 = scmp.eq.s32.totalorder %s27, 1
        %p369 = scmp.eq.s32.totalorder %s26, 0
        %p370 = scmp.eq.s32.totalorder %s27, 0
        %p371 = pnand %p369, %p370
        %p372 = pneg %p371
        // Predicated region
        $region57: #{tpu_custom_call.1} parent=43 // pred_check
          _
        $region58: #{tpu_custom_call.1} parent=43 // pred_check_branch
          %374 = sbr.rel (%p371) target = $region60
        $region59: #{tpu_custom_call.1} parent=43 // pred_region
          %v375 = vld [vmem:[#allocation8] sm:$0xff]
          %v376 = vld [vmem:[#allocation8 + $0x8] sm:$0xff]
          %v377 = vld [vmem:[#allocation8 + $0x10] sm:$0xff]
          %v378 = vld [vmem:[#allocation8 + $0x18] sm:$0xff]
          %v379 = vld [vmem:[#allocation8 + $0x20] sm:$0xff]
          %v380 = vld [vmem:[#allocation8 + $0x28] sm:$0xff]
          %v381 = vld [vmem:[#allocation8 + $0x30] sm:$0xff]
          %v382 = vld [vmem:[#allocation8 + $0x38] sm:$0xff]
          %v383 = vld [vmem:[#allocation8 + $0x40] sm:$0xff]
          %v384 = vld [vmem:[#allocation8 + $0x48] sm:$0xff]
          %v385 = vld [vmem:[#allocation8 + $0x50] sm:$0xff]
          %v386 = vld [vmem:[#allocation8 + $0x58] sm:$0xff]
          %v387 = vld [vmem:[#allocation8 + $0x60] sm:$0xff]
          %v388 = vld [vmem:[#allocation8 + $0x68] sm:$0xff]
          %v389 = vld [vmem:[#allocation8 + $0x70] sm:$0xff]
          %v390 = vld [vmem:[#allocation8 + $0x78] sm:$0xff]
          %v391 = vld [vmem:[#allocation8 + $0x80] sm:$0xff]
          %v392 = vld [vmem:[#allocation8 + $0x88] sm:$0xff]
          %v393 = vld [vmem:[#allocation8 + $0x90] sm:$0xff]
          %v394 = vld [vmem:[#allocation8 + $0x98] sm:$0xff]
          %v395 = vld [vmem:[#allocation8 + $0xa0] sm:$0xff]
          %v396 = vld [vmem:[#allocation8 + $0xa8] sm:$0xff]
          %v397 = vld [vmem:[#allocation8 + $0xb0] sm:$0xff]
          %v398 = vld [vmem:[#allocation8 + $0xb8] sm:$0xff]
          %v399 = vld [vmem:[#allocation8 + $0xc0] sm:$0xff]
          %v400 = vld [vmem:[#allocation8 + $0xc8] sm:$0xff]
          %v401 = vld [vmem:[#allocation8 + $0xd0] sm:$0xff]
          %v402 = vld [vmem:[#allocation8 + $0xd8] sm:$0xff]
          %v403 = vld [vmem:[#allocation8 + $0xe0] sm:$0xff]
          %v404 = vld [vmem:[#allocation8 + $0xe8] sm:$0xff]
          %v405 = vld [vmem:[#allocation8 + $0xf0] sm:$0xff]
          %v406 = vld [vmem:[#allocation8 + $0xf8] sm:$0xff]
          %v407 = vld [vmem:[#allocation8 + $0x100] sm:$0xff]
          %v408 = vld [vmem:[#allocation8 + $0x108] sm:$0xff]
          %v409 = vld [vmem:[#allocation8 + $0x110] sm:$0xff]
          %v410 = vld [vmem:[#allocation8 + $0x118] sm:$0xff]
          %v411 = vld [vmem:[#allocation8 + $0x120] sm:$0xff]
          %v412 = vld [vmem:[#allocation8 + $0x128] sm:$0xff]
          %v413 = vld [vmem:[#allocation8 + $0x130] sm:$0xff]
          %v414 = vld [vmem:[#allocation8 + $0x138] sm:$0xff]
          %v415 = vld [vmem:[#allocation8 + $0x140] sm:$0xff]
          %v416 = vld [vmem:[#allocation8 + $0x148] sm:$0xff]
          %v417 = vld [vmem:[#allocation8 + $0x150] sm:$0xff]
          %v418 = vld [vmem:[#allocation8 + $0x158] sm:$0xff]
          %v419 = vld [vmem:[#allocation8 + $0x160] sm:$0xff]
          %v420 = vld [vmem:[#allocation8 + $0x168] sm:$0xff]
          %v421 = vld [vmem:[#allocation8 + $0x170] sm:$0xff]
          %v422 = vld [vmem:[#allocation8 + $0x178] sm:$0xff]
          %v423 = vld [vmem:[#allocation8 + $0x180] sm:$0xff]
          %v424 = vld [vmem:[#allocation8 + $0x188] sm:$0xff]
          %v425 = vld [vmem:[#allocation8 + $0x190] sm:$0xff]
          %v426 = vld [vmem:[#allocation8 + $0x198] sm:$0xff]
          %v427 = vld [vmem:[#allocation8 + $0x1a0] sm:$0xff]
          %v428 = vld [vmem:[#allocation8 + $0x1a8] sm:$0xff]
          %v429 = vld [vmem:[#allocation8 + $0x1b0] sm:$0xff]
          %v430 = vld [vmem:[#allocation8 + $0x1b8] sm:$0xff]
          %v431 = vld [vmem:[#allocation8 + $0x1c0] sm:$0xff]
          %v432 = vld [vmem:[#allocation8 + $0x1c8] sm:$0xff]
          %v433 = vld [vmem:[#allocation8 + $0x1d0] sm:$0xff]
          %v434 = vld [vmem:[#allocation8 + $0x1d8] sm:$0xff]
          %v435 = vld [vmem:[#allocation8 + $0x1e0] sm:$0xff]
          %v436 = vld [vmem:[#allocation8 + $0x1e8] sm:$0xff]
          %v437 = vld [vmem:[#allocation8 + $0x1f0] sm:$0xff]
          %v438 = vld [vmem:[#allocation8 + $0x1f8] sm:$0xff]
          %439 = vst [vmem:[#allocation2] sm:$0xff] %v375
          %440 = vst [vmem:[#allocation2 + $0x8] sm:$0xff] %v376
          %441 = vst [vmem:[#allocation2 + $0x10] sm:$0xff] %v377
          %442 = vst [vmem:[#allocation2 + $0x18] sm:$0xff] %v378
          %443 = vst [vmem:[#allocation2 + $0x20] sm:$0xff] %v379
          %444 = vst [vmem:[#allocation2 + $0x28] sm:$0xff] %v380
          %445 = vst [vmem:[#allocation2 + $0x30] sm:$0xff] %v381
          %446 = vst [vmem:[#allocation2 + $0x38] sm:$0xff] %v382
          %447 = vst [vmem:[#allocation2 + $0x40] sm:$0xff] %v383
          %448 = vst [vmem:[#allocation2 + $0x48] sm:$0xff] %v384
          %449 = vst [vmem:[#allocation2 + $0x50] sm:$0xff] %v385
          %450 = vst [vmem:[#allocation2 + $0x58] sm:$0xff] %v386
          %451 = vst [vmem:[#allocation2 + $0x60] sm:$0xff] %v387
          %452 = vst [vmem:[#allocation2 + $0x68] sm:$0xff] %v388
          %453 = vst [vmem:[#allocation2 + $0x70] sm:$0xff] %v389
          %454 = vst [vmem:[#allocation2 + $0x78] sm:$0xff] %v390
          %455 = vst [vmem:[#allocation2 + $0x80] sm:$0xff] %v391
          %456 = vst [vmem:[#allocation2 + $0x88] sm:$0xff] %v392
          %457 = vst [vmem:[#allocation2 + $0x90] sm:$0xff] %v393
          %458 = vst [vmem:[#allocation2 + $0x98] sm:$0xff] %v394
          %459 = vst [vmem:[#allocation2 + $0xa0] sm:$0xff] %v395
          %460 = vst [vmem:[#allocation2 + $0xa8] sm:$0xff] %v396
          %461 = vst [vmem:[#allocation2 + $0xb0] sm:$0xff] %v397
          %462 = vst [vmem:[#allocation2 + $0xb8] sm:$0xff] %v398
          %463 = vst [vmem:[#allocation2 + $0xc0] sm:$0xff] %v399
          %464 = vst [vmem:[#allocation2 + $0xc8] sm:$0xff] %v400
          %465 = vst [vmem:[#allocation2 + $0xd0] sm:$0xff] %v401
          %466 = vst [vmem:[#allocation2 + $0xd8] sm:$0xff] %v402
          %467 = vst [vmem:[#allocation2 + $0xe0] sm:$0xff] %v403
          %468 = vst [vmem:[#allocation2 + $0xe8] sm:$0xff] %v404
          %469 = vst [vmem:[#allocation2 + $0xf0] sm:$0xff] %v405
          %470 = vst [vmem:[#allocation2 + $0xf8] sm:$0xff] %v406
          %471 = vst [vmem:[#allocation2 + $0x100] sm:$0xff] %v407
          %472 = vst [vmem:[#allocation2 + $0x108] sm:$0xff] %v408
          %473 = vst [vmem:[#allocation2 + $0x110] sm:$0xff] %v409
          %474 = vst [vmem:[#allocation2 + $0x118] sm:$0xff] %v410
          %475 = vst [vmem:[#allocation2 + $0x120] sm:$0xff] %v411
          %476 = vst [vmem:[#allocation2 + $0x128] sm:$0xff] %v412
          %477 = vst [vmem:[#allocation2 + $0x130] sm:$0xff] %v413
          %478 = vst [vmem:[#allocation2 + $0x138] sm:$0xff] %v414
          %479 = vst [vmem:[#allocation2 + $0x140] sm:$0xff] %v415
          %480 = vst [vmem:[#allocation2 + $0x148] sm:$0xff] %v416
          %481 = vst [vmem:[#allocation2 + $0x150] sm:$0xff] %v417
          %482 = vst [vmem:[#allocation2 + $0x158] sm:$0xff] %v418
          %483 = vst [vmem:[#allocation2 + $0x160] sm:$0xff] %v419
          %484 = vst [vmem:[#allocation2 + $0x168] sm:$0xff] %v420
          %485 = vst [vmem:[#allocation2 + $0x170] sm:$0xff] %v421
          %486 = vst [vmem:[#allocation2 + $0x178] sm:$0xff] %v422
          %487 = vst [vmem:[#allocation2 + $0x180] sm:$0xff] %v423
          %488 = vst [vmem:[#allocation2 + $0x188] sm:$0xff] %v424
          %489 = vst [vmem:[#allocation2 + $0x190] sm:$0xff] %v425
          %490 = vst [vmem:[#allocation2 + $0x198] sm:$0xff] %v426
          %491 = vst [vmem:[#allocation2 + $0x1a0] sm:$0xff] %v427
          %492 = vst [vmem:[#allocation2 + $0x1a8] sm:$0xff] %v428
          %493 = vst [vmem:[#allocation2 + $0x1b0] sm:$0xff] %v429
          %494 = vst [vmem:[#allocation2 + $0x1b8] sm:$0xff] %v430
          %495 = vst [vmem:[#allocation2 + $0x1c0] sm:$0xff] %v431
          %496 = vst [vmem:[#allocation2 + $0x1c8] sm:$0xff] %v432
          %497 = vst [vmem:[#allocation2 + $0x1d0] sm:$0xff] %v433
          %498 = vst [vmem:[#allocation2 + $0x1d8] sm:$0xff] %v434
          %499 = vst [vmem:[#allocation2 + $0x1e0] sm:$0xff] %v435
          %500 = vst [vmem:[#allocation2 + $0x1e8] sm:$0xff] %v436
          %501 = vst [vmem:[#allocation2 + $0x1f0] sm:$0xff] %v437
          %502 = vst [vmem:[#allocation2 + $0x1f8] sm:$0xff] %v438
        $region60: #{tpu_custom_call.1} parent=43 // pred_fallthru
          _
        // Predicated region
        $region61: #{tpu_custom_call.1} parent=43 // pred_check
          %p503 = pneg %p370
        $region62: #{tpu_custom_call.1} parent=43 // pred_check_branch
          %505 = sbr.rel (%p503) target = $region64
        $region63: #{tpu_custom_call.1} parent=43 // pred_region
          %v506 = vld [vmem:[#allocation2] sm:$0xff]
          %v507 = vld [vmem:[#allocation2 + $0x8] sm:$0xff]
          %v508 = vld [vmem:[#allocation2 + $0x10] sm:$0xff]
          %v509 = vld [vmem:[#allocation2 + $0x18] sm:$0xff]
          %v510 = vld [vmem:[#allocation2 + $0x20] sm:$0xff]
          %v511 = vld [vmem:[#allocation2 + $0x28] sm:$0xff]
          %v512 = vld [vmem:[#allocation2 + $0x30] sm:$0xff]
          %v513 = vld [vmem:[#allocation2 + $0x38] sm:$0xff]
          %v514 = vld [vmem:[#allocation2 + $0x40] sm:$0xff]
          %v515 = vld [vmem:[#allocation2 + $0x48] sm:$0xff]
          %v516 = vld [vmem:[#allocation2 + $0x50] sm:$0xff]
          %v517 = vld [vmem:[#allocation2 + $0x58] sm:$0xff]
          %v518 = vld [vmem:[#allocation2 + $0x60] sm:$0xff]
          %v519 = vld [vmem:[#allocation2 + $0x68] sm:$0xff]
          %v520 = vld [vmem:[#allocation2 + $0x70] sm:$0xff]
          %v521 = vld [vmem:[#allocation2 + $0x78] sm:$0xff]
          %v522 = vld [vmem:[#allocation2 + $0x80] sm:$0xff]
          %v523 = vld [vmem:[#allocation2 + $0x88] sm:$0xff]
          %v524 = vld [vmem:[#allocation2 + $0x90] sm:$0xff]
          %v525 = vld [vmem:[#allocation2 + $0x98] sm:$0xff]
          %v526 = vld [vmem:[#allocation2 + $0xa0] sm:$0xff]
          %v527 = vld [vmem:[#allocation2 + $0xa8] sm:$0xff]
          %v528 = vld [vmem:[#allocation2 + $0xb0] sm:$0xff]
          %v529 = vld [vmem:[#allocation2 + $0xb8] sm:$0xff]
          %v530 = vld [vmem:[#allocation2 + $0xc0] sm:$0xff]
          %v531 = vld [vmem:[#allocation2 + $0xc8] sm:$0xff]
          %v532 = vld [vmem:[#allocation2 + $0xd0] sm:$0xff]
          %v533 = vld [vmem:[#allocation2 + $0xd8] sm:$0xff]
          %v534 = vld [vmem:[#allocation2 + $0xe0] sm:$0xff]
          %v535 = vld [vmem:[#allocation2 + $0xe8] sm:$0xff]
          %v536 = vld [vmem:[#allocation2 + $0xf0] sm:$0xff]
          %v537 = vld [vmem:[#allocation2 + $0xf8] sm:$0xff]
          %v538 = vld [vmem:[#allocation2 + $0x100] sm:$0xff]
          %v539 = vld [vmem:[#allocation2 + $0x108] sm:$0xff]
          %v540 = vld [vmem:[#allocation2 + $0x110] sm:$0xff]
          %v541 = vld [vmem:[#allocation2 + $0x118] sm:$0xff]
          %v542 = vld [vmem:[#allocation2 + $0x120] sm:$0xff]
          %v543 = vld [vmem:[#allocation2 + $0x128] sm:$0xff]
          %v544 = vld [vmem:[#allocation2 + $0x130] sm:$0xff]
          %v545 = vld [vmem:[#allocation2 + $0x138] sm:$0xff]
          %v546 = vld [vmem:[#allocation2 + $0x140] sm:$0xff]
          %v547 = vld [vmem:[#allocation2 + $0x148] sm:$0xff]
          %v548 = vld [vmem:[#allocation2 + $0x150] sm:$0xff]
          %v549 = vld [vmem:[#allocation2 + $0x158] sm:$0xff]
          %v550 = vld [vmem:[#allocation2 + $0x160] sm:$0xff]
          %v551 = vld [vmem:[#allocation2 + $0x168] sm:$0xff]
          %v552 = vld [vmem:[#allocation2 + $0x170] sm:$0xff]
          %v553 = vld [vmem:[#allocation2 + $0x178] sm:$0xff]
          %v554 = vld [vmem:[#allocation2 + $0x180] sm:$0xff]
          %v555 = vld [vmem:[#allocation2 + $0x188] sm:$0xff]
          %v556 = vld [vmem:[#allocation2 + $0x190] sm:$0xff]
          %v557 = vld [vmem:[#allocation2 + $0x198] sm:$0xff]
          %v558 = vld [vmem:[#allocation2 + $0x1a0] sm:$0xff]
          %v559 = vld [vmem:[#allocation2 + $0x1a8] sm:$0xff]
          %v560 = vld [vmem:[#allocation2 + $0x1b0] sm:$0xff]
          %v561 = vld [vmem:[#allocation2 + $0x1b8] sm:$0xff]
          %v562 = vld [vmem:[#allocation2 + $0x1c0] sm:$0xff]
          %v563 = vld [vmem:[#allocation2 + $0x1c8] sm:$0xff]
          %v564 = vld [vmem:[#allocation2 + $0x1d0] sm:$0xff]
          %v565 = vld [vmem:[#allocation2 + $0x1d8] sm:$0xff]
          %v566 = vld [vmem:[#allocation2 + $0x1e0] sm:$0xff]
          %v567 = vld [vmem:[#allocation2 + $0x1e8] sm:$0xff]
          %v568 = vld [vmem:[#allocation2 + $0x1f0] sm:$0xff]
          %v569 = vld [vmem:[#allocation2 + $0x1f8] sm:$0xff]
          %v570 = vpack.c.bf16 %v507, %v506
          %v571 = vpack.c.bf16 %v509, %v508
          %v572 = vpack.c.bf16 %v511, %v510
          %v573 = vpack.c.bf16 %v513, %v512
          %v574 = vpack.c.bf16 %v515, %v514
          %v575 = vpack.c.bf16 %v517, %v516
          %v576 = vpack.c.bf16 %v519, %v518
          %v577 = vpack.c.bf16 %v521, %v520
          %v578 = vpack.c.bf16 %v523, %v522
          %v579 = vpack.c.bf16 %v525, %v524
          %v580 = vpack.c.bf16 %v527, %v526
          %v581 = vpack.c.bf16 %v529, %v528
          %v582 = vpack.c.bf16 %v531, %v530
          %v583 = vpack.c.bf16 %v533, %v532
          %v584 = vpack.c.bf16 %v535, %v534
          %v585 = vpack.c.bf16 %v537, %v536
          %v586 = vpack.c.bf16 %v539, %v538
          %v587 = vpack.c.bf16 %v541, %v540
          %v588 = vpack.c.bf16 %v543, %v542
          %v589 = vpack.c.bf16 %v545, %v544
          %v590 = vpack.c.bf16 %v547, %v546
          %v591 = vpack.c.bf16 %v549, %v548
          %v592 = vpack.c.bf16 %v551, %v550
          %v593 = vpack.c.bf16 %v553, %v552
          %v594 = vpack.c.bf16 %v555, %v554
          %v595 = vpack.c.bf16 %v557, %v556
          %v596 = vpack.c.bf16 %v559, %v558
          %v597 = vpack.c.bf16 %v561, %v560
          %v598 = vpack.c.bf16 %v563, %v562
          %v599 = vpack.c.bf16 %v565, %v564
          %v600 = vpack.c.bf16 %v567, %v566
          %v601 = vpack.c.bf16 %v569, %v568
          %v602 = vld [vmem:[%s318] sm:$0xf]
          %v603 = vld [vmem:[%s318 + $0x4] sm:$0xf]
          %v604 = vld [vmem:[%s318 + $0x8] sm:$0xf]
          %v605 = vld [vmem:[%s318 + $0xc] sm:$0xf]
          %v606 = vld [vmem:[%s318 + $0x10] sm:$0xf]
          %v607 = vld [vmem:[%s318 + $0x14] sm:$0xf]
          %v608 = vld [vmem:[%s318 + $0x18] sm:$0xf]
          %v609 = vld [vmem:[%s318 + $0x1c] sm:$0xf]
          %v610 = vld [vmem:[%s318 + $0x20] sm:$0xf]
          %v611 = vld [vmem:[%s318 + $0x24] sm:$0xf]
          %v612 = vld [vmem:[%s318 + $0x28] sm:$0xf]
          %v613 = vld [vmem:[%s318 + $0x2c] sm:$0xf]
          %v614 = vld [vmem:[%s318 + $0x30] sm:$0xf]
          %v615 = vld [vmem:[%s318 + $0x34] sm:$0xf]
          %v616 = vld [vmem:[%s318 + $0x38] sm:$0xf]
          %v617 = vld [vmem:[%s318 + $0x3c] sm:$0xf]
          %v634 = vunpack.c.l.b16 %v602
          %v635 = vunpack.c.l.b16 %v603
          %v636 = vunpack.c.l.b16 %v604
          %v637 = vunpack.c.l.b16 %v605
          %v638 = vunpack.c.l.b16 %v606
          %v639 = vunpack.c.l.b16 %v607
          %v640 = vunpack.c.l.b16 %v608
          %v641 = vunpack.c.l.b16 %v609
          %v642 = vunpack.c.l.b16 %v610
          %v643 = vunpack.c.l.b16 %v611
          %v644 = vunpack.c.l.b16 %v612
          %v645 = vunpack.c.l.b16 %v613
          %v646 = vunpack.c.l.b16 %v614
          %v647 = vunpack.c.l.b16 %v615
          %v648 = vunpack.c.l.b16 %v616
          %v649 = vunpack.c.l.b16 %v617
          %v650 = vpack.c.b16 %v635, %v634
          %v651 = vpack.c.b16 %v637, %v636
          %v652 = vpack.c.b16 %v639, %v638
          %v653 = vpack.c.b16 %v641, %v640
          %v654 = vpack.c.b16 %v643, %v642
          %v655 = vpack.c.b16 %v645, %v644
          %v656 = vpack.c.b16 %v647, %v646
          %v657 = vpack.c.b16 %v649, %v648
          %666 = vmatprep.subr.bf16.mxu0 0
          %667 = vmatpush1.bf16.msra.mxu0 %v657
          %668 = vmatprep.subr.bf16.mxu0 0
          %669 = vmatpush1.bf16.msra.mxu0 %v656
          %670 = vmatprep.subr.bf16.mxu0 0
          %671 = vmatpush1.bf16.msra.mxu0 %v655
          %672 = vmatprep.subr.bf16.mxu0 0
          %673 = vmatpush1.bf16.msra.mxu0 %v654
          %674 = vmatprep.subr.bf16.mxu0 0
          %675 = vmatpush1.bf16.msra.mxu0 %v653
          %676 = vmatprep.subr.bf16.mxu0 0
          %677 = vmatpush1.bf16.msra.mxu0 %v652
          %678 = vmatprep.subr.bf16.mxu0 0
          %679 = vmatpush1.bf16.msra.mxu0 %v651
          %680 = vmatprep.subr.bf16.mxu0 0
          %681 = vmatpush1.bf16.msra.mxu0 %v650
          %682 = vmatprep.subr.bf16.mxu0 0
          %683 = vmatpush2.bf16.msra.mxu0 0
          %684 = vmatprep.subr.bf16.mxu0 0
          %685 = vmatpush2.bf16.msra.mxu0 0
          %686 = vmatprep.subr.bf16.mxu0 0
          %687 = vmatpush2.bf16.msra.mxu0 0
          %688 = vmatprep.subr.bf16.mxu0 0
          %689 = vmatpush2.bf16.msra.mxu0 0
          %690 = vmatprep.subr.bf16.mxu0 0
          %691 = vmatpush2.bf16.msra.mxu0 0
          %692 = vmatprep.subr.bf16.mxu0 0
          %693 = vmatpush2.bf16.msra.mxu0 0
          %694 = vmatprep.subr.bf16.mxu0 0
          %695 = vmatpush2.bf16.msra.mxu0 0
          %696 = vmatprep.subr.bf16.mxu0 0
          %697 = vmatpush2.bf16.msra.mxu0 0
          %698 = vmatprep.mubr.bf16.mxu0 0
          %699 = vmatmul.mubr.bf16.gmra.mxu0 %v570
          %v700 = vpop.f32.mrf.mxu0
          %v701 = vadd.f32 0.0, %v700
          %v702 = vpop.f32.mrf.mxu0
          %v703 = vpop.f32.mrf.mxu0
          %v704 = vadd.f32 0.0, %v703
          %v705 = vpop.f32.mrf.mxu0
          %706 = vmatprep.mubr.bf16.mxu0 0
          %707 = vmatmul.mubr.bf16.gmra.mxu0 %v571
          %v708 = vpop.f32.mrf.mxu0
          %v709 = vadd.f32 0.0, %v708
          %v710 = vpop.f32.mrf.mxu0
          %v711 = vpop.f32.mrf.mxu0
          %v712 = vadd.f32 0.0, %v711
          %v713 = vpop.f32.mrf.mxu0
          %714 = vmatprep.mubr.bf16.mxu0 0
          %715 = vmatmul.mubr.bf16.gmra.mxu0 %v572
          %v716 = vpop.f32.mrf.mxu0
          %v717 = vadd.f32 0.0, %v716
          %v718 = vpop.f32.mrf.mxu0
          %v719 = vpop.f32.mrf.mxu0
          %v720 = vadd.f32 0.0, %v719
          %v721 = vpop.f32.mrf.mxu0
          %722 = vmatprep.mubr.bf16.mxu0 0
          %723 = vmatmul.mubr.bf16.gmra.mxu0 %v573
          %v724 = vpop.f32.mrf.mxu0
          %v725 = vadd.f32 0.0, %v724
          %v726 = vpop.f32.mrf.mxu0
          %v727 = vpop.f32.mrf.mxu0
          %v728 = vadd.f32 0.0, %v727
          %v729 = vpop.f32.mrf.mxu0
          %730 = vmatprep.mubr.bf16.mxu0 0
          %731 = vmatmul.mubr.bf16.gmra.mxu0 %v574
          %v732 = vpop.f32.mrf.mxu0
          %v733 = vadd.f32 0.0, %v732
          %v734 = vpop.f32.mrf.mxu0
          %v735 = vpop.f32.mrf.mxu0
          %v736 = vadd.f32 0.0, %v735
          %v737 = vpop.f32.mrf.mxu0
          %738 = vmatprep.mubr.bf16.mxu0 0
          %739 = vmatmul.mubr.bf16.gmra.mxu0 %v575
          %v740 = vpop.f32.mrf.mxu0
          %v741 = vadd.f32 0.0, %v740
          %v742 = vpop.f32.mrf.mxu0
          %v743 = vpop.f32.mrf.mxu0
          %v744 = vadd.f32 0.0, %v743
          %v745 = vpop.f32.mrf.mxu0
          %746 = vmatprep.mubr.bf16.mxu0 0
          %747 = vmatmul.mubr.bf16.gmra.mxu0 %v576
          %v748 = vpop.f32.mrf.mxu0
          %v749 = vadd.f32 0.0, %v748
          %v750 = vpop.f32.mrf.mxu0
          %v751 = vpop.f32.mrf.mxu0
          %v752 = vadd.f32 0.0, %v751
          %v753 = vpop.f32.mrf.mxu0
          %754 = vmatprep.mubr.bf16.mxu0 0
          %755 = vmatmul.mubr.bf16.gmra.mxu0 %v577
          %v756 = vpop.f32.mrf.mxu0
          %v757 = vadd.f32 0.0, %v756
          %v758 = vpop.f32.mrf.mxu0
          %v759 = vpop.f32.mrf.mxu0
          %v760 = vadd.f32 0.0, %v759
          %v761 = vpop.f32.mrf.mxu0
          %762 = vmatprep.mubr.bf16.mxu0 0
          %763 = vmatmul.mubr.bf16.gmra.mxu0 %v578
          %v764 = vpop.f32.mrf.mxu0
          %v765 = vadd.f32 0.0, %v764
          %v766 = vpop.f32.mrf.mxu0
          %v767 = vpop.f32.mrf.mxu0
          %v768 = vadd.f32 0.0, %v767
          %v769 = vpop.f32.mrf.mxu0
          %770 = vmatprep.mubr.bf16.mxu0 0
          %771 = vmatmul.mubr.bf16.gmra.mxu0 %v579
          %v772 = vpop.f32.mrf.mxu0
          %v773 = vadd.f32 0.0, %v772
          %v774 = vpop.f32.mrf.mxu0
          %v775 = vpop.f32.mrf.mxu0
          %v776 = vadd.f32 0.0, %v775
          %v777 = vpop.f32.mrf.mxu0
          %778 = vmatprep.mubr.bf16.mxu0 0
          %779 = vmatmul.mubr.bf16.gmra.mxu0 %v580
          %v780 = vpop.f32.mrf.mxu0
          %v781 = vadd.f32 0.0, %v780
          %v782 = vpop.f32.mrf.mxu0
          %v783 = vpop.f32.mrf.mxu0
          %v784 = vadd.f32 0.0, %v783
          %v785 = vpop.f32.mrf.mxu0
          %786 = vmatprep.mubr.bf16.mxu0 0
          %787 = vmatmul.mubr.bf16.gmra.mxu0 %v581
          %v788 = vpop.f32.mrf.mxu0
          %v789 = vadd.f32 0.0, %v788
          %v790 = vpop.f32.mrf.mxu0
          %v791 = vpop.f32.mrf.mxu0
          %v792 = vadd.f32 0.0, %v791
          %v793 = vpop.f32.mrf.mxu0
          %794 = vmatprep.mubr.bf16.mxu0 0
          %795 = vmatmul.mubr.bf16.gmra.mxu0 %v582
          %v796 = vpop.f32.mrf.mxu0
          %v797 = vadd.f32 0.0, %v796
          %v798 = vpop.f32.mrf.mxu0
          %v799 = vpop.f32.mrf.mxu0
          %v800 = vadd.f32 0.0, %v799
          %v801 = vpop.f32.mrf.mxu0
          %802 = vmatprep.mubr.bf16.mxu0 0
          %803 = vmatmul.mubr.bf16.gmra.mxu0 %v583
          %v804 = vpop.f32.mrf.mxu0
          %v805 = vadd.f32 0.0, %v804
          %v806 = vpop.f32.mrf.mxu0
          %v807 = vpop.f32.mrf.mxu0
          %v808 = vadd.f32 0.0, %v807
          %v809 = vpop.f32.mrf.mxu0
          %810 = vmatprep.mubr.bf16.mxu0 0
          %811 = vmatmul.mubr.bf16.gmra.mxu0 %v584
          %v812 = vpop.f32.mrf.mxu0
          %v813 = vadd.f32 0.0, %v812
          %v814 = vpop.f32.mrf.mxu0
          %v815 = vpop.f32.mrf.mxu0
          %v816 = vadd.f32 0.0, %v815
          %v817 = vpop.f32.mrf.mxu0
          %818 = vmatprep.mubr.bf16.mxu0 0
          %819 = vmatmul.mubr.bf16.gmra.mxu0 %v585
          %v820 = vpop.f32.mrf.mxu0
          %v821 = vadd.f32 0.0, %v820
          %v822 = vpop.f32.mrf.mxu0
          %v823 = vpop.f32.mrf.mxu0
          %v824 = vadd.f32 0.0, %v823
          %v825 = vpop.f32.mrf.mxu0
          %826 = vmatprep.mubr.bf16.mxu0 0
          %827 = vmatmul.mubr.bf16.gmra.mxu0 %v586
          %v828 = vpop.f32.mrf.mxu0
          %v829 = vadd.f32 0.0, %v828
          %v830 = vpop.f32.mrf.mxu0
          %v831 = vpop.f32.mrf.mxu0
          %v832 = vadd.f32 0.0, %v831
          %v833 = vpop.f32.mrf.mxu0
          %834 = vmatprep.mubr.bf16.mxu0 0
          %835 = vmatmul.mubr.bf16.gmra.mxu0 %v587
          %v836 = vpop.f32.mrf.mxu0
          %v837 = vadd.f32 0.0, %v836
          %v838 = vpop.f32.mrf.mxu0
          %v839 = vpop.f32.mrf.mxu0
          %v840 = vadd.f32 0.0, %v839
          %v841 = vpop.f32.mrf.mxu0
          %842 = vmatprep.mubr.bf16.mxu0 0
          %843 = vmatmul.mubr.bf16.gmra.mxu0 %v588
          %v844 = vpop.f32.mrf.mxu0
          %v845 = vadd.f32 0.0, %v844
          %v846 = vpop.f32.mrf.mxu0
          %v847 = vpop.f32.mrf.mxu0
          %v848 = vadd.f32 0.0, %v847
          %v849 = vpop.f32.mrf.mxu0
          %850 = vmatprep.mubr.bf16.mxu0 0
          %851 = vmatmul.mubr.bf16.gmra.mxu0 %v589
          %v852 = vpop.f32.mrf.mxu0
          %v853 = vadd.f32 0.0, %v852
          %v854 = vpop.f32.mrf.mxu0
          %v855 = vpop.f32.mrf.mxu0
          %v856 = vadd.f32 0.0, %v855
          %v857 = vpop.f32.mrf.mxu0
          %858 = vmatprep.mubr.bf16.mxu0 0
          %859 = vmatmul.mubr.bf16.gmra.mxu0 %v590
          %v860 = vpop.f32.mrf.mxu0
          %v861 = vadd.f32 0.0, %v860
          %v862 = vpop.f32.mrf.mxu0
          %v863 = vpop.f32.mrf.mxu0
          %v864 = vadd.f32 0.0, %v863
          %v865 = vpop.f32.mrf.mxu0
          %866 = vmatprep.mubr.bf16.mxu0 0
          %867 = vmatmul.mubr.bf16.gmra.mxu0 %v591
          %v868 = vpop.f32.mrf.mxu0
          %v869 = vadd.f32 0.0, %v868
          %v870 = vpop.f32.mrf.mxu0
          %v871 = vpop.f32.mrf.mxu0
          %v872 = vadd.f32 0.0, %v871
          %v873 = vpop.f32.mrf.mxu0
          %874 = vmatprep.mubr.bf16.mxu0 0
          %875 = vmatmul.mubr.bf16.gmra.mxu0 %v592
          %v876 = vpop.f32.mrf.mxu0
          %v877 = vadd.f32 0.0, %v876
          %v878 = vpop.f32.mrf.mxu0
          %v879 = vpop.f32.mrf.mxu0
          %v880 = vadd.f32 0.0, %v879
          %v881 = vpop.f32.mrf.mxu0
          %882 = vmatprep.mubr.bf16.mxu0 0
          %883 = vmatmul.mubr.bf16.gmra.mxu0 %v593
          %v884 = vpop.f32.mrf.mxu0
          %v885 = vadd.f32 0.0, %v884
          %v886 = vpop.f32.mrf.mxu0
          %v887 = vpop.f32.mrf.mxu0
          %v888 = vadd.f32 0.0, %v887
          %v889 = vpop.f32.mrf.mxu0
          %890 = vmatprep.mubr.bf16.mxu0 0
          %891 = vmatmul.mubr.bf16.gmra.mxu0 %v594
          %v892 = vpop.f32.mrf.mxu0
          %v893 = vadd.f32 0.0, %v892
          %v894 = vpop.f32.mrf.mxu0
          %v895 = vpop.f32.mrf.mxu0
          %v896 = vadd.f32 0.0, %v895
          %v897 = vpop.f32.mrf.mxu0
          %898 = vmatprep.mubr.bf16.mxu0 0
          %899 = vmatmul.mubr.bf16.gmra.mxu0 %v595
          %v900 = vpop.f32.mrf.mxu0
          %v901 = vadd.f32 0.0, %v900
          %v902 = vpop.f32.mrf.mxu0
          %v903 = vpop.f32.mrf.mxu0
          %v904 = vadd.f32 0.0, %v903
          %v905 = vpop.f32.mrf.mxu0
          %906 = vmatprep.mubr.bf16.mxu0 0
          %907 = vmatmul.mubr.bf16.gmra.mxu0 %v596
          %v908 = vpop.f32.mrf.mxu0
          %v909 = vadd.f32 0.0, %v908
          %v910 = vpop.f32.mrf.mxu0
          %v911 = vpop.f32.mrf.mxu0
          %v912 = vadd.f32 0.0, %v911
          %v913 = vpop.f32.mrf.mxu0
          %914 = vmatprep.mubr.bf16.mxu0 0
          %915 = vmatmul.mubr.bf16.gmra.mxu0 %v597
          %v916 = vpop.f32.mrf.mxu0
          %v917 = vadd.f32 0.0, %v916
          %v918 = vpop.f32.mrf.mxu0
          %v919 = vpop.f32.mrf.mxu0
          %v920 = vadd.f32 0.0, %v919
          %v921 = vpop.f32.mrf.mxu0
          %922 = vmatprep.mubr.bf16.mxu0 0
          %923 = vmatmul.mubr.bf16.gmra.mxu0 %v598
          %v924 = vpop.f32.mrf.mxu0
          %v925 = vadd.f32 0.0, %v924
          %v926 = vpop.f32.mrf.mxu0
          %v927 = vpop.f32.mrf.mxu0
          %v928 = vadd.f32 0.0, %v927
          %v929 = vpop.f32.mrf.mxu0
          %930 = vmatprep.mubr.bf16.mxu0 0
          %931 = vmatmul.mubr.bf16.gmra.mxu0 %v599
          %v932 = vpop.f32.mrf.mxu0
          %v933 = vadd.f32 0.0, %v932
          %v934 = vpop.f32.mrf.mxu0
          %v935 = vpop.f32.mrf.mxu0
          %v936 = vadd.f32 0.0, %v935
          %v937 = vpop.f32.mrf.mxu0
          %938 = vmatprep.mubr.bf16.mxu0 0
          %939 = vmatmul.mubr.bf16.gmra.mxu0 %v600
          %v940 = vpop.f32.mrf.mxu0
          %v941 = vadd.f32 0.0, %v940
          %v942 = vpop.f32.mrf.mxu0
          %v943 = vpop.f32.mrf.mxu0
          %v944 = vadd.f32 0.0, %v943
          %v945 = vpop.f32.mrf.mxu0
          %946 = vmatprep.mubr.bf16.mxu0 0
          %947 = vmatmul.mubr.bf16.gmra.mxu0 %v601
          %v948 = vpop.f32.mrf.mxu0
          %v949 = vadd.f32 0.0, %v948
          %v950 = vpop.f32.mrf.mxu0
          %v951 = vpop.f32.mrf.mxu0
          %v952 = vadd.f32 0.0, %v951
          %v953 = vpop.f32.mrf.mxu0
          %954 = vdwg.mxu0
          %v955 = vpack.c.bf16 %v704, %v701
          %v956 = vpack.c.bf16 %v712, %v709
          %v957 = vpack.c.bf16 %v720, %v717
          %v958 = vpack.c.bf16 %v728, %v725
          %v959 = vpack.c.bf16 %v736, %v733
          %v960 = vpack.c.bf16 %v744, %v741
          %v961 = vpack.c.bf16 %v752, %v749
          %v962 = vpack.c.bf16 %v760, %v757
          %v963 = vpack.c.bf16 %v768, %v765
          %v964 = vpack.c.bf16 %v776, %v773
          %v965 = vpack.c.bf16 %v784, %v781
          %v966 = vpack.c.bf16 %v792, %v789
          %v967 = vpack.c.bf16 %v800, %v797
          %v968 = vpack.c.bf16 %v808, %v805
          %v969 = vpack.c.bf16 %v816, %v813
          %v970 = vpack.c.bf16 %v824, %v821
          %v971 = vpack.c.bf16 %v832, %v829
          %v972 = vpack.c.bf16 %v840, %v837
          %v973 = vpack.c.bf16 %v848, %v845
          %v974 = vpack.c.bf16 %v856, %v853
          %v975 = vpack.c.bf16 %v864, %v861
          %v976 = vpack.c.bf16 %v872, %v869
          %v977 = vpack.c.bf16 %v880, %v877
          %v978 = vpack.c.bf16 %v888, %v885
          %v979 = vpack.c.bf16 %v896, %v893
          %v980 = vpack.c.bf16 %v904, %v901
          %v981 = vpack.c.bf16 %v912, %v909
          %v982 = vpack.c.bf16 %v920, %v917
          %v983 = vpack.c.bf16 %v928, %v925
          %v984 = vpack.c.bf16 %v936, %v933
          %v985 = vpack.c.bf16 %v944, %v941
          %v986 = vpack.c.bf16 %v952, %v949
          %v1019 = vunpack.c.l.b16 %v955
          %v1020 = vunpack.c.h.b16 %v955
          %v1021 = vunpack.c.l.b16 %v956
          %v1022 = vunpack.c.h.b16 %v956
          %v1023 = vunpack.c.l.b16 %v957
          %v1024 = vunpack.c.h.b16 %v957
          %v1025 = vunpack.c.l.b16 %v958
          %v1026 = vunpack.c.h.b16 %v958
          %v1027 = vunpack.c.l.b16 %v959
          %v1028 = vunpack.c.h.b16 %v959
          %v1029 = vunpack.c.l.b16 %v960
          %v1030 = vunpack.c.h.b16 %v960
          %v1031 = vunpack.c.l.b16 %v961
          %v1032 = vunpack.c.h.b16 %v961
          %v1033 = vunpack.c.l.b16 %v962
          %v1034 = vunpack.c.h.b16 %v962
          %v1035 = vunpack.c.l.b16 %v963
          %v1036 = vunpack.c.h.b16 %v963
          %v1037 = vunpack.c.l.b16 %v964
          %v1038 = vunpack.c.h.b16 %v964
          %v1039 = vunpack.c.l.b16 %v965
          %v1040 = vunpack.c.h.b16 %v965
          %v1041 = vunpack.c.l.b16 %v966
          %v1042 = vunpack.c.h.b16 %v966
          %v1043 = vunpack.c.l.b16 %v967
          %v1044 = vunpack.c.h.b16 %v967
          %v1045 = vunpack.c.l.b16 %v968
          %v1046 = vunpack.c.h.b16 %v968
          %v1047 = vunpack.c.l.b16 %v969
          %v1048 = vunpack.c.h.b16 %v969
          %v1049 = vunpack.c.l.b16 %v970
          %v1050 = vunpack.c.h.b16 %v970
          %v1051 = vunpack.c.l.b16 %v971
          %v1052 = vunpack.c.h.b16 %v971
          %v1053 = vunpack.c.l.b16 %v972
          %v1054 = vunpack.c.h.b16 %v972
          %v1055 = vunpack.c.l.b16 %v973
          %v1056 = vunpack.c.h.b16 %v973
          %v1057 = vunpack.c.l.b16 %v974
          %v1058 = vunpack.c.h.b16 %v974
          %v1059 = vunpack.c.l.b16 %v975
          %v1060 = vunpack.c.h.b16 %v975
          %v1061 = vunpack.c.l.b16 %v976
          %v1062 = vunpack.c.h.b16 %v976
          %v1063 = vunpack.c.l.b16 %v977
          %v1064 = vunpack.c.h.b16 %v977
          %v1065 = vunpack.c.l.b16 %v978
          %v1066 = vunpack.c.h.b16 %v978
          %v1067 = vunpack.c.l.b16 %v979
          %v1068 = vunpack.c.h.b16 %v979
          %v1069 = vunpack.c.l.b16 %v980
          %v1070 = vunpack.c.h.b16 %v980
          %v1071 = vunpack.c.l.b16 %v981
          %v1072 = vunpack.c.h.b16 %v981
          %v1073 = vunpack.c.l.b16 %v982
          %v1074 = vunpack.c.h.b16 %v982
          %v1075 = vunpack.c.l.b16 %v983
          %v1076 = vunpack.c.h.b16 %v983
          %v1077 = vunpack.c.l.b16 %v984
          %v1078 = vunpack.c.h.b16 %v984
          %v1079 = vunpack.c.l.b16 %v985
          %v1080 = vunpack.c.h.b16 %v985
          %v1081 = vunpack.c.l.b16 %v986
          %v1082 = vunpack.c.h.b16 %v986
          %v1083 = vpack.c.b16 %v1019, %v1019
          %v1084 = vpack.c.b16 %v1020, %v1020
          %v1085 = vpack.c.b16 %v1021, %v1021
          %v1086 = vpack.c.b16 %v1022, %v1022
          %v1087 = vpack.c.b16 %v1023, %v1023
          %v1088 = vpack.c.b16 %v1024, %v1024
          %v1089 = vpack.c.b16 %v1025, %v1025
          %v1090 = vpack.c.b16 %v1026, %v1026
          %v1091 = vpack.c.b16 %v1027, %v1027
          %v1092 = vpack.c.b16 %v1028, %v1028
          %v1093 = vpack.c.b16 %v1029, %v1029
          %v1094 = vpack.c.b16 %v1030, %v1030
          %v1095 = vpack.c.b16 %v1031, %v1031
          %v1096 = vpack.c.b16 %v1032, %v1032
          %v1097 = vpack.c.b16 %v1033, %v1033
          %v1098 = vpack.c.b16 %v1034, %v1034
          %v1099 = vpack.c.b16 %v1035, %v1035
          %v1100 = vpack.c.b16 %v1036, %v1036
          %v1101 = vpack.c.b16 %v1037, %v1037
          %v1102 = vpack.c.b16 %v1038, %v1038
          %v1103 = vpack.c.b16 %v1039, %v1039
          %v1104 = vpack.c.b16 %v1040, %v1040
          %v1105 = vpack.c.b16 %v1041, %v1041
          %v1106 = vpack.c.b16 %v1042, %v1042
          %v1107 = vpack.c.b16 %v1043, %v1043
          %v1108 = vpack.c.b16 %v1044, %v1044
          %v1109 = vpack.c.b16 %v1045, %v1045
          %v1110 = vpack.c.b16 %v1046, %v1046
          %v1111 = vpack.c.b16 %v1047, %v1047
          %v1112 = vpack.c.b16 %v1048, %v1048
          %v1113 = vpack.c.b16 %v1049, %v1049
          %v1114 = vpack.c.b16 %v1050, %v1050
          %v1115 = vpack.c.b16 %v1051, %v1051
          %v1116 = vpack.c.b16 %v1052, %v1052
          %v1117 = vpack.c.b16 %v1053, %v1053
          %v1118 = vpack.c.b16 %v1054, %v1054
          %v1119 = vpack.c.b16 %v1055, %v1055
          %v1120 = vpack.c.b16 %v1056, %v1056
          %v1121 = vpack.c.b16 %v1057, %v1057
          %v1122 = vpack.c.b16 %v1058, %v1058
          %v1123 = vpack.c.b16 %v1059, %v1059
          %v1124 = vpack.c.b16 %v1060, %v1060
          %v1125 = vpack.c.b16 %v1061, %v1061
          %v1126 = vpack.c.b16 %v1062, %v1062
          %v1127 = vpack.c.b16 %v1063, %v1063
          %v1128 = vpack.c.b16 %v1064, %v1064
          %v1129 = vpack.c.b16 %v1065, %v1065
          %v1130 = vpack.c.b16 %v1066, %v1066
          %v1131 = vpack.c.b16 %v1067, %v1067
          %v1132 = vpack.c.b16 %v1068, %v1068
          %v1133 = vpack.c.b16 %v1069, %v1069
          %v1134 = vpack.c.b16 %v1070, %v1070
          %v1135 = vpack.c.b16 %v1071, %v1071
          %v1136 = vpack.c.b16 %v1072, %v1072
          %v1137 = vpack.c.b16 %v1073, %v1073
          %v1138 = vpack.c.b16 %v1074, %v1074
          %v1139 = vpack.c.b16 %v1075, %v1075
          %v1140 = vpack.c.b16 %v1076, %v1076
          %v1141 = vpack.c.b16 %v1077, %v1077
          %v1142 = vpack.c.b16 %v1078, %v1078
          %v1143 = vpack.c.b16 %v1079, %v1079
          %v1144 = vpack.c.b16 %v1080, %v1080
          %v1145 = vpack.c.b16 %v1081, %v1081
          %v1146 = vpack.c.b16 %v1082, %v1082
          %1211 = vst [vmem:[#allocation3] sm:$0xf] %v1083
          %1212 = vst [vmem:[#allocation3 + $0x4] sm:$0xf] %v1084
          %1213 = vst [vmem:[#allocation3 + $0x8] sm:$0xf] %v1085
          %1214 = vst [vmem:[#allocation3 + $0xc] sm:$0xf] %v1086
          %1215 = vst [vmem:[#allocation3 + $0x10] sm:$0xf] %v1087
          %1216 = vst [vmem:[#allocation3 + $0x14] sm:$0xf] %v1088
          %1217 = vst [vmem:[#allocation3 + $0x18] sm:$0xf] %v1089
          %1218 = vst [vmem:[#allocation3 + $0x1c] sm:$0xf] %v1090
          %1219 = vst [vmem:[#allocation3 + $0x20] sm:$0xf] %v1091
          %1220 = vst [vmem:[#allocation3 + $0x24] sm:$0xf] %v1092
          %1221 = vst [vmem:[#allocation3 + $0x28] sm:$0xf] %v1093
          %1222 = vst [vmem:[#allocation3 + $0x2c] sm:$0xf] %v1094
          %1223 = vst [vmem:[#allocation3 + $0x30] sm:$0xf] %v1095
          %1224 = vst [vmem:[#allocation3 + $0x34] sm:$0xf] %v1096
          %1225 = vst [vmem:[#allocation3 + $0x38] sm:$0xf] %v1097
          %1226 = vst [vmem:[#allocation3 + $0x3c] sm:$0xf] %v1098
          %1227 = vst [vmem:[#allocation3 + $0x40] sm:$0xf] %v1099
          %1228 = vst [vmem:[#allocation3 + $0x44] sm:$0xf] %v1100
          %1229 = vst [vmem:[#allocation3 + $0x48] sm:$0xf] %v1101
          %1230 = vst [vmem:[#allocation3 + $0x4c] sm:$0xf] %v1102
          %1231 = vst [vmem:[#allocation3 + $0x50] sm:$0xf] %v1103
          %1232 = vst [vmem:[#allocation3 + $0x54] sm:$0xf] %v1104
          %1233 = vst [vmem:[#allocation3 + $0x58] sm:$0xf] %v1105
          %1234 = vst [vmem:[#allocation3 + $0x5c] sm:$0xf] %v1106
          %1235 = vst [vmem:[#allocation3 + $0x60] sm:$0xf] %v1107
          %1236 = vst [vmem:[#allocation3 + $0x64] sm:$0xf] %v1108
          %1237 = vst [vmem:[#allocation3 + $0x68] sm:$0xf] %v1109
          %1238 = vst [vmem:[#allocation3 + $0x6c] sm:$0xf] %v1110
          %1239 = vst [vmem:[#allocation3 + $0x70] sm:$0xf] %v1111
          %1240 = vst [vmem:[#allocation3 + $0x74] sm:$0xf] %v1112
          %1241 = vst [vmem:[#allocation3 + $0x78] sm:$0xf] %v1113
          %1242 = vst [vmem:[#allocation3 + $0x7c] sm:$0xf] %v1114
          %1243 = vst [vmem:[#allocation3 + $0x80] sm:$0xf] %v1115
          %1244 = vst [vmem:[#allocation3 + $0x84] sm:$0xf] %v1116
          %1245 = vst [vmem:[#allocation3 + $0x88] sm:$0xf] %v1117
          %1246 = vst [vmem:[#allocation3 + $0x8c] sm:$0xf] %v1118
          %1247 = vst [vmem:[#allocation3 + $0x90] sm:$0xf] %v1119
          %1248 = vst [vmem:[#allocation3 + $0x94] sm:$0xf] %v1120
          %1249 = vst [vmem:[#allocation3 + $0x98] sm:$0xf] %v1121
          %1250 = vst [vmem:[#allocation3 + $0x9c] sm:$0xf] %v1122
          %1251 = vst [vmem:[#allocation3 + $0xa0] sm:$0xf] %v1123
          %1252 = vst [vmem:[#allocation3 + $0xa4] sm:$0xf] %v1124
          %1253 = vst [vmem:[#allocation3 + $0xa8] sm:$0xf] %v1125
          %1254 = vst [vmem:[#allocation3 + $0xac] sm:$0xf] %v1126
          %1255 = vst [vmem:[#allocation3 + $0xb0] sm:$0xf] %v1127
          %1256 = vst [vmem:[#allocation3 + $0xb4] sm:$0xf] %v1128
          %1257 = vst [vmem:[#allocation3 + $0xb8] sm:$0xf] %v1129
          %1258 = vst [vmem:[#allocation3 + $0xbc] sm:$0xf] %v1130
          %1259 = vst [vmem:[#allocation3 + $0xc0] sm:$0xf] %v1131
          %1260 = vst [vmem:[#allocation3 + $0xc4] sm:$0xf] %v1132
          %1261 = vst [vmem:[#allocation3 + $0xc8] sm:$0xf] %v1133
          %1262 = vst [vmem:[#allocation3 + $0xcc] sm:$0xf] %v1134
          %1263 = vst [vmem:[#allocation3 + $0xd0] sm:$0xf] %v1135
          %1264 = vst [vmem:[#allocation3 + $0xd4] sm:$0xf] %v1136
          %1265 = vst [vmem:[#allocation3 + $0xd8] sm:$0xf] %v1137
          %1266 = vst [vmem:[#allocation3 + $0xdc] sm:$0xf] %v1138
          %1267 = vst [vmem:[#allocation3 + $0xe0] sm:$0xf] %v1139
          %1268 = vst [vmem:[#allocation3 + $0xe4] sm:$0xf] %v1140
          %1269 = vst [vmem:[#allocation3 + $0xe8] sm:$0xf] %v1141
          %1270 = vst [vmem:[#allocation3 + $0xec] sm:$0xf] %v1142
          %1271 = vst [vmem:[#allocation3 + $0xf0] sm:$0xf] %v1143
          %1272 = vst [vmem:[#allocation3 + $0xf4] sm:$0xf] %v1144
          %1273 = vst [vmem:[#allocation3 + $0xf8] sm:$0xf] %v1145
          %1274 = vst [vmem:[#allocation3 + $0xfc] sm:$0xf] %v1146
        $region64: #{tpu_custom_call.1} parent=43 // pred_fallthru
          _
        %s1275 = smul.u32 %s27, 256
        %v1276 = vld [vmem:[%s305] sm:$0xff]
        %v1277 = vld [vmem:[%s305 + $0x8] sm:$0xff]
        %v1278 = vld [vmem:[%s305 + $0x10] sm:$0xff]
        %v1279 = vld [vmem:[%s305 + $0x18] sm:$0xff]
        %v1280 = vld [vmem:[%s305 + $0x20] sm:$0xff]
        %v1281 = vld [vmem:[%s305 + $0x28] sm:$0xff]
        %v1282 = vld [vmem:[%s305 + $0x30] sm:$0xff]
        %v1283 = vld [vmem:[%s305 + $0x38] sm:$0xff]
        %v1284 = vld [vmem:[%s305 + $0x40] sm:$0xff]
        %v1285 = vld [vmem:[%s305 + $0x48] sm:$0xff]
        %v1286 = vld [vmem:[%s305 + $0x50] sm:$0xff]
        %v1287 = vld [vmem:[%s305 + $0x58] sm:$0xff]
        %v1288 = vld [vmem:[%s305 + $0x60] sm:$0xff]
        %v1289 = vld [vmem:[%s305 + $0x68] sm:$0xff]
        %v1290 = vld [vmem:[%s305 + $0x70] sm:$0xff]
        %v1291 = vld [vmem:[%s305 + $0x78] sm:$0xff]
        %v1292 = vld [vmem:[%s305 + $0x80] sm:$0xff]
        %v1293 = vld [vmem:[%s305 + $0x88] sm:$0xff]
        %v1294 = vld [vmem:[%s305 + $0x90] sm:$0xff]
        %v1295 = vld [vmem:[%s305 + $0x98] sm:$0xff]
        %v1296 = vld [vmem:[%s305 + $0xa0] sm:$0xff]
        %v1297 = vld [vmem:[%s305 + $0xa8] sm:$0xff]
        %v1298 = vld [vmem:[%s305 + $0xb0] sm:$0xff]
        %v1299 = vld [vmem:[%s305 + $0xb8] sm:$0xff]
        %v1300 = vld [vmem:[%s305 + $0xc0] sm:$0xff]
        %v1301 = vld [vmem:[%s305 + $0xc8] sm:$0xff]
        %v1302 = vld [vmem:[%s305 + $0xd0] sm:$0xff]
        %v1303 = vld [vmem:[%s305 + $0xd8] sm:$0xff]
        %v1304 = vld [vmem:[%s305 + $0xe0] sm:$0xff]
        %v1305 = vld [vmem:[%s305 + $0xe8] sm:$0xff]
        %v1306 = vld [vmem:[%s305 + $0xf0] sm:$0xff]
        %v1307 = vld [vmem:[%s305 + $0xf8] sm:$0xff]
        %v1308 = vld [vmem:[%s305 + $0x100] sm:$0xff]
        %v1309 = vld [vmem:[%s305 + $0x108] sm:$0xff]
        %v1310 = vld [vmem:[%s305 + $0x110] sm:$0xff]
        %v1311 = vld [vmem:[%s305 + $0x118] sm:$0xff]
        %v1312 = vld [vmem:[%s305 + $0x120] sm:$0xff]
        %v1313 = vld [vmem:[%s305 + $0x128] sm:$0xff]
        %v1314 = vld [vmem:[%s305 + $0x130] sm:$0xff]
        %v1315 = vld [vmem:[%s305 + $0x138] sm:$0xff]
        %v1316 = vld [vmem:[%s305 + $0x140] sm:$0xff]
        %v1317 = vld [vmem:[%s305 + $0x148] sm:$0xff]
        %v1318 = vld [vmem:[%s305 + $0x150] sm:$0xff]
        %v1319 = vld [vmem:[%s305 + $0x158] sm:$0xff]
        %v1320 = vld [vmem:[%s305 + $0x160] sm:$0xff]
        %v1321 = vld [vmem:[%s305 + $0x168] sm:$0xff]
        %v1322 = vld [vmem:[%s305 + $0x170] sm:$0xff]
        %v1323 = vld [vmem:[%s305 + $0x178] sm:$0xff]
        %v1324 = vld [vmem:[%s305 + $0x180] sm:$0xff]
        %v1325 = vld [vmem:[%s305 + $0x188] sm:$0xff]
        %v1326 = vld [vmem:[%s305 + $0x190] sm:$0xff]
        %v1327 = vld [vmem:[%s305 + $0x198] sm:$0xff]
        %v1328 = vld [vmem:[%s305 + $0x1a0] sm:$0xff]
        %v1329 = vld [vmem:[%s305 + $0x1a8] sm:$0xff]
        %v1330 = vld [vmem:[%s305 + $0x1b0] sm:$0xff]
        %v1331 = vld [vmem:[%s305 + $0x1b8] sm:$0xff]
        %v1332 = vld [vmem:[%s305 + $0x1c0] sm:$0xff]
        %v1333 = vld [vmem:[%s305 + $0x1c8] sm:$0xff]
        %v1334 = vld [vmem:[%s305 + $0x1d0] sm:$0xff]
        %v1335 = vld [vmem:[%s305 + $0x1d8] sm:$0xff]
        %v1336 = vld [vmem:[%s305 + $0x1e0] sm:$0xff]
        %v1337 = vld [vmem:[%s305 + $0x1e8] sm:$0xff]
        %v1338 = vld [vmem:[%s305 + $0x1f0] sm:$0xff]
        %v1339 = vld [vmem:[%s305 + $0x1f8] sm:$0xff]
        %v1340 = vld [vmem:[#allocation3] sm:$0xf]
        %v1341 = vld [vmem:[#allocation3 + $0x4] sm:$0xf]
        %v1342 = vld [vmem:[#allocation3 + $0x8] sm:$0xf]
        %v1343 = vld [vmem:[#allocation3 + $0xc] sm:$0xf]
        %v1344 = vld [vmem:[#allocation3 + $0x10] sm:$0xf]
        %v1345 = vld [vmem:[#allocation3 + $0x14] sm:$0xf]
        %v1346 = vld [vmem:[#allocation3 + $0x18] sm:$0xf]
        %v1347 = vld [vmem:[#allocation3 + $0x1c] sm:$0xf]
        %v1348 = vld [vmem:[#allocation3 + $0x20] sm:$0xf]
        %v1349 = vld [vmem:[#allocation3 + $0x24] sm:$0xf]
        %v1350 = vld [vmem:[#allocation3 + $0x28] sm:$0xf]
        %v1351 = vld [vmem:[#allocation3 + $0x2c] sm:$0xf]
        %v1352 = vld [vmem:[#allocation3 + $0x30] sm:$0xf]
        %v1353 = vld [vmem:[#allocation3 + $0x34] sm:$0xf]
        %v1354 = vld [vmem:[#allocation3 + $0x38] sm:$0xf]
        %v1355 = vld [vmem:[#allocation3 + $0x3c] sm:$0xf]
        %v1356 = vld [vmem:[#allocation3 + $0x40] sm:$0xf]
        %v1357 = vld [vmem:[#allocation3 + $0x44] sm:$0xf]
        %v1358 = vld [vmem:[#allocation3 + $0x48] sm:$0xf]
        %v1359 = vld [vmem:[#allocation3 + $0x4c] sm:$0xf]
        %v1360 = vld [vmem:[#allocation3 + $0x50] sm:$0xf]
        %v1361 = vld [vmem:[#allocation3 + $0x54] sm:$0xf]
        %v1362 = vld [vmem:[#allocation3 + $0x58] sm:$0xf]
        %v1363 = vld [vmem:[#allocation3 + $0x5c] sm:$0xf]
        %v1364 = vld [vmem:[#allocation3 + $0x60] sm:$0xf]
        %v1365 = vld [vmem:[#allocation3 + $0x64] sm:$0xf]
        %v1366 = vld [vmem:[#allocation3 + $0x68] sm:$0xf]
        %v1367 = vld [vmem:[#allocation3 + $0x6c] sm:$0xf]
        %v1368 = vld [vmem:[#allocation3 + $0x70] sm:$0xf]
        %v1369 = vld [vmem:[#allocation3 + $0x74] sm:$0xf]
        %v1370 = vld [vmem:[#allocation3 + $0x78] sm:$0xf]
        %v1371 = vld [vmem:[#allocation3 + $0x7c] sm:$0xf]
        %v1372 = vld [vmem:[#allocation3 + $0x80] sm:$0xf]
        %v1373 = vld [vmem:[#allocation3 + $0x84] sm:$0xf]
        %v1374 = vld [vmem:[#allocation3 + $0x88] sm:$0xf]
        %v1375 = vld [vmem:[#allocation3 + $0x8c] sm:$0xf]
        %v1376 = vld [vmem:[#allocation3 + $0x90] sm:$0xf]
        %v1377 = vld [vmem:[#allocation3 + $0x94] sm:$0xf]
        %v1378 = vld [vmem:[#allocation3 + $0x98] sm:$0xf]
        %v1379 = vld [vmem:[#allocation3 + $0x9c] sm:$0xf]
        %v1380 = vld [vmem:[#allocation3 + $0xa0] sm:$0xf]
        %v1381 = vld [vmem:[#allocation3 + $0xa4] sm:$0xf]
        %v1382 = vld [vmem:[#allocation3 + $0xa8] sm:$0xf]
        %v1383 = vld [vmem:[#allocation3 + $0xac] sm:$0xf]
        %v1384 = vld [vmem:[#allocation3 + $0xb0] sm:$0xf]
        %v1385 = vld [vmem:[#allocation3 + $0xb4] sm:$0xf]
        %v1386 = vld [vmem:[#allocation3 + $0xb8] sm:$0xf]
        %v1387 = vld [vmem:[#allocation3 + $0xbc] sm:$0xf]
        %v1388 = vld [vmem:[#allocation3 + $0xc0] sm:$0xf]
        %v1389 = vld [vmem:[#allocation3 + $0xc4] sm:$0xf]
        %v1390 = vld [vmem:[#allocation3 + $0xc8] sm:$0xf]
        %v1391 = vld [vmem:[#allocation3 + $0xcc] sm:$0xf]
        %v1392 = vld [vmem:[#allocation3 + $0xd0] sm:$0xf]
        %v1393 = vld [vmem:[#allocation3 + $0xd4] sm:$0xf]
        %v1394 = vld [vmem:[#allocation3 + $0xd8] sm:$0xf]
        %v1395 = vld [vmem:[#allocation3 + $0xdc] sm:$0xf]
        %v1396 = vld [vmem:[#allocation3 + $0xe0] sm:$0xf]
        %v1397 = vld [vmem:[#allocation3 + $0xe4] sm:$0xf]
        %v1398 = vld [vmem:[#allocation3 + $0xe8] sm:$0xf]
        %v1399 = vld [vmem:[#allocation3 + $0xec] sm:$0xf]
        %v1400 = vld [vmem:[#allocation3 + $0xf0] sm:$0xf]
        %v1401 = vld [vmem:[#allocation3 + $0xf4] sm:$0xf]
        %v1402 = vld [vmem:[#allocation3 + $0xf8] sm:$0xf]
        %v1403 = vld [vmem:[#allocation3 + $0xfc] sm:$0xf]
        %v1468 = vunpack.c.l.b16 %v1276
        %v1469 = vunpack.c.h.b16 %v1276
        %v1470 = vunpack.c.l.b16 %v1277
        %v1471 = vunpack.c.h.b16 %v1277
        %v1472 = vunpack.c.l.b16 %v1278
        %v1473 = vunpack.c.h.b16 %v1278
        %v1474 = vunpack.c.l.b16 %v1279
        %v1475 = vunpack.c.h.b16 %v1279
        %v1476 = vunpack.c.l.b16 %v1280
        %v1477 = vunpack.c.h.b16 %v1280
        %v1478 = vunpack.c.l.b16 %v1281
        %v1479 = vunpack.c.h.b16 %v1281
        %v1480 = vunpack.c.l.b16 %v1282
        %v1481 = vunpack.c.h.b16 %v1282
        %v1482 = vunpack.c.l.b16 %v1283
        %v1483 = vunpack.c.h.b16 %v1283
        %v1484 = vunpack.c.l.b16 %v1284
        %v1485 = vunpack.c.h.b16 %v1284
        %v1486 = vunpack.c.l.b16 %v1285
        %v1487 = vunpack.c.h.b16 %v1285
        %v1488 = vunpack.c.l.b16 %v1286
        %v1489 = vunpack.c.h.b16 %v1286
        %v1490 = vunpack.c.l.b16 %v1287
        %v1491 = vunpack.c.h.b16 %v1287
        %v1492 = vunpack.c.l.b16 %v1288
        %v1493 = vunpack.c.h.b16 %v1288
        %v1494 = vunpack.c.l.b16 %v1289
        %v1495 = vunpack.c.h.b16 %v1289
        %v1496 = vunpack.c.l.b16 %v1290
        %v1497 = vunpack.c.h.b16 %v1290
        %v1498 = vunpack.c.l.b16 %v1291
        %v1499 = vunpack.c.h.b16 %v1291
        %v1500 = vunpack.c.l.b16 %v1292
        %v1501 = vunpack.c.h.b16 %v1292
        %v1502 = vunpack.c.l.b16 %v1293
        %v1503 = vunpack.c.h.b16 %v1293
        %v1504 = vunpack.c.l.b16 %v1294
        %v1505 = vunpack.c.h.b16 %v1294
        %v1506 = vunpack.c.l.b16 %v1295
        %v1507 = vunpack.c.h.b16 %v1295
        %v1508 = vunpack.c.l.b16 %v1296
        %v1509 = vunpack.c.h.b16 %v1296
        %v1510 = vunpack.c.l.b16 %v1297
        %v1511 = vunpack.c.h.b16 %v1297
        %v1512 = vunpack.c.l.b16 %v1298
        %v1513 = vunpack.c.h.b16 %v1298
        %v1514 = vunpack.c.l.b16 %v1299
        %v1515 = vunpack.c.h.b16 %v1299
        %v1516 = vunpack.c.l.b16 %v1300
        %v1517 = vunpack.c.h.b16 %v1300
        %v1518 = vunpack.c.l.b16 %v1301
        %v1519 = vunpack.c.h.b16 %v1301
        %v1520 = vunpack.c.l.b16 %v1302
        %v1521 = vunpack.c.h.b16 %v1302
        %v1522 = vunpack.c.l.b16 %v1303
        %v1523 = vunpack.c.h.b16 %v1303
        %v1524 = vunpack.c.l.b16 %v1304
        %v1525 = vunpack.c.h.b16 %v1304
        %v1526 = vunpack.c.l.b16 %v1305
        %v1527 = vunpack.c.h.b16 %v1305
        %v1528 = vunpack.c.l.b16 %v1306
        %v1529 = vunpack.c.h.b16 %v1306
        %v1530 = vunpack.c.l.b16 %v1307
        %v1531 = vunpack.c.h.b16 %v1307
        %v1532 = vunpack.c.l.b16 %v1308
        %v1533 = vunpack.c.h.b16 %v1308
        %v1534 = vunpack.c.l.b16 %v1309
        %v1535 = vunpack.c.h.b16 %v1309
        %v1536 = vunpack.c.l.b16 %v1310
        %v1537 = vunpack.c.h.b16 %v1310
        %v1538 = vunpack.c.l.b16 %v1311
        %v1539 = vunpack.c.h.b16 %v1311
        %v1540 = vunpack.c.l.b16 %v1312
        %v1541 = vunpack.c.h.b16 %v1312
        %v1542 = vunpack.c.l.b16 %v1313
        %v1543 = vunpack.c.h.b16 %v1313
        %v1544 = vunpack.c.l.b16 %v1314
        %v1545 = vunpack.c.h.b16 %v1314
        %v1546 = vunpack.c.l.b16 %v1315
        %v1547 = vunpack.c.h.b16 %v1315
        %v1548 = vunpack.c.l.b16 %v1316
        %v1549 = vunpack.c.h.b16 %v1316
        %v1550 = vunpack.c.l.b16 %v1317
        %v1551 = vunpack.c.h.b16 %v1317
        %v1552 = vunpack.c.l.b16 %v1318
        %v1553 = vunpack.c.h.b16 %v1318
        %v1554 = vunpack.c.l.b16 %v1319
        %v1555 = vunpack.c.h.b16 %v1319
        %v1556 = vunpack.c.l.b16 %v1320
        %v1557 = vunpack.c.h.b16 %v1320
        %v1558 = vunpack.c.l.b16 %v1321
        %v1559 = vunpack.c.h.b16 %v1321
        %v1560 = vunpack.c.l.b16 %v1322
        %v1561 = vunpack.c.h.b16 %v1322
        %v1562 = vunpack.c.l.b16 %v1323
        %v1563 = vunpack.c.h.b16 %v1323
        %v1564 = vunpack.c.l.b16 %v1324
        %v1565 = vunpack.c.h.b16 %v1324
        %v1566 = vunpack.c.l.b16 %v1325
        %v1567 = vunpack.c.h.b16 %v1325
        %v1568 = vunpack.c.l.b16 %v1326
        %v1569 = vunpack.c.h.b16 %v1326
        %v1570 = vunpack.c.l.b16 %v1327
        %v1571 = vunpack.c.h.b16 %v1327
        %v1572 = vunpack.c.l.b16 %v1328
        %v1573 = vunpack.c.h.b16 %v1328
        %v1574 = vunpack.c.l.b16 %v1329
        %v1575 = vunpack.c.h.b16 %v1329
        %v1576 = vunpack.c.l.b16 %v1330
        %v1577 = vunpack.c.h.b16 %v1330
        %v1578 = vunpack.c.l.b16 %v1331
        %v1579 = vunpack.c.h.b16 %v1331
        %v1580 = vunpack.c.l.b16 %v1332
        %v1581 = vunpack.c.h.b16 %v1332
        %v1582 = vunpack.c.l.b16 %v1333
        %v1583 = vunpack.c.h.b16 %v1333
        %v1584 = vunpack.c.l.b16 %v1334
        %v1585 = vunpack.c.h.b16 %v1334
        %v1586 = vunpack.c.l.b16 %v1335
        %v1587 = vunpack.c.h.b16 %v1335
        %v1588 = vunpack.c.l.b16 %v1336
        %v1589 = vunpack.c.h.b16 %v1336
        %v1590 = vunpack.c.l.b16 %v1337
        %v1591 = vunpack.c.h.b16 %v1337
        %v1592 = vunpack.c.l.b16 %v1338
        %v1593 = vunpack.c.h.b16 %v1338
        %v1594 = vunpack.c.l.b16 %v1339
        %v1595 = vunpack.c.h.b16 %v1339
        %v1596 = vpack.c.b16 %v1472, %v1468
        %v1597 = vpack.c.b16 %v1473, %v1469
        %v1598 = vpack.c.b16 %v1474, %v1470
        %v1599 = vpack.c.b16 %v1475, %v1471
        %v1600 = vpack.c.b16 %v1480, %v1476
        %v1601 = vpack.c.b16 %v1481, %v1477
        %v1602 = vpack.c.b16 %v1482, %v1478
        %v1603 = vpack.c.b16 %v1483, %v1479
        %v1604 = vpack.c.b16 %v1488, %v1484
        %v1605 = vpack.c.b16 %v1489, %v1485
        %v1606 = vpack.c.b16 %v1490, %v1486
        %v1607 = vpack.c.b16 %v1491, %v1487
        %v1608 = vpack.c.b16 %v1496, %v1492
        %v1609 = vpack.c.b16 %v1497, %v1493
        %v1610 = vpack.c.b16 %v1498, %v1494
        %v1611 = vpack.c.b16 %v1499, %v1495
        %v1612 = vpack.c.b16 %v1504, %v1500
        %v1613 = vpack.c.b16 %v1505, %v1501
        %v1614 = vpack.c.b16 %v1506, %v1502
        %v1615 = vpack.c.b16 %v1507, %v1503
        %v1616 = vpack.c.b16 %v1512, %v1508
        %v1617 = vpack.c.b16 %v1513, %v1509
        %v1618 = vpack.c.b16 %v1514, %v1510
        %v1619 = vpack.c.b16 %v1515, %v1511
        %v1620 = vpack.c.b16 %v1520, %v1516
        %v1621 = vpack.c.b16 %v1521, %v1517
        %v1622 = vpack.c.b16 %v1522, %v1518
        %v1623 = vpack.c.b16 %v1523, %v1519
        %v1624 = vpack.c.b16 %v1528, %v1524
        %v1625 = vpack.c.b16 %v1529, %v1525
        %v1626 = vpack.c.b16 %v1530, %v1526
        %v1627 = vpack.c.b16 %v1531, %v1527
        %v1628 = vpack.c.b16 %v1536, %v1532
        %v1629 = vpack.c.b16 %v1537, %v1533
        %v1630 = vpack.c.b16 %v1538, %v1534
        %v1631 = vpack.c.b16 %v1539, %v1535
        %v1632 = vpack.c.b16 %v1544, %v1540
        %v1633 = vpack.c.b16 %v1545, %v1541
        %v1634 = vpack.c.b16 %v1546, %v1542
        %v1635 = vpack.c.b16 %v1547, %v1543
        %v1636 = vpack.c.b16 %v1552, %v1548
        %v1637 = vpack.c.b16 %v1553, %v1549
        %v1638 = vpack.c.b16 %v1554, %v1550
        %v1639 = vpack.c.b16 %v1555, %v1551
        %v1640 = vpack.c.b16 %v1560, %v1556
        %v1641 = vpack.c.b16 %v1561, %v1557
        %v1642 = vpack.c.b16 %v1562, %v1558
        %v1643 = vpack.c.b16 %v1563, %v1559
        %v1644 = vpack.c.b16 %v1568, %v1564
        %v1645 = vpack.c.b16 %v1569, %v1565
        %v1646 = vpack.c.b16 %v1570, %v1566
        %v1647 = vpack.c.b16 %v1571, %v1567
        %v1648 = vpack.c.b16 %v1576, %v1572
        %v1649 = vpack.c.b16 %v1577, %v1573
        %v1650 = vpack.c.b16 %v1578, %v1574
        %v1651 = vpack.c.b16 %v1579, %v1575
        %v1652 = vpack.c.b16 %v1584, %v1580
        %v1653 = vpack.c.b16 %v1585, %v1581
        %v1654 = vpack.c.b16 %v1586, %v1582
        %v1655 = vpack.c.b16 %v1587, %v1583
        %v1656 = vpack.c.b16 %v1592, %v1588
        %v1657 = vpack.c.b16 %v1593, %v1589
        %v1658 = vpack.c.b16 %v1594, %v1590
        %v1659 = vpack.c.b16 %v1595, %v1591
        %v1788 = vunpack.c.l.b16 %v1340
        %v1789 = vunpack.c.l.b16 %v1341
        %v1790 = vunpack.c.l.b16 %v1342
        %v1791 = vunpack.c.l.b16 %v1343
        %v1792 = vunpack.c.l.b16 %v1344
        %v1793 = vunpack.c.l.b16 %v1345
        %v1794 = vunpack.c.l.b16 %v1346
        %v1795 = vunpack.c.l.b16 %v1347
        %v1796 = vunpack.c.l.b16 %v1348
        %v1797 = vunpack.c.l.b16 %v1349
        %v1798 = vunpack.c.l.b16 %v1350
        %v1799 = vunpack.c.l.b16 %v1351
        %v1800 = vunpack.c.l.b16 %v1352
        %v1801 = vunpack.c.l.b16 %v1353
        %v1802 = vunpack.c.l.b16 %v1354
        %v1803 = vunpack.c.l.b16 %v1355
        %v1804 = vunpack.c.l.b16 %v1356
        %v1805 = vunpack.c.l.b16 %v1357
        %v1806 = vunpack.c.l.b16 %v1358
        %v1807 = vunpack.c.l.b16 %v1359
        %v1808 = vunpack.c.l.b16 %v1360
        %v1809 = vunpack.c.l.b16 %v1361
        %v1810 = vunpack.c.l.b16 %v1362
        %v1811 = vunpack.c.l.b16 %v1363
        %v1812 = vunpack.c.l.b16 %v1364
        %v1813 = vunpack.c.l.b16 %v1365
        %v1814 = vunpack.c.l.b16 %v1366
        %v1815 = vunpack.c.l.b16 %v1367
        %v1816 = vunpack.c.l.b16 %v1368
        %v1817 = vunpack.c.l.b16 %v1369
        %v1818 = vunpack.c.l.b16 %v1370
        %v1819 = vunpack.c.l.b16 %v1371
        %v1820 = vunpack.c.l.b16 %v1372
        %v1821 = vunpack.c.l.b16 %v1373
        %v1822 = vunpack.c.l.b16 %v1374
        %v1823 = vunpack.c.l.b16 %v1375
        %v1824 = vunpack.c.l.b16 %v1376
        %v1825 = vunpack.c.l.b16 %v1377
        %v1826 = vunpack.c.l.b16 %v1378
        %v1827 = vunpack.c.l.b16 %v1379
        %v1828 = vunpack.c.l.b16 %v1380
        %v1829 = vunpack.c.l.b16 %v1381
        %v1830 = vunpack.c.l.b16 %v1382
        %v1831 = vunpack.c.l.b16 %v1383
        %v1832 = vunpack.c.l.b16 %v1384
        %v1833 = vunpack.c.l.b16 %v1385
        %v1834 = vunpack.c.l.b16 %v1386
        %v1835 = vunpack.c.l.b16 %v1387
        %v1836 = vunpack.c.l.b16 %v1388
        %v1837 = vunpack.c.l.b16 %v1389
        %v1838 = vunpack.c.l.b16 %v1390
        %v1839 = vunpack.c.l.b16 %v1391
        %v1840 = vunpack.c.l.b16 %v1392
        %v1841 = vunpack.c.l.b16 %v1393
        %v1842 = vunpack.c.l.b16 %v1394
        %v1843 = vunpack.c.l.b16 %v1395
        %v1844 = vunpack.c.l.b16 %v1396
        %v1845 = vunpack.c.l.b16 %v1397
        %v1846 = vunpack.c.l.b16 %v1398
        %v1847 = vunpack.c.l.b16 %v1399
        %v1848 = vunpack.c.l.b16 %v1400
        %v1849 = vunpack.c.l.b16 %v1401
        %v1850 = vunpack.c.l.b16 %v1402
        %v1851 = vunpack.c.l.b16 %v1403
        %v1852 = vpack.c.b16 %v1789, %v1788
        %v1853 = vpack.c.b16 %v1791, %v1790
        %v1854 = vpack.c.b16 %v1793, %v1792
        %v1855 = vpack.c.b16 %v1795, %v1794
        %v1856 = vpack.c.b16 %v1797, %v1796
        %v1857 = vpack.c.b16 %v1799, %v1798
        %v1858 = vpack.c.b16 %v1801, %v1800
        %v1859 = vpack.c.b16 %v1803, %v1802
        %v1860 = vpack.c.b16 %v1805, %v1804
        %v1861 = vpack.c.b16 %v1807, %v1806
        %v1862 = vpack.c.b16 %v1809, %v1808
        %v1863 = vpack.c.b16 %v1811, %v1810
        %v1864 = vpack.c.b16 %v1813, %v1812
        %v1865 = vpack.c.b16 %v1815, %v1814
        %v1866 = vpack.c.b16 %v1817, %v1816
        %v1867 = vpack.c.b16 %v1819, %v1818
        %v1868 = vpack.c.b16 %v1821, %v1820
        %v1869 = vpack.c.b16 %v1823, %v1822
        %v1870 = vpack.c.b16 %v1825, %v1824
        %v1871 = vpack.c.b16 %v1827, %v1826
        %v1872 = vpack.c.b16 %v1829, %v1828
        %v1873 = vpack.c.b16 %v1831, %v1830
        %v1874 = vpack.c.b16 %v1833, %v1832
        %v1875 = vpack.c.b16 %v1835, %v1834
        %v1876 = vpack.c.b16 %v1837, %v1836
        %v1877 = vpack.c.b16 %v1839, %v1838
        %v1878 = vpack.c.b16 %v1841, %v1840
        %v1879 = vpack.c.b16 %v1843, %v1842
        %v1880 = vpack.c.b16 %v1845, %v1844
        %v1881 = vpack.c.b16 %v1847, %v1846
        %v1882 = vpack.c.b16 %v1849, %v1848
        %v1883 = vpack.c.b16 %v1851, %v1850
        %1916 = vmatprep.subr.bf16.mxu0 0
        %1917 = vmatpush1.bf16.msra.mxu0 %v1859
        %1918 = vmatprep.subr.bf16.mxu0 0
        %1919 = vmatpush1.bf16.msra.mxu0 %v1858
        %1920 = vmatprep.subr.bf16.mxu0 0
        %1921 = vmatpush1.bf16.msra.mxu0 %v1857
        %1922 = vmatprep.subr.bf16.mxu0 0
        %1923 = vmatpush1.bf16.msra.mxu0 %v1856
        %1924 = vmatprep.subr.bf16.mxu0 0
        %1925 = vmatpush1.bf16.msra.mxu0 %v1855
        %1926 = vmatprep.subr.bf16.mxu0 0
        %1927 = vmatpush1.bf16.msra.mxu0 %v1854
        %1928 = vmatprep.subr.bf16.mxu0 0
        %1929 = vmatpush1.bf16.msra.mxu0 %v1853
        %1930 = vmatprep.subr.bf16.mxu0 0
        %1931 = vmatpush1.bf16.msra.mxu0 %v1852
        %1932 = vmatprep.subr.bf16.mxu0 0
        %1933 = vmatpush2.bf16.msra.mxu0 %v1867
        %1934 = vmatprep.subr.bf16.mxu0 0
        %1935 = vmatpush2.bf16.msra.mxu0 %v1866
        %1936 = vmatprep.subr.bf16.mxu0 0
        %1937 = vmatpush2.bf16.msra.mxu0 %v1865
        %1938 = vmatprep.subr.bf16.mxu0 0
        %1939 = vmatpush2.bf16.msra.mxu0 %v1864
        %1940 = vmatprep.subr.bf16.mxu0 0
        %1941 = vmatpush2.bf16.msra.mxu0 %v1863
        %1942 = vmatprep.subr.bf16.mxu0 0
        %1943 = vmatpush2.bf16.msra.mxu0 %v1862
        %1944 = vmatprep.subr.bf16.mxu0 0
        %1945 = vmatpush2.bf16.msra.mxu0 %v1861
        %1946 = vmatprep.subr.bf16.mxu0 0
        %1947 = vmatpush2.bf16.msra.mxu0 %v1860
        %1948 = vmatprep.mubr.bf16.mxu0 %v1597
        %1949 = vmatmul.mubr.bf16.gmra.mxu0 %v1596
        %v1950 = vpop.f32.mrf.mxu0
        %v1951 = vadd.f32 0.0, %v1950
        %v1952 = vpop.f32.mrf.mxu0
        %v1953 = vpop.f32.mrf.mxu0
        %v1954 = vadd.f32 0.0, %v1953
        %v1955 = vpop.f32.mrf.mxu0
        %1956 = vmatprep.mubr.bf16.mxu0 %v1601
        %1957 = vmatmul.mubr.bf16.gmra.mxu0 %v1600
        %v1958 = vpop.f32.mrf.mxu0
        %v1959 = vadd.f32 0.0, %v1958
        %v1960 = vpop.f32.mrf.mxu0
        %v1961 = vpop.f32.mrf.mxu0
        %v1962 = vadd.f32 0.0, %v1961
        %v1963 = vpop.f32.mrf.mxu0
        %1964 = vmatprep.mubr.bf16.mxu0 %v1605
        %1965 = vmatmul.mubr.bf16.gmra.mxu0 %v1604
        %v1966 = vpop.f32.mrf.mxu0
        %v1967 = vadd.f32 0.0, %v1966
        %v1968 = vpop.f32.mrf.mxu0
        %v1969 = vpop.f32.mrf.mxu0
        %v1970 = vadd.f32 0.0, %v1969
        %v1971 = vpop.f32.mrf.mxu0
        %1972 = vmatprep.mubr.bf16.mxu0 %v1609
        %1973 = vmatmul.mubr.bf16.gmra.mxu0 %v1608
        %v1974 = vpop.f32.mrf.mxu0
        %v1975 = vadd.f32 0.0, %v1974
        %v1976 = vpop.f32.mrf.mxu0
        %v1977 = vpop.f32.mrf.mxu0
        %v1978 = vadd.f32 0.0, %v1977
        %v1979 = vpop.f32.mrf.mxu0
        %1980 = vmatprep.mubr.bf16.mxu0 %v1613
        %1981 = vmatmul.mubr.bf16.gmra.mxu0 %v1612
        %v1982 = vpop.f32.mrf.mxu0
        %v1983 = vadd.f32 0.0, %v1982
        %v1984 = vpop.f32.mrf.mxu0
        %v1985 = vpop.f32.mrf.mxu0
        %v1986 = vadd.f32 0.0, %v1985
        %v1987 = vpop.f32.mrf.mxu0
        %1988 = vmatprep.mubr.bf16.mxu0 %v1617
        %1989 = vmatmul.mubr.bf16.gmra.mxu0 %v1616
        %v1990 = vpop.f32.mrf.mxu0
        %v1991 = vadd.f32 0.0, %v1990
        %v1992 = vpop.f32.mrf.mxu0
        %v1993 = vpop.f32.mrf.mxu0
        %v1994 = vadd.f32 0.0, %v1993
        %v1995 = vpop.f32.mrf.mxu0
        %1996 = vmatprep.mubr.bf16.mxu0 %v1621
        %1997 = vmatmul.mubr.bf16.gmra.mxu0 %v1620
        %v1998 = vpop.f32.mrf.mxu0
        %v1999 = vadd.f32 0.0, %v1998
        %v2000 = vpop.f32.mrf.mxu0
        %v2001 = vpop.f32.mrf.mxu0
        %v2002 = vadd.f32 0.0, %v2001
        %v2003 = vpop.f32.mrf.mxu0
        %2004 = vmatprep.mubr.bf16.mxu0 %v1625
        %2005 = vmatmul.mubr.bf16.gmra.mxu0 %v1624
        %v2006 = vpop.f32.mrf.mxu0
        %v2007 = vadd.f32 0.0, %v2006
        %v2008 = vpop.f32.mrf.mxu0
        %v2009 = vpop.f32.mrf.mxu0
        %v2010 = vadd.f32 0.0, %v2009
        %v2011 = vpop.f32.mrf.mxu0
        %2012 = vmatprep.mubr.bf16.mxu0 %v1629
        %2013 = vmatmul.mubr.bf16.gmra.mxu0 %v1628
        %v2014 = vpop.f32.mrf.mxu0
        %v2015 = vadd.f32 0.0, %v2014
        %v2016 = vpop.f32.mrf.mxu0
        %v2017 = vpop.f32.mrf.mxu0
        %v2018 = vadd.f32 0.0, %v2017
        %v2019 = vpop.f32.mrf.mxu0
        %2020 = vmatprep.mubr.bf16.mxu0 %v1633
        %2021 = vmatmul.mubr.bf16.gmra.mxu0 %v1632
        %v2022 = vpop.f32.mrf.mxu0
        %v2023 = vadd.f32 0.0, %v2022
        %v2024 = vpop.f32.mrf.mxu0
        %v2025 = vpop.f32.mrf.mxu0
        %v2026 = vadd.f32 0.0, %v2025
        %v2027 = vpop.f32.mrf.mxu0
        %2028 = vmatprep.mubr.bf16.mxu0 %v1637
        %2029 = vmatmul.mubr.bf16.gmra.mxu0 %v1636
        %v2030 = vpop.f32.mrf.mxu0
        %v2031 = vadd.f32 0.0, %v2030
        %v2032 = vpop.f32.mrf.mxu0
        %v2033 = vpop.f32.mrf.mxu0
        %v2034 = vadd.f32 0.0, %v2033
        %v2035 = vpop.f32.mrf.mxu0
        %2036 = vmatprep.mubr.bf16.mxu0 %v1641
        %2037 = vmatmul.mubr.bf16.gmra.mxu0 %v1640
        %v2038 = vpop.f32.mrf.mxu0
        %v2039 = vadd.f32 0.0, %v2038
        %v2040 = vpop.f32.mrf.mxu0
        %v2041 = vpop.f32.mrf.mxu0
        %v2042 = vadd.f32 0.0, %v2041
        %v2043 = vpop.f32.mrf.mxu0
        %2044 = vmatprep.mubr.bf16.mxu0 %v1645
        %2045 = vmatmul.mubr.bf16.gmra.mxu0 %v1644
        %v2046 = vpop.f32.mrf.mxu0
        %v2047 = vadd.f32 0.0, %v2046
        %v2048 = vpop.f32.mrf.mxu0
        %v2049 = vpop.f32.mrf.mxu0
        %v2050 = vadd.f32 0.0, %v2049
        %v2051 = vpop.f32.mrf.mxu0
        %2052 = vmatprep.mubr.bf16.mxu0 %v1649
        %2053 = vmatmul.mubr.bf16.gmra.mxu0 %v1648
        %v2054 = vpop.f32.mrf.mxu0
        %v2055 = vadd.f32 0.0, %v2054
        %v2056 = vpop.f32.mrf.mxu0
        %v2057 = vpop.f32.mrf.mxu0
        %v2058 = vadd.f32 0.0, %v2057
        %v2059 = vpop.f32.mrf.mxu0
        %2060 = vmatprep.mubr.bf16.mxu0 %v1653
        %2061 = vmatmul.mubr.bf16.gmra.mxu0 %v1652
        %v2062 = vpop.f32.mrf.mxu0
        %v2063 = vadd.f32 0.0, %v2062
        %v2064 = vpop.f32.mrf.mxu0
        %v2065 = vpop.f32.mrf.mxu0
        %v2066 = vadd.f32 0.0, %v2065
        %v2067 = vpop.f32.mrf.mxu0
        %2068 = vmatprep.mubr.bf16.mxu0 %v1657
        %2069 = vmatmul.mubr.bf16.gmra.mxu0 %v1656
        %v2070 = vpop.f32.mrf.mxu0
        %v2071 = vadd.f32 0.0, %v2070
        %v2072 = vpop.f32.mrf.mxu0
        %v2073 = vpop.f32.mrf.mxu0
        %v2074 = vadd.f32 0.0, %v2073
        %v2075 = vpop.f32.mrf.mxu0
        %2076 = vdwg.mxu0
        %2077 = vmatprep.subr.bf16.mxu0 0
        %2078 = vmatpush1.bf16.msra.mxu0 %v1875
        %2079 = vmatprep.subr.bf16.mxu0 0
        %2080 = vmatpush1.bf16.msra.mxu0 %v1874
        %2081 = vmatprep.subr.bf16.mxu0 0
        %2082 = vmatpush1.bf16.msra.mxu0 %v1873
        %2083 = vmatprep.subr.bf16.mxu0 0
        %2084 = vmatpush1.bf16.msra.mxu0 %v1872
        %2085 = vmatprep.subr.bf16.mxu0 0
        %2086 = vmatpush1.bf16.msra.mxu0 %v1871
        %2087 = vmatprep.subr.bf16.mxu0 0
        %2088 = vmatpush1.bf16.msra.mxu0 %v1870
        %2089 = vmatprep.subr.bf16.mxu0 0
        %2090 = vmatpush1.bf16.msra.mxu0 %v1869
        %2091 = vmatprep.subr.bf16.mxu0 0
        %2092 = vmatpush1.bf16.msra.mxu0 %v1868
        %2093 = vmatprep.subr.bf16.mxu0 0
        %2094 = vmatpush2.bf16.msra.mxu0 %v1883
        %2095 = vmatprep.subr.bf16.mxu0 0
        %2096 = vmatpush2.bf16.msra.mxu0 %v1882
        %2097 = vmatprep.subr.bf16.mxu0 0
        %2098 = vmatpush2.bf16.msra.mxu0 %v1881
        %2099 = vmatprep.subr.bf16.mxu0 0
        %2100 = vmatpush2.bf16.msra.mxu0 %v1880
        %2101 = vmatprep.subr.bf16.mxu0 0
        %2102 = vmatpush2.bf16.msra.mxu0 %v1879
        %2103 = vmatprep.subr.bf16.mxu0 0
        %2104 = vmatpush2.bf16.msra.mxu0 %v1878
        %2105 = vmatprep.subr.bf16.mxu0 0
        %2106 = vmatpush2.bf16.msra.mxu0 %v1877
        %2107 = vmatprep.subr.bf16.mxu0 0
        %2108 = vmatpush2.bf16.msra.mxu0 %v1876
        %2109 = vmatprep.mubr.bf16.mxu0 %v1599
        %2110 = vmatmul.mubr.bf16.gmra.mxu0 %v1598
        %v2111 = vpop.f32.mrf.mxu0
        %v2112 = vadd.f32 %v1951, %v2111
        %v2113 = vpop.f32.mrf.mxu0
        %v2114 = vpop.f32.mrf.mxu0
        %v2115 = vadd.f32 %v1954, %v2114
        %v2116 = vpop.f32.mrf.mxu0
        %2117 = vmatprep.mubr.bf16.mxu0 %v1603
        %2118 = vmatmul.mubr.bf16.gmra.mxu0 %v1602
        %v2119 = vpop.f32.mrf.mxu0
        %v2120 = vadd.f32 %v1959, %v2119
        %v2121 = vpop.f32.mrf.mxu0
        %v2122 = vpop.f32.mrf.mxu0
        %v2123 = vadd.f32 %v1962, %v2122
        %v2124 = vpop.f32.mrf.mxu0
        %2125 = vmatprep.mubr.bf16.mxu0 %v1607
        %2126 = vmatmul.mubr.bf16.gmra.mxu0 %v1606
        %v2127 = vpop.f32.mrf.mxu0
        %v2128 = vadd.f32 %v1967, %v2127
        %v2129 = vpop.f32.mrf.mxu0
        %v2130 = vpop.f32.mrf.mxu0
        %v2131 = vadd.f32 %v1970, %v2130
        %v2132 = vpop.f32.mrf.mxu0
        %2133 = vmatprep.mubr.bf16.mxu0 %v1611
        %2134 = vmatmul.mubr.bf16.gmra.mxu0 %v1610
        %v2135 = vpop.f32.mrf.mxu0
        %v2136 = vadd.f32 %v1975, %v2135
        %v2137 = vpop.f32.mrf.mxu0
        %v2138 = vpop.f32.mrf.mxu0
        %v2139 = vadd.f32 %v1978, %v2138
        %v2140 = vpop.f32.mrf.mxu0
        %2141 = vmatprep.mubr.bf16.mxu0 %v1615
        %2142 = vmatmul.mubr.bf16.gmra.mxu0 %v1614
        %v2143 = vpop.f32.mrf.mxu0
        %v2144 = vadd.f32 %v1983, %v2143
        %v2145 = vpop.f32.mrf.mxu0
        %v2146 = vpop.f32.mrf.mxu0
        %v2147 = vadd.f32 %v1986, %v2146
        %v2148 = vpop.f32.mrf.mxu0
        %2149 = vmatprep.mubr.bf16.mxu0 %v1619
        %2150 = vmatmul.mubr.bf16.gmra.mxu0 %v1618
        %v2151 = vpop.f32.mrf.mxu0
        %v2152 = vadd.f32 %v1991, %v2151
        %v2153 = vpop.f32.mrf.mxu0
        %v2154 = vpop.f32.mrf.mxu0
        %v2155 = vadd.f32 %v1994, %v2154
        %v2156 = vpop.f32.mrf.mxu0
        %2157 = vmatprep.mubr.bf16.mxu0 %v1623
        %2158 = vmatmul.mubr.bf16.gmra.mxu0 %v1622
        %v2159 = vpop.f32.mrf.mxu0
        %v2160 = vadd.f32 %v1999, %v2159
        %v2161 = vpop.f32.mrf.mxu0
        %v2162 = vpop.f32.mrf.mxu0
        %v2163 = vadd.f32 %v2002, %v2162
        %v2164 = vpop.f32.mrf.mxu0
        %2165 = vmatprep.mubr.bf16.mxu0 %v1627
        %2166 = vmatmul.mubr.bf16.gmra.mxu0 %v1626
        %v2167 = vpop.f32.mrf.mxu0
        %v2168 = vadd.f32 %v2007, %v2167
        %v2169 = vpop.f32.mrf.mxu0
        %v2170 = vpop.f32.mrf.mxu0
        %v2171 = vadd.f32 %v2010, %v2170
        %v2172 = vpop.f32.mrf.mxu0
        %2173 = vmatprep.mubr.bf16.mxu0 %v1631
        %2174 = vmatmul.mubr.bf16.gmra.mxu0 %v1630
        %v2175 = vpop.f32.mrf.mxu0
        %v2176 = vadd.f32 %v2015, %v2175
        %v2177 = vpop.f32.mrf.mxu0
        %v2178 = vpop.f32.mrf.mxu0
        %v2179 = vadd.f32 %v2018, %v2178
        %v2180 = vpop.f32.mrf.mxu0
        %2181 = vmatprep.mubr.bf16.mxu0 %v1635
        %2182 = vmatmul.mubr.bf16.gmra.mxu0 %v1634
        %v2183 = vpop.f32.mrf.mxu0
        %v2184 = vadd.f32 %v2023, %v2183
        %v2185 = vpop.f32.mrf.mxu0
        %v2186 = vpop.f32.mrf.mxu0
        %v2187 = vadd.f32 %v2026, %v2186
        %v2188 = vpop.f32.mrf.mxu0
        %2189 = vmatprep.mubr.bf16.mxu0 %v1639
        %2190 = vmatmul.mubr.bf16.gmra.mxu0 %v1638
        %v2191 = vpop.f32.mrf.mxu0
        %v2192 = vadd.f32 %v2031, %v2191
        %v2193 = vpop.f32.mrf.mxu0
        %v2194 = vpop.f32.mrf.mxu0
        %v2195 = vadd.f32 %v2034, %v2194
        %v2196 = vpop.f32.mrf.mxu0
        %2197 = vmatprep.mubr.bf16.mxu0 %v1643
        %2198 = vmatmul.mubr.bf16.gmra.mxu0 %v1642
        %v2199 = vpop.f32.mrf.mxu0
        %v2200 = vadd.f32 %v2039, %v2199
        %v2201 = vpop.f32.mrf.mxu0
        %v2202 = vpop.f32.mrf.mxu0
        %v2203 = vadd.f32 %v2042, %v2202
        %v2204 = vpop.f32.mrf.mxu0
        %2205 = vmatprep.mubr.bf16.mxu0 %v1647
        %2206 = vmatmul.mubr.bf16.gmra.mxu0 %v1646
        %v2207 = vpop.f32.mrf.mxu0
        %v2208 = vadd.f32 %v2047, %v2207
        %v2209 = vpop.f32.mrf.mxu0
        %v2210 = vpop.f32.mrf.mxu0
        %v2211 = vadd.f32 %v2050, %v2210
        %v2212 = vpop.f32.mrf.mxu0
        %2213 = vmatprep.mubr.bf16.mxu0 %v1651
        %2214 = vmatmul.mubr.bf16.gmra.mxu0 %v1650
        %v2215 = vpop.f32.mrf.mxu0
        %v2216 = vadd.f32 %v2055, %v2215
        %v2217 = vpop.f32.mrf.mxu0
        %v2218 = vpop.f32.mrf.mxu0
        %v2219 = vadd.f32 %v2058, %v2218
        %v2220 = vpop.f32.mrf.mxu0
        %2221 = vmatprep.mubr.bf16.mxu0 %v1655
        %2222 = vmatmul.mubr.bf16.gmra.mxu0 %v1654
        %v2223 = vpop.f32.mrf.mxu0
        %v2224 = vadd.f32 %v2063, %v2223
        %v2225 = vpop.f32.mrf.mxu0
        %v2226 = vpop.f32.mrf.mxu0
        %v2227 = vadd.f32 %v2066, %v2226
        %v2228 = vpop.f32.mrf.mxu0
        %2229 = vmatprep.mubr.bf16.mxu0 %v1659
        %2230 = vmatmul.mubr.bf16.gmra.mxu0 %v1658
        %v2231 = vpop.f32.mrf.mxu0
        %v2232 = vadd.f32 %v2071, %v2231
        %v2233 = vpop.f32.mrf.mxu0
        %v2234 = vpop.f32.mrf.mxu0
        %v2235 = vadd.f32 %v2074, %v2234
        %v2236 = vpop.f32.mrf.mxu0
        %2237 = vdwg.mxu0
        %s2238 = scalar_lea.vmem [#allocation4], %s1275
        %2239 = vst [vmem:[%s2238] sm:$0xff] %v2112
        %2240 = vst [vmem:[%s2238 + $0x8] sm:$0xff] %v2115
        %2241 = vst [vmem:[%s2238 + $0x10] sm:$0xff] %v2120
        %2242 = vst [vmem:[%s2238 + $0x18] sm:$0xff] %v2123
        %2243 = vst [vmem:[%s2238 + $0x20] sm:$0xff] %v2128
        %2244 = vst [vmem:[%s2238 + $0x28] sm:$0xff] %v2131
        %2245 = vst [vmem:[%s2238 + $0x30] sm:$0xff] %v2136
        %2246 = vst [vmem:[%s2238 + $0x38] sm:$0xff] %v2139
        %2247 = vst [vmem:[%s2238 + $0x40] sm:$0xff] %v2144
        %2248 = vst [vmem:[%s2238 + $0x48] sm:$0xff] %v2147
        %2249 = vst [vmem:[%s2238 + $0x50] sm:$0xff] %v2152
        %2250 = vst [vmem:[%s2238 + $0x58] sm:$0xff] %v2155
        %2251 = vst [vmem:[%s2238 + $0x60] sm:$0xff] %v2160
        %2252 = vst [vmem:[%s2238 + $0x68] sm:$0xff] %v2163
        %2253 = vst [vmem:[%s2238 + $0x70] sm:$0xff] %v2168
        %2254 = vst [vmem:[%s2238 + $0x78] sm:$0xff] %v2171
        %2255 = vst [vmem:[%s2238 + $0x80] sm:$0xff] %v2176
        %2256 = vst [vmem:[%s2238 + $0x88] sm:$0xff] %v2179
        %2257 = vst [vmem:[%s2238 + $0x90] sm:$0xff] %v2184
        %2258 = vst [vmem:[%s2238 + $0x98] sm:$0xff] %v2187
        %2259 = vst [vmem:[%s2238 + $0xa0] sm:$0xff] %v2192
        %2260 = vst [vmem:[%s2238 + $0xa8] sm:$0xff] %v2195
        %2261 = vst [vmem:[%s2238 + $0xb0] sm:$0xff] %v2200
        %2262 = vst [vmem:[%s2238 + $0xb8] sm:$0xff] %v2203
        %2263 = vst [vmem:[%s2238 + $0xc0] sm:$0xff] %v2208
        %2264 = vst [vmem:[%s2238 + $0xc8] sm:$0xff] %v2211
        %2265 = vst [vmem:[%s2238 + $0xd0] sm:$0xff] %v2216
        %2266 = vst [vmem:[%s2238 + $0xd8] sm:$0xff] %v2219
        %2267 = vst [vmem:[%s2238 + $0xe0] sm:$0xff] %v2224
        %2268 = vst [vmem:[%s2238 + $0xe8] sm:$0xff] %v2227
        %2269 = vst [vmem:[%s2238 + $0xf0] sm:$0xff] %v2232
        %2270 = vst [vmem:[%s2238 + $0xf8] sm:$0xff] %v2235
        %p2271 = scmp.ne.s32.totalorder %s26, 2
        %p2272 = pnand %p368, %p2271
        %p2273 = pneg %p2272
        // Predicated region
        $region65: #{tpu_custom_call.1} parent=43 // pred_check
          _
        $region66: #{tpu_custom_call.1} parent=43 // pred_check_branch
          %2275 = sbr.rel (%p2272) target = $region68
        $region67: #{tpu_custom_call.1} parent=43 // pred_region
          %v2276 = vld [vmem:[#allocation4] sm:$0xff]
          %v2277 = vld [vmem:[#allocation4 + $0x8] sm:$0xff]
          %v2278 = vld [vmem:[#allocation4 + $0x10] sm:$0xff]
          %v2279 = vld [vmem:[#allocation4 + $0x18] sm:$0xff]
          %v2280 = vld [vmem:[#allocation4 + $0x20] sm:$0xff]
          %v2281 = vld [vmem:[#allocation4 + $0x28] sm:$0xff]
          %v2282 = vld [vmem:[#allocation4 + $0x30] sm:$0xff]
          %v2283 = vld [vmem:[#allocation4 + $0x38] sm:$0xff]
          %v2284 = vld [vmem:[#allocation4 + $0x40] sm:$0xff]
          %v2285 = vld [vmem:[#allocation4 + $0x48] sm:$0xff]
          %v2286 = vld [vmem:[#allocation4 + $0x50] sm:$0xff]
          %v2287 = vld [vmem:[#allocation4 + $0x58] sm:$0xff]
          %v2288 = vld [vmem:[#allocation4 + $0x60] sm:$0xff]
          %v2289 = vld [vmem:[#allocation4 + $0x68] sm:$0xff]
          %v2290 = vld [vmem:[#allocation4 + $0x70] sm:$0xff]
          %v2291 = vld [vmem:[#allocation4 + $0x78] sm:$0xff]
          %v2292 = vld [vmem:[#allocation4 + $0x80] sm:$0xff]
          %v2293 = vld [vmem:[#allocation4 + $0x88] sm:$0xff]
          %v2294 = vld [vmem:[#allocation4 + $0x90] sm:$0xff]
          %v2295 = vld [vmem:[#allocation4 + $0x98] sm:$0xff]
          %v2296 = vld [vmem:[#allocation4 + $0xa0] sm:$0xff]
          %v2297 = vld [vmem:[#allocation4 + $0xa8] sm:$0xff]
          %v2298 = vld [vmem:[#allocation4 + $0xb0] sm:$0xff]
          %v2299 = vld [vmem:[#allocation4 + $0xb8] sm:$0xff]
          %v2300 = vld [vmem:[#allocation4 + $0xc0] sm:$0xff]
          %v2301 = vld [vmem:[#allocation4 + $0xc8] sm:$0xff]
          %v2302 = vld [vmem:[#allocation4 + $0xd0] sm:$0xff]
          %v2303 = vld [vmem:[#allocation4 + $0xd8] sm:$0xff]
          %v2304 = vld [vmem:[#allocation4 + $0xe0] sm:$0xff]
          %v2305 = vld [vmem:[#allocation4 + $0xe8] sm:$0xff]
          %v2306 = vld [vmem:[#allocation4 + $0xf0] sm:$0xff]
          %v2307 = vld [vmem:[#allocation4 + $0xf8] sm:$0xff]
          %v2308 = vld [vmem:[#allocation4 + $0x100] sm:$0xff]
          %v2309 = vld [vmem:[#allocation4 + $0x108] sm:$0xff]
          %v2310 = vld [vmem:[#allocation4 + $0x110] sm:$0xff]
          %v2311 = vld [vmem:[#allocation4 + $0x118] sm:$0xff]
          %v2312 = vld [vmem:[#allocation4 + $0x120] sm:$0xff]
          %v2313 = vld [vmem:[#allocation4 + $0x128] sm:$0xff]
          %v2314 = vld [vmem:[#allocation4 + $0x130] sm:$0xff]
          %v2315 = vld [vmem:[#allocation4 + $0x138] sm:$0xff]
          %v2316 = vld [vmem:[#allocation4 + $0x140] sm:$0xff]
          %v2317 = vld [vmem:[#allocation4 + $0x148] sm:$0xff]
          %v2318 = vld [vmem:[#allocation4 + $0x150] sm:$0xff]
          %v2319 = vld [vmem:[#allocation4 + $0x158] sm:$0xff]
          %v2320 = vld [vmem:[#allocation4 + $0x160] sm:$0xff]
          %v2321 = vld [vmem:[#allocation4 + $0x168] sm:$0xff]
          %v2322 = vld [vmem:[#allocation4 + $0x170] sm:$0xff]
          %v2323 = vld [vmem:[#allocation4 + $0x178] sm:$0xff]
          %v2324 = vld [vmem:[#allocation4 + $0x180] sm:$0xff]
          %v2325 = vld [vmem:[#allocation4 + $0x188] sm:$0xff]
          %v2326 = vld [vmem:[#allocation4 + $0x190] sm:$0xff]
          %v2327 = vld [vmem:[#allocation4 + $0x198] sm:$0xff]
          %v2328 = vld [vmem:[#allocation4 + $0x1a0] sm:$0xff]
          %v2329 = vld [vmem:[#allocation4 + $0x1a8] sm:$0xff]
          %v2330 = vld [vmem:[#allocation4 + $0x1b0] sm:$0xff]
          %v2331 = vld [vmem:[#allocation4 + $0x1b8] sm:$0xff]
          %v2332 = vld [vmem:[#allocation4 + $0x1c0] sm:$0xff]
          %v2333 = vld [vmem:[#allocation4 + $0x1c8] sm:$0xff]
          %v2334 = vld [vmem:[#allocation4 + $0x1d0] sm:$0xff]
          %v2335 = vld [vmem:[#allocation4 + $0x1d8] sm:$0xff]
          %v2336 = vld [vmem:[#allocation4 + $0x1e0] sm:$0xff]
          %v2337 = vld [vmem:[#allocation4 + $0x1e8] sm:$0xff]
          %v2338 = vld [vmem:[#allocation4 + $0x1f0] sm:$0xff]
          %v2339 = vld [vmem:[#allocation4 + $0x1f8] sm:$0xff]
          %v2340 = vadd.f32 %v2276, %v2277
          %v2341 = vadd.f32 %v2340, %v2278
          %v2342 = vadd.f32 %v2341, %v2279
          %v2343 = vadd.f32 %v2342, %v2280
          %v2344 = vadd.f32 %v2343, %v2281
          %v2345 = vadd.f32 %v2344, %v2282
          %v2346 = vadd.f32 %v2345, %v2283
          %v2347 = vadd.f32 %v2346, %v2284
          %v2348 = vadd.f32 %v2347, %v2285
          %v2349 = vadd.f32 %v2348, %v2286
          %v2350 = vadd.f32 %v2349, %v2287
          %v2351 = vadd.f32 %v2350, %v2288
          %v2352 = vadd.f32 %v2351, %v2289
          %v2353 = vadd.f32 %v2352, %v2290
          %v2354 = vadd.f32 %v2353, %v2291
          %v2355 = vadd.f32 %v2354, %v2292
          %v2356 = vadd.f32 %v2355, %v2293
          %v2357 = vadd.f32 %v2356, %v2294
          %v2358 = vadd.f32 %v2357, %v2295
          %v2359 = vadd.f32 %v2358, %v2296
          %v2360 = vadd.f32 %v2359, %v2297
          %v2361 = vadd.f32 %v2360, %v2298
          %v2362 = vadd.f32 %v2361, %v2299
          %v2363 = vadd.f32 %v2362, %v2300
          %v2364 = vadd.f32 %v2363, %v2301
          %v2365 = vadd.f32 %v2364, %v2302
          %v2366 = vadd.f32 %v2365, %v2303
          %v2367 = vadd.f32 %v2366, %v2304
          %v2368 = vadd.f32 %v2367, %v2305
          %v2369 = vadd.f32 %v2368, %v2306
          %v2370 = vadd.f32 %v2369, %v2307
          %v2371 = vadd.f32 %v2370, %v2308
          %v2372 = vadd.f32 %v2371, %v2309
          %v2373 = vadd.f32 %v2372, %v2310
          %v2374 = vadd.f32 %v2373, %v2311
          %v2375 = vadd.f32 %v2374, %v2312
          %v2376 = vadd.f32 %v2375, %v2313
          %v2377 = vadd.f32 %v2376, %v2314
          %v2378 = vadd.f32 %v2377, %v2315
          %v2379 = vadd.f32 %v2378, %v2316
          %v2380 = vadd.f32 %v2379, %v2317
          %v2381 = vadd.f32 %v2380, %v2318
          %v2382 = vadd.f32 %v2381, %v2319
          %v2383 = vadd.f32 %v2382, %v2320
          %v2384 = vadd.f32 %v2383, %v2321
          %v2385 = vadd.f32 %v2384, %v2322
          %v2386 = vadd.f32 %v2385, %v2323
          %v2387 = vadd.f32 %v2386, %v2324
          %v2388 = vadd.f32 %v2387, %v2325
          %v2389 = vadd.f32 %v2388, %v2326
          %v2390 = vadd.f32 %v2389, %v2327
          %v2391 = vadd.f32 %v2390, %v2328
          %v2392 = vadd.f32 %v2391, %v2329
          %v2393 = vadd.f32 %v2392, %v2330
          %v2394 = vadd.f32 %v2393, %v2331
          %v2395 = vadd.f32 %v2394, %v2332
          %v2396 = vadd.f32 %v2395, %v2333
          %v2397 = vadd.f32 %v2396, %v2334
          %v2398 = vadd.f32 %v2397, %v2335
          %v2399 = vadd.f32 %v2398, %v2336
          %v2400 = vadd.f32 %v2399, %v2337
          %v2401 = vadd.f32 %v2400, %v2338
          %v2402 = vadd.f32 %v2401, %v2339
          %v2403 = vrot.slane %v2402, 4
          %v2404 = vadd.f32 %v2402, %v2403
          %v2405 = vrot.slane %v2404, 2
          %v2406 = vadd.f32 %v2404, %v2405
          %v2407 = vrot.slane %v2406, 1
          %v2408 = vadd.f32 %v2406, %v2407
          %v2409 = vmul.f32 %v2408, 0.001953125
          %v2410 = vmul.f32 %v2276, %v2276
          %v2411 = vmul.f32 %v2277, %v2277
          %v2412 = vmul.f32 %v2278, %v2278
          %v2413 = vmul.f32 %v2279, %v2279
          %v2414 = vmul.f32 %v2280, %v2280
          %v2415 = vmul.f32 %v2281, %v2281
          %v2416 = vmul.f32 %v2282, %v2282
          %v2417 = vmul.f32 %v2283, %v2283
          %v2418 = vmul.f32 %v2284, %v2284
          %v2419 = vmul.f32 %v2285, %v2285
          %v2420 = vmul.f32 %v2286, %v2286
          %v2421 = vmul.f32 %v2287, %v2287
          %v2422 = vmul.f32 %v2288, %v2288
          %v2423 = vmul.f32 %v2289, %v2289
          %v2424 = vmul.f32 %v2290, %v2290
          %v2425 = vmul.f32 %v2291, %v2291
          %v2426 = vmul.f32 %v2292, %v2292
          %v2427 = vmul.f32 %v2293, %v2293
          %v2428 = vmul.f32 %v2294, %v2294
          %v2429 = vmul.f32 %v2295, %v2295
          %v2430 = vmul.f32 %v2296, %v2296
          %v2431 = vmul.f32 %v2297, %v2297
          %v2432 = vmul.f32 %v2298, %v2298
          %v2433 = vmul.f32 %v2299, %v2299
          %v2434 = vmul.f32 %v2300, %v2300
          %v2435 = vmul.f32 %v2301, %v2301
          %v2436 = vmul.f32 %v2302, %v2302
          %v2437 = vmul.f32 %v2303, %v2303
          %v2438 = vmul.f32 %v2304, %v2304
          %v2439 = vmul.f32 %v2305, %v2305
          %v2440 = vmul.f32 %v2306, %v2306
          %v2441 = vmul.f32 %v2307, %v2307
          %v2442 = vmul.f32 %v2308, %v2308
          %v2443 = vmul.f32 %v2309, %v2309
          %v2444 = vmul.f32 %v2310, %v2310
          %v2445 = vmul.f32 %v2311, %v2311
          %v2446 = vmul.f32 %v2312, %v2312
          %v2447 = vmul.f32 %v2313, %v2313
          %v2448 = vmul.f32 %v2314, %v2314
          %v2449 = vmul.f32 %v2315, %v2315
          %v2450 = vmul.f32 %v2316, %v2316
          %v2451 = vmul.f32 %v2317, %v2317
          %v2452 = vmul.f32 %v2318, %v2318
          %v2453 = vmul.f32 %v2319, %v2319
          %v2454 = vmul.f32 %v2320, %v2320
          %v2455 = vmul.f32 %v2321, %v2321
          %v2456 = vmul.f32 %v2322, %v2322
          %v2457 = vmul.f32 %v2323, %v2323
          %v2458 = vmul.f32 %v2324, %v2324
          %v2459 = vmul.f32 %v2325, %v2325
          %v2460 = vmul.f32 %v2326, %v2326
          %v2461 = vmul.f32 %v2327, %v2327
          %v2462 = vmul.f32 %v2328, %v2328
          %v2463 = vmul.f32 %v2329, %v2329
          %v2464 = vmul.f32 %v2330, %v2330
          %v2465 = vmul.f32 %v2331, %v2331
          %v2466 = vmul.f32 %v2332, %v2332
          %v2467 = vmul.f32 %v2333, %v2333
          %v2468 = vmul.f32 %v2334, %v2334
          %v2469 = vmul.f32 %v2335, %v2335
          %v2470 = vmul.f32 %v2336, %v2336
          %v2471 = vmul.f32 %v2337, %v2337
          %v2472 = vmul.f32 %v2338, %v2338
          %v2473 = vmul.f32 %v2339, %v2339
          %v2474 = vadd.f32 %v2410, %v2411
          %v2475 = vadd.f32 %v2474, %v2412
          %v2476 = vadd.f32 %v2475, %v2413
          %v2477 = vadd.f32 %v2476, %v2414
          %v2478 = vadd.f32 %v2477, %v2415
          %v2479 = vadd.f32 %v2478, %v2416
          %v2480 = vadd.f32 %v2479, %v2417
          %v2481 = vadd.f32 %v2480, %v2418
          %v2482 = vadd.f32 %v2481, %v2419
          %v2483 = vadd.f32 %v2482, %v2420
          %v2484 = vadd.f32 %v2483, %v2421
          %v2485 = vadd.f32 %v2484, %v2422
          %v2486 = vadd.f32 %v2485, %v2423
          %v2487 = vadd.f32 %v2486, %v2424
          %v2488 = vadd.f32 %v2487, %v2425
          %v2489 = vadd.f32 %v2488, %v2426
          %v2490 = vadd.f32 %v2489, %v2427
          %v2491 = vadd.f32 %v2490, %v2428
          %v2492 = vadd.f32 %v2491, %v2429
          %v2493 = vadd.f32 %v2492, %v2430
          %v2494 = vadd.f32 %v2493, %v2431
          %v2495 = vadd.f32 %v2494, %v2432
          %v2496 = vadd.f32 %v2495, %v2433
          %v2497 = vadd.f32 %v2496, %v2434
          %v2498 = vadd.f32 %v2497, %v2435
          %v2499 = vadd.f32 %v2498, %v2436
          %v2500 = vadd.f32 %v2499, %v2437
          %v2501 = vadd.f32 %v2500, %v2438
          %v2502 = vadd.f32 %v2501, %v2439
          %v2503 = vadd.f32 %v2502, %v2440
          %v2504 = vadd.f32 %v2503, %v2441
          %v2505 = vadd.f32 %v2504, %v2442
          %v2506 = vadd.f32 %v2505, %v2443
          %v2507 = vadd.f32 %v2506, %v2444
          %v2508 = vadd.f32 %v2507, %v2445
          %v2509 = vadd.f32 %v2508, %v2446
          %v2510 = vadd.f32 %v2509, %v2447
          %v2511 = vadd.f32 %v2510, %v2448
          %v2512 = vadd.f32 %v2511, %v2449
          %v2513 = vadd.f32 %v2512, %v2450
          %v2514 = vadd.f32 %v2513, %v2451
          %v2515 = vadd.f32 %v2514, %v2452
          %v2516 = vadd.f32 %v2515, %v2453
          %v2517 = vadd.f32 %v2516, %v2454
          %v2518 = vadd.f32 %v2517, %v2455
          %v2519 = vadd.f32 %v2518, %v2456
          %v2520 = vadd.f32 %v2519, %v2457
          %v2521 = vadd.f32 %v2520, %v2458
          %v2522 = vadd.f32 %v2521, %v2459
          %v2523 = vadd.f32 %v2522, %v2460
          %v2524 = vadd.f32 %v2523, %v2461
          %v2525 = vadd.f32 %v2524, %v2462
          %v2526 = vadd.f32 %v2525, %v2463
          %v2527 = vadd.f32 %v2526, %v2464
          %v2528 = vadd.f32 %v2527, %v2465
          %v2529 = vadd.f32 %v2528, %v2466
          %v2530 = vadd.f32 %v2529, %v2467
          %v2531 = vadd.f32 %v2530, %v2468
          %v2532 = vadd.f32 %v2531, %v2469
          %v2533 = vadd.f32 %v2532, %v2470
          %v2534 = vadd.f32 %v2533, %v2471
          %v2535 = vadd.f32 %v2534, %v2472
          %v2536 = vadd.f32 %v2535, %v2473
          %v2537 = vrot.slane %v2536, 4
          %v2538 = vadd.f32 %v2536, %v2537
          %v2539 = vrot.slane %v2538, 2
          %v2540 = vadd.f32 %v2538, %v2539
          %v2541 = vrot.slane %v2540, 1
          %v2542 = vadd.f32 %v2540, %v2541
          %v2543 = vmul.f32 %v2542, 0.001953125
          %v2544 = vmul.f32 %v2409, %v2409
          %v2545 = vsub.f32 %v2543, %v2544
          %v2546 = vmax.f32 %v2545, 0.0
          %v2547 = vsub.f32 %v2276, %v2409
          %v2548 = vsub.f32 %v2277, %v2409
          %v2549 = vsub.f32 %v2278, %v2409
          %v2550 = vsub.f32 %v2279, %v2409
          %v2551 = vsub.f32 %v2280, %v2409
          %v2552 = vsub.f32 %v2281, %v2409
          %v2553 = vsub.f32 %v2282, %v2409
          %v2554 = vsub.f32 %v2283, %v2409
          %v2555 = vsub.f32 %v2284, %v2409
          %v2556 = vsub.f32 %v2285, %v2409
          %v2557 = vsub.f32 %v2286, %v2409
          %v2558 = vsub.f32 %v2287, %v2409
          %v2559 = vsub.f32 %v2288, %v2409
          %v2560 = vsub.f32 %v2289, %v2409
          %v2561 = vsub.f32 %v2290, %v2409
          %v2562 = vsub.f32 %v2291, %v2409
          %v2563 = vsub.f32 %v2292, %v2409
          %v2564 = vsub.f32 %v2293, %v2409
          %v2565 = vsub.f32 %v2294, %v2409
          %v2566 = vsub.f32 %v2295, %v2409
          %v2567 = vsub.f32 %v2296, %v2409
          %v2568 = vsub.f32 %v2297, %v2409
          %v2569 = vsub.f32 %v2298, %v2409
          %v2570 = vsub.f32 %v2299, %v2409
          %v2571 = vsub.f32 %v2300, %v2409
          %v2572 = vsub.f32 %v2301, %v2409
          %v2573 = vsub.f32 %v2302, %v2409
          %v2574 = vsub.f32 %v2303, %v2409
          %v2575 = vsub.f32 %v2304, %v2409
          %v2576 = vsub.f32 %v2305, %v2409
          %v2577 = vsub.f32 %v2306, %v2409
          %v2578 = vsub.f32 %v2307, %v2409
          %v2579 = vsub.f32 %v2308, %v2409
          %v2580 = vsub.f32 %v2309, %v2409
          %v2581 = vsub.f32 %v2310, %v2409
          %v2582 = vsub.f32 %v2311, %v2409
          %v2583 = vsub.f32 %v2312, %v2409
          %v2584 = vsub.f32 %v2313, %v2409
          %v2585 = vsub.f32 %v2314, %v2409
          %v2586 = vsub.f32 %v2315, %v2409
          %v2587 = vsub.f32 %v2316, %v2409
          %v2588 = vsub.f32 %v2317, %v2409
          %v2589 = vsub.f32 %v2318, %v2409
          %v2590 = vsub.f32 %v2319, %v2409
          %v2591 = vsub.f32 %v2320, %v2409
          %v2592 = vsub.f32 %v2321, %v2409
          %v2593 = vsub.f32 %v2322, %v2409
          %v2594 = vsub.f32 %v2323, %v2409
          %v2595 = vsub.f32 %v2324, %v2409
          %v2596 = vsub.f32 %v2325, %v2409
          %v2597 = vsub.f32 %v2326, %v2409
          %v2598 = vsub.f32 %v2327, %v2409
          %v2599 = vsub.f32 %v2328, %v2409
          %v2600 = vsub.f32 %v2329, %v2409
          %v2601 = vsub.f32 %v2330, %v2409
          %v2602 = vsub.f32 %v2331, %v2409
          %v2603 = vsub.f32 %v2332, %v2409
          %v2604 = vsub.f32 %v2333, %v2409
          %v2605 = vsub.f32 %v2334, %v2409
          %v2606 = vsub.f32 %v2335, %v2409
          %v2607 = vsub.f32 %v2336, %v2409
          %v2608 = vsub.f32 %v2337, %v2409
          %v2609 = vsub.f32 %v2338, %v2409
          %v2610 = vsub.f32 %v2339, %v2409
          %v2611 = vadd.f32 %v2546, 1e-05
          %v2612 = vrsqrt.pop %v2611
          %v2613 = vmul.f32 %v2547, %v2612
          %v2614 = vmul.f32 %v2548, %v2612
          %v2615 = vmul.f32 %v2549, %v2612
          %v2616 = vmul.f32 %v2550, %v2612
          %v2617 = vmul.f32 %v2551, %v2612
          %v2618 = vmul.f32 %v2552, %v2612
          %v2619 = vmul.f32 %v2553, %v2612
          %v2620 = vmul.f32 %v2554, %v2612
          %v2621 = vmul.f32 %v2555, %v2612
          %v2622 = vmul.f32 %v2556, %v2612
          %v2623 = vmul.f32 %v2557, %v2612
          %v2624 = vmul.f32 %v2558, %v2612
          %v2625 = vmul.f32 %v2559, %v2612
          %v2626 = vmul.f32 %v2560, %v2612
          %v2627 = vmul.f32 %v2561, %v2612
          %v2628 = vmul.f32 %v2562, %v2612
          %v2629 = vmul.f32 %v2563, %v2612
          %v2630 = vmul.f32 %v2564, %v2612
          %v2631 = vmul.f32 %v2565, %v2612
          %v2632 = vmul.f32 %v2566, %v2612
          %v2633 = vmul.f32 %v2567, %v2612
          %v2634 = vmul.f32 %v2568, %v2612
          %v2635 = vmul.f32 %v2569, %v2612
          %v2636 = vmul.f32 %v2570, %v2612
          %v2637 = vmul.f32 %v2571, %v2612
          %v2638 = vmul.f32 %v2572, %v2612
          %v2639 = vmul.f32 %v2573, %v2612
          %v2640 = vmul.f32 %v2574, %v2612
          %v2641 = vmul.f32 %v2575, %v2612
          %v2642 = vmul.f32 %v2576, %v2612
          %v2643 = vmul.f32 %v2577, %v2612
          %v2644 = vmul.f32 %v2578, %v2612
          %v2645 = vmul.f32 %v2579, %v2612
          %v2646 = vmul.f32 %v2580, %v2612
          %v2647 = vmul.f32 %v2581, %v2612
          %v2648 = vmul.f32 %v2582, %v2612
          %v2649 = vmul.f32 %v2583, %v2612
          %v2650 = vmul.f32 %v2584, %v2612
          %v2651 = vmul.f32 %v2585, %v2612
          %v2652 = vmul.f32 %v2586, %v2612
          %v2653 = vmul.f32 %v2587, %v2612
          %v2654 = vmul.f32 %v2588, %v2612
          %v2655 = vmul.f32 %v2589, %v2612
          %v2656 = vmul.f32 %v2590, %v2612
          %v2657 = vmul.f32 %v2591, %v2612
          %v2658 = vmul.f32 %v2592, %v2612
          %v2659 = vmul.f32 %v2593, %v2612
          %v2660 = vmul.f32 %v2594, %v2612
          %v2661 = vmul.f32 %v2595, %v2612
          %v2662 = vmul.f32 %v2596, %v2612
          %v2663 = vmul.f32 %v2597, %v2612
          %v2664 = vmul.f32 %v2598, %v2612
          %v2665 = vmul.f32 %v2599, %v2612
          %v2666 = vmul.f32 %v2600, %v2612
          %v2667 = vmul.f32 %v2601, %v2612
          %v2668 = vmul.f32 %v2602, %v2612
          %v2669 = vmul.f32 %v2603, %v2612
          %v2670 = vmul.f32 %v2604, %v2612
          %v2671 = vmul.f32 %v2605, %v2612
          %v2672 = vmul.f32 %v2606, %v2612
          %v2673 = vmul.f32 %v2607, %v2612
          %v2674 = vmul.f32 %v2608, %v2612
          %v2675 = vmul.f32 %v2609, %v2612
          %v2676 = vmul.f32 %v2610, %v2612
          %v2677 = vld [vmem:[%s359] sm:$0x1]
          %v2679 = vlaneseq
          %v2680 = vshrl.u32 %v2679, 7
          %v2681 = vsub.s32 0, %v2680
          %v2682 = vrot.slane %v2677, %v2681
          %v2684 = vmul.f32 %v2613, %v2682
          %v2685 = vmul.f32 %v2614, %v2682
          %v2686 = vmul.f32 %v2615, %v2682
          %v2687 = vmul.f32 %v2616, %v2682
          %v2688 = vmul.f32 %v2617, %v2682
          %v2689 = vmul.f32 %v2618, %v2682
          %v2690 = vmul.f32 %v2619, %v2682
          %v2691 = vmul.f32 %v2620, %v2682
          %v2692 = vmul.f32 %v2621, %v2682
          %v2693 = vmul.f32 %v2622, %v2682
          %v2694 = vmul.f32 %v2623, %v2682
          %v2695 = vmul.f32 %v2624, %v2682
          %v2696 = vmul.f32 %v2625, %v2682
          %v2697 = vmul.f32 %v2626, %v2682
          %v2698 = vmul.f32 %v2627, %v2682
          %v2699 = vmul.f32 %v2628, %v2682
          %v2700 = vmul.f32 %v2629, %v2682
          %v2701 = vmul.f32 %v2630, %v2682
          %v2702 = vmul.f32 %v2631, %v2682
          %v2703 = vmul.f32 %v2632, %v2682
          %v2704 = vmul.f32 %v2633, %v2682
          %v2705 = vmul.f32 %v2634, %v2682
          %v2706 = vmul.f32 %v2635, %v2682
          %v2707 = vmul.f32 %v2636, %v2682
          %v2708 = vmul.f32 %v2637, %v2682
          %v2709 = vmul.f32 %v2638, %v2682
          %v2710 = vmul.f32 %v2639, %v2682
          %v2711 = vmul.f32 %v2640, %v2682
          %v2712 = vmul.f32 %v2641, %v2682
          %v2713 = vmul.f32 %v2642, %v2682
          %v2714 = vmul.f32 %v2643, %v2682
          %v2715 = vmul.f32 %v2644, %v2682
          %v2716 = vmul.f32 %v2645, %v2682
          %v2717 = vmul.f32 %v2646, %v2682
          %v2718 = vmul.f32 %v2647, %v2682
          %v2719 = vmul.f32 %v2648, %v2682
          %v2720 = vmul.f32 %v2649, %v2682
          %v2721 = vmul.f32 %v2650, %v2682
          %v2722 = vmul.f32 %v2651, %v2682
          %v2723 = vmul.f32 %v2652, %v2682
          %v2724 = vmul.f32 %v2653, %v2682
          %v2725 = vmul.f32 %v2654, %v2682
          %v2726 = vmul.f32 %v2655, %v2682
          %v2727 = vmul.f32 %v2656, %v2682
          %v2728 = vmul.f32 %v2657, %v2682
          %v2729 = vmul.f32 %v2658, %v2682
          %v2730 = vmul.f32 %v2659, %v2682
          %v2731 = vmul.f32 %v2660, %v2682
          %v2732 = vmul.f32 %v2661, %v2682
          %v2733 = vmul.f32 %v2662, %v2682
          %v2734 = vmul.f32 %v2663, %v2682
          %v2735 = vmul.f32 %v2664, %v2682
          %v2736 = vmul.f32 %v2665, %v2682
          %v2737 = vmul.f32 %v2666, %v2682
          %v2738 = vmul.f32 %v2667, %v2682
          %v2739 = vmul.f32 %v2668, %v2682
          %v2740 = vmul.f32 %v2669, %v2682
          %v2741 = vmul.f32 %v2670, %v2682
          %v2742 = vmul.f32 %v2671, %v2682
          %v2743 = vmul.f32 %v2672, %v2682
          %v2744 = vmul.f32 %v2673, %v2682
          %v2745 = vmul.f32 %v2674, %v2682
          %v2746 = vmul.f32 %v2675, %v2682
          %v2747 = vmul.f32 %v2676, %v2682
          %v2748 = vld [vmem:[%s362] sm:$0x1]
          %v2750 = vlaneseq
          %v2751 = vshrl.u32 %v2750, 7
          %v2752 = vsub.s32 0, %v2751
          %v2753 = vrot.slane %v2748, %v2752
          %v2755 = vadd.f32 %v2684, %v2753
          %v2756 = vadd.f32 %v2685, %v2753
          %v2757 = vadd.f32 %v2686, %v2753
          %v2758 = vadd.f32 %v2687, %v2753
          %v2759 = vadd.f32 %v2688, %v2753
          %v2760 = vadd.f32 %v2689, %v2753
          %v2761 = vadd.f32 %v2690, %v2753
          %v2762 = vadd.f32 %v2691, %v2753
          %v2763 = vadd.f32 %v2692, %v2753
          %v2764 = vadd.f32 %v2693, %v2753
          %v2765 = vadd.f32 %v2694, %v2753
          %v2766 = vadd.f32 %v2695, %v2753
          %v2767 = vadd.f32 %v2696, %v2753
          %v2768 = vadd.f32 %v2697, %v2753
          %v2769 = vadd.f32 %v2698, %v2753
          %v2770 = vadd.f32 %v2699, %v2753
          %v2771 = vadd.f32 %v2700, %v2753
          %v2772 = vadd.f32 %v2701, %v2753
          %v2773 = vadd.f32 %v2702, %v2753
          %v2774 = vadd.f32 %v2703, %v2753
          %v2775 = vadd.f32 %v2704, %v2753
          %v2776 = vadd.f32 %v2705, %v2753
          %v2777 = vadd.f32 %v2706, %v2753
          %v2778 = vadd.f32 %v2707, %v2753
          %v2779 = vadd.f32 %v2708, %v2753
          %v2780 = vadd.f32 %v2709, %v2753
          %v2781 = vadd.f32 %v2710, %v2753
          %v2782 = vadd.f32 %v2711, %v2753
          %v2783 = vadd.f32 %v2712, %v2753
          %v2784 = vadd.f32 %v2713, %v2753
          %v2785 = vadd.f32 %v2714, %v2753
          %v2786 = vadd.f32 %v2715, %v2753
          %v2787 = vadd.f32 %v2716, %v2753
          %v2788 = vadd.f32 %v2717, %v2753
          %v2789 = vadd.f32 %v2718, %v2753
          %v2790 = vadd.f32 %v2719, %v2753
          %v2791 = vadd.f32 %v2720, %v2753
          %v2792 = vadd.f32 %v2721, %v2753
          %v2793 = vadd.f32 %v2722, %v2753
          %v2794 = vadd.f32 %v2723, %v2753
          %v2795 = vadd.f32 %v2724, %v2753
          %v2796 = vadd.f32 %v2725, %v2753
          %v2797 = vadd.f32 %v2726, %v2753
          %v2798 = vadd.f32 %v2727, %v2753
          %v2799 = vadd.f32 %v2728, %v2753
          %v2800 = vadd.f32 %v2729, %v2753
          %v2801 = vadd.f32 %v2730, %v2753
          %v2802 = vadd.f32 %v2731, %v2753
          %v2803 = vadd.f32 %v2732, %v2753
          %v2804 = vadd.f32 %v2733, %v2753
          %v2805 = vadd.f32 %v2734, %v2753
          %v2806 = vadd.f32 %v2735, %v2753
          %v2807 = vadd.f32 %v2736, %v2753
          %v2808 = vadd.f32 %v2737, %v2753
          %v2809 = vadd.f32 %v2738, %v2753
          %v2810 = vadd.f32 %v2739, %v2753
          %v2811 = vadd.f32 %v2740, %v2753
          %v2812 = vadd.f32 %v2741, %v2753
          %v2813 = vadd.f32 %v2742, %v2753
          %v2814 = vadd.f32 %v2743, %v2753
          %v2815 = vadd.f32 %v2744, %v2753
          %v2816 = vadd.f32 %v2745, %v2753
          %v2817 = vadd.f32 %v2746, %v2753
          %v2818 = vadd.f32 %v2747, %v2753
          %v2819 = vmax.f32 %v2755, 0.0
          %v2820 = vmax.f32 %v2756, 0.0
          %v2821 = vmax.f32 %v2757, 0.0
          %v2822 = vmax.f32 %v2758, 0.0
          %v2823 = vmax.f32 %v2759, 0.0
          %v2824 = vmax.f32 %v2760, 0.0
          %v2825 = vmax.f32 %v2761, 0.0
          %v2826 = vmax.f32 %v2762, 0.0
          %v2827 = vmax.f32 %v2763, 0.0
          %v2828 = vmax.f32 %v2764, 0.0
          %v2829 = vmax.f32 %v2765, 0.0
          %v2830 = vmax.f32 %v2766, 0.0
          %v2831 = vmax.f32 %v2767, 0.0
          %v2832 = vmax.f32 %v2768, 0.0
          %v2833 = vmax.f32 %v2769, 0.0
          %v2834 = vmax.f32 %v2770, 0.0
          %v2835 = vmax.f32 %v2771, 0.0
          %v2836 = vmax.f32 %v2772, 0.0
          %v2837 = vmax.f32 %v2773, 0.0
          %v2838 = vmax.f32 %v2774, 0.0
          %v2839 = vmax.f32 %v2775, 0.0
          %v2840 = vmax.f32 %v2776, 0.0
          %v2841 = vmax.f32 %v2777, 0.0
          %v2842 = vmax.f32 %v2778, 0.0
          %v2843 = vmax.f32 %v2779, 0.0
          %v2844 = vmax.f32 %v2780, 0.0
          %v2845 = vmax.f32 %v2781, 0.0
          %v2846 = vmax.f32 %v2782, 0.0
          %v2847 = vmax.f32 %v2783, 0.0
          %v2848 = vmax.f32 %v2784, 0.0
          %v2849 = vmax.f32 %v2785, 0.0
          %v2850 = vmax.f32 %v2786, 0.0
          %v2851 = vmax.f32 %v2787, 0.0
          %v2852 = vmax.f32 %v2788, 0.0
          %v2853 = vmax.f32 %v2789, 0.0
          %v2854 = vmax.f32 %v2790, 0.0
          %v2855 = vmax.f32 %v2791, 0.0
          %v2856 = vmax.f32 %v2792, 0.0
          %v2857 = vmax.f32 %v2793, 0.0
          %v2858 = vmax.f32 %v2794, 0.0
          %v2859 = vmax.f32 %v2795, 0.0
          %v2860 = vmax.f32 %v2796, 0.0
          %v2861 = vmax.f32 %v2797, 0.0
          %v2862 = vmax.f32 %v2798, 0.0
          %v2863 = vmax.f32 %v2799, 0.0
          %v2864 = vmax.f32 %v2800, 0.0
          %v2865 = vmax.f32 %v2801, 0.0
          %v2866 = vmax.f32 %v2802, 0.0
          %v2867 = vmax.f32 %v2803, 0.0
          %v2868 = vmax.f32 %v2804, 0.0
          %v2869 = vmax.f32 %v2805, 0.0
          %v2870 = vmax.f32 %v2806, 0.0
          %v2871 = vmax.f32 %v2807, 0.0
          %v2872 = vmax.f32 %v2808, 0.0
          %v2873 = vmax.f32 %v2809, 0.0
          %v2874 = vmax.f32 %v2810, 0.0
          %v2875 = vmax.f32 %v2811, 0.0
          %v2876 = vmax.f32 %v2812, 0.0
          %v2877 = vmax.f32 %v2813, 0.0
          %v2878 = vmax.f32 %v2814, 0.0
          %v2879 = vmax.f32 %v2815, 0.0
          %v2880 = vmax.f32 %v2816, 0.0
          %v2881 = vmax.f32 %v2817, 0.0
          %v2882 = vmax.f32 %v2818, 0.0
          %2883 = vst [vmem:[#allocation2] sm:$0xff] %v2819
          %2884 = vst [vmem:[#allocation2 + $0x8] sm:$0xff] %v2820
          %2885 = vst [vmem:[#allocation2 + $0x10] sm:$0xff] %v2821
          %2886 = vst [vmem:[#allocation2 + $0x18] sm:$0xff] %v2822
          %2887 = vst [vmem:[#allocation2 + $0x20] sm:$0xff] %v2823
          %2888 = vst [vmem:[#allocation2 + $0x28] sm:$0xff] %v2824
          %2889 = vst [vmem:[#allocation2 + $0x30] sm:$0xff] %v2825
          %2890 = vst [vmem:[#allocation2 + $0x38] sm:$0xff] %v2826
          %2891 = vst [vmem:[#allocation2 + $0x40] sm:$0xff] %v2827
          %2892 = vst [vmem:[#allocation2 + $0x48] sm:$0xff] %v2828
          %2893 = vst [vmem:[#allocation2 + $0x50] sm:$0xff] %v2829
          %2894 = vst [vmem:[#allocation2 + $0x58] sm:$0xff] %v2830
          %2895 = vst [vmem:[#allocation2 + $0x60] sm:$0xff] %v2831
          %2896 = vst [vmem:[#allocation2 + $0x68] sm:$0xff] %v2832
          %2897 = vst [vmem:[#allocation2 + $0x70] sm:$0xff] %v2833
          %2898 = vst [vmem:[#allocation2 + $0x78] sm:$0xff] %v2834
          %2899 = vst [vmem:[#allocation2 + $0x80] sm:$0xff] %v2835
          %2900 = vst [vmem:[#allocation2 + $0x88] sm:$0xff] %v2836
          %2901 = vst [vmem:[#allocation2 + $0x90] sm:$0xff] %v2837
          %2902 = vst [vmem:[#allocation2 + $0x98] sm:$0xff] %v2838
          %2903 = vst [vmem:[#allocation2 + $0xa0] sm:$0xff] %v2839
          %2904 = vst [vmem:[#allocation2 + $0xa8] sm:$0xff] %v2840
          %2905 = vst [vmem:[#allocation2 + $0xb0] sm:$0xff] %v2841
          %2906 = vst [vmem:[#allocation2 + $0xb8] sm:$0xff] %v2842
          %2907 = vst [vmem:[#allocation2 + $0xc0] sm:$0xff] %v2843
          %2908 = vst [vmem:[#allocation2 + $0xc8] sm:$0xff] %v2844
          %2909 = vst [vmem:[#allocation2 + $0xd0] sm:$0xff] %v2845
          %2910 = vst [vmem:[#allocation2 + $0xd8] sm:$0xff] %v2846
          %2911 = vst [vmem:[#allocation2 + $0xe0] sm:$0xff] %v2847
          %2912 = vst [vmem:[#allocation2 + $0xe8] sm:$0xff] %v2848
          %2913 = vst [vmem:[#allocation2 + $0xf0] sm:$0xff] %v2849
          %2914 = vst [vmem:[#allocation2 + $0xf8] sm:$0xff] %v2850
          %2915 = vst [vmem:[#allocation2 + $0x100] sm:$0xff] %v2851
          %2916 = vst [vmem:[#allocation2 + $0x108] sm:$0xff] %v2852
          %2917 = vst [vmem:[#allocation2 + $0x110] sm:$0xff] %v2853
          %2918 = vst [vmem:[#allocation2 + $0x118] sm:$0xff] %v2854
          %2919 = vst [vmem:[#allocation2 + $0x120] sm:$0xff] %v2855
          %2920 = vst [vmem:[#allocation2 + $0x128] sm:$0xff] %v2856
          %2921 = vst [vmem:[#allocation2 + $0x130] sm:$0xff] %v2857
          %2922 = vst [vmem:[#allocation2 + $0x138] sm:$0xff] %v2858
          %2923 = vst [vmem:[#allocation2 + $0x140] sm:$0xff] %v2859
          %2924 = vst [vmem:[#allocation2 + $0x148] sm:$0xff] %v2860
          %2925 = vst [vmem:[#allocation2 + $0x150] sm:$0xff] %v2861
          %2926 = vst [vmem:[#allocation2 + $0x158] sm:$0xff] %v2862
          %2927 = vst [vmem:[#allocation2 + $0x160] sm:$0xff] %v2863
          %2928 = vst [vmem:[#allocation2 + $0x168] sm:$0xff] %v2864
          %2929 = vst [vmem:[#allocation2 + $0x170] sm:$0xff] %v2865
          %2930 = vst [vmem:[#allocation2 + $0x178] sm:$0xff] %v2866
          %2931 = vst [vmem:[#allocation2 + $0x180] sm:$0xff] %v2867
          %2932 = vst [vmem:[#allocation2 + $0x188] sm:$0xff] %v2868
          %2933 = vst [vmem:[#allocation2 + $0x190] sm:$0xff] %v2869
          %2934 = vst [vmem:[#allocation2 + $0x198] sm:$0xff] %v2870
          %2935 = vst [vmem:[#allocation2 + $0x1a0] sm:$0xff] %v2871
          %2936 = vst [vmem:[#allocation2 + $0x1a8] sm:$0xff] %v2872
          %2937 = vst [vmem:[#allocation2 + $0x1b0] sm:$0xff] %v2873
          %2938 = vst [vmem:[#allocation2 + $0x1b8] sm:$0xff] %v2874
          %2939 = vst [vmem:[#allocation2 + $0x1c0] sm:$0xff] %v2875
          %2940 = vst [vmem:[#allocation2 + $0x1c8] sm:$0xff] %v2876
          %2941 = vst [vmem:[#allocation2 + $0x1d0] sm:$0xff] %v2877
          %2942 = vst [vmem:[#allocation2 + $0x1d8] sm:$0xff] %v2878
          %2943 = vst [vmem:[#allocation2 + $0x1e0] sm:$0xff] %v2879
          %2944 = vst [vmem:[#allocation2 + $0x1e8] sm:$0xff] %v2880
          %2945 = vst [vmem:[#allocation2 + $0x1f0] sm:$0xff] %v2881
          %2946 = vst [vmem:[#allocation2 + $0x1f8] sm:$0xff] %v2882
        $region68: #{tpu_custom_call.1} parent=43 // pred_fallthru
          _
        %p2947 = pnand %p368, %p367
        %p2948 = pneg %p2947
        // Predicated region
        $region69: #{tpu_custom_call.1} parent=43 // pred_check
          _
        $region70: #{tpu_custom_call.1} parent=43 // pred_check_branch
          %2950 = sbr.rel (%p2947) target = $region72
        $region71: #{tpu_custom_call.1} parent=43 // pred_region
          %v2951 = vld [vmem:[#allocation4] sm:$0xff]
          %v2952 = vld [vmem:[#allocation4 + $0x8] sm:$0xff]
          %v2953 = vld [vmem:[#allocation4 + $0x10] sm:$0xff]
          %v2954 = vld [vmem:[#allocation4 + $0x18] sm:$0xff]
          %v2955 = vld [vmem:[#allocation4 + $0x20] sm:$0xff]
          %v2956 = vld [vmem:[#allocation4 + $0x28] sm:$0xff]
          %v2957 = vld [vmem:[#allocation4 + $0x30] sm:$0xff]
          %v2958 = vld [vmem:[#allocation4 + $0x38] sm:$0xff]
          %v2959 = vld [vmem:[#allocation4 + $0x40] sm:$0xff]
          %v2960 = vld [vmem:[#allocation4 + $0x48] sm:$0xff]
          %v2961 = vld [vmem:[#allocation4 + $0x50] sm:$0xff]
          %v2962 = vld [vmem:[#allocation4 + $0x58] sm:$0xff]
          %v2963 = vld [vmem:[#allocation4 + $0x60] sm:$0xff]
          %v2964 = vld [vmem:[#allocation4 + $0x68] sm:$0xff]
          %v2965 = vld [vmem:[#allocation4 + $0x70] sm:$0xff]
          %v2966 = vld [vmem:[#allocation4 + $0x78] sm:$0xff]
          %v2967 = vld [vmem:[#allocation4 + $0x80] sm:$0xff]
          %v2968 = vld [vmem:[#allocation4 + $0x88] sm:$0xff]
          %v2969 = vld [vmem:[#allocation4 + $0x90] sm:$0xff]
          %v2970 = vld [vmem:[#allocation4 + $0x98] sm:$0xff]
          %v2971 = vld [vmem:[#allocation4 + $0xa0] sm:$0xff]
          %v2972 = vld [vmem:[#allocation4 + $0xa8] sm:$0xff]
          %v2973 = vld [vmem:[#allocation4 + $0xb0] sm:$0xff]
          %v2974 = vld [vmem:[#allocation4 + $0xb8] sm:$0xff]
          %v2975 = vld [vmem:[#allocation4 + $0xc0] sm:$0xff]
          %v2976 = vld [vmem:[#allocation4 + $0xc8] sm:$0xff]
          %v2977 = vld [vmem:[#allocation4 + $0xd0] sm:$0xff]
          %v2978 = vld [vmem:[#allocation4 + $0xd8] sm:$0xff]
          %v2979 = vld [vmem:[#allocation4 + $0xe0] sm:$0xff]
          %v2980 = vld [vmem:[#allocation4 + $0xe8] sm:$0xff]
          %v2981 = vld [vmem:[#allocation4 + $0xf0] sm:$0xff]
          %v2982 = vld [vmem:[#allocation4 + $0xf8] sm:$0xff]
          %v2983 = vld [vmem:[#allocation4 + $0x100] sm:$0xff]
          %v2984 = vld [vmem:[#allocation4 + $0x108] sm:$0xff]
          %v2985 = vld [vmem:[#allocation4 + $0x110] sm:$0xff]
          %v2986 = vld [vmem:[#allocation4 + $0x118] sm:$0xff]
          %v2987 = vld [vmem:[#allocation4 + $0x120] sm:$0xff]
          %v2988 = vld [vmem:[#allocation4 + $0x128] sm:$0xff]
          %v2989 = vld [vmem:[#allocation4 + $0x130] sm:$0xff]
          %v2990 = vld [vmem:[#allocation4 + $0x138] sm:$0xff]
          %v2991 = vld [vmem:[#allocation4 + $0x140] sm:$0xff]
          %v2992 = vld [vmem:[#allocation4 + $0x148] sm:$0xff]
          %v2993 = vld [vmem:[#allocation4 + $0x150] sm:$0xff]
          %v2994 = vld [vmem:[#allocation4 + $0x158] sm:$0xff]
          %v2995 = vld [vmem:[#allocation4 + $0x160] sm:$0xff]
          %v2996 = vld [vmem:[#allocation4 + $0x168] sm:$0xff]
          %v2997 = vld [vmem:[#allocation4 + $0x170] sm:$0xff]
          %v2998 = vld [vmem:[#allocation4 + $0x178] sm:$0xff]
          %v2999 = vld [vmem:[#allocation4 + $0x180] sm:$0xff]
          %v3000 = vld [vmem:[#allocation4 + $0x188] sm:$0xff]
          %v3001 = vld [vmem:[#allocation4 + $0x190] sm:$0xff]
          %v3002 = vld [vmem:[#allocation4 + $0x198] sm:$0xff]
          %v3003 = vld [vmem:[#allocation4 + $0x1a0] sm:$0xff]
          %v3004 = vld [vmem:[#allocation4 + $0x1a8] sm:$0xff]
          %v3005 = vld [vmem:[#allocation4 + $0x1b0] sm:$0xff]
          %v3006 = vld [vmem:[#allocation4 + $0x1b8] sm:$0xff]
          %v3007 = vld [vmem:[#allocation4 + $0x1c0] sm:$0xff]
          %v3008 = vld [vmem:[#allocation4 + $0x1c8] sm:$0xff]
          %v3009 = vld [vmem:[#allocation4 + $0x1d0] sm:$0xff]
          %v3010 = vld [vmem:[#allocation4 + $0x1d8] sm:$0xff]
          %v3011 = vld [vmem:[#allocation4 + $0x1e0] sm:$0xff]
          %v3012 = vld [vmem:[#allocation4 + $0x1e8] sm:$0xff]
          %v3013 = vld [vmem:[#allocation4 + $0x1f0] sm:$0xff]
          %v3014 = vld [vmem:[#allocation4 + $0x1f8] sm:$0xff]
          %v3015 = vld [vmem:[%s365] sm:$0x1]
          %v3017 = vlaneseq
          %v3018 = vshrl.u32 %v3017, 7
          %v3019 = vsub.s32 0, %v3018
          %v3020 = vrot.slane %v3015, %v3019
          %v3022 = vadd.f32 %v2951, %v3020
          %v3023 = vadd.f32 %v2952, %v3020
          %v3024 = vadd.f32 %v2953, %v3020
          %v3025 = vadd.f32 %v2954, %v3020
          %v3026 = vadd.f32 %v2955, %v3020
          %v3027 = vadd.f32 %v2956, %v3020
          %v3028 = vadd.f32 %v2957, %v3020
          %v3029 = vadd.f32 %v2958, %v3020
          %v3030 = vadd.f32 %v2959, %v3020
          %v3031 = vadd.f32 %v2960, %v3020
          %v3032 = vadd.f32 %v2961, %v3020
          %v3033 = vadd.f32 %v2962, %v3020
          %v3034 = vadd.f32 %v2963, %v3020
          %v3035 = vadd.f32 %v2964, %v3020
          %v3036 = vadd.f32 %v2965, %v3020
          %v3037 = vadd.f32 %v2966, %v3020
          %v3038 = vadd.f32 %v2967, %v3020
          %v3039 = vadd.f32 %v2968, %v3020
          %v3040 = vadd.f32 %v2969, %v3020
          %v3041 = vadd.f32 %v2970, %v3020
          %v3042 = vadd.f32 %v2971, %v3020
          %v3043 = vadd.f32 %v2972, %v3020
          %v3044 = vadd.f32 %v2973, %v3020
          %v3045 = vadd.f32 %v2974, %v3020
          %v3046 = vadd.f32 %v2975, %v3020
          %v3047 = vadd.f32 %v2976, %v3020
          %v3048 = vadd.f32 %v2977, %v3020
          %v3049 = vadd.f32 %v2978, %v3020
          %v3050 = vadd.f32 %v2979, %v3020
          %v3051 = vadd.f32 %v2980, %v3020
          %v3052 = vadd.f32 %v2981, %v3020
          %v3053 = vadd.f32 %v2982, %v3020
          %v3054 = vadd.f32 %v2983, %v3020
          %v3055 = vadd.f32 %v2984, %v3020
          %v3056 = vadd.f32 %v2985, %v3020
          %v3057 = vadd.f32 %v2986, %v3020
          %v3058 = vadd.f32 %v2987, %v3020
          %v3059 = vadd.f32 %v2988, %v3020
          %v3060 = vadd.f32 %v2989, %v3020
          %v3061 = vadd.f32 %v2990, %v3020
          %v3062 = vadd.f32 %v2991, %v3020
          %v3063 = vadd.f32 %v2992, %v3020
          %v3064 = vadd.f32 %v2993, %v3020
          %v3065 = vadd.f32 %v2994, %v3020
          %v3066 = vadd.f32 %v2995, %v3020
          %v3067 = vadd.f32 %v2996, %v3020
          %v3068 = vadd.f32 %v2997, %v3020
          %v3069 = vadd.f32 %v2998, %v3020
          %v3070 = vadd.f32 %v2999, %v3020
          %v3071 = vadd.f32 %v3000, %v3020
          %v3072 = vadd.f32 %v3001, %v3020
          %v3073 = vadd.f32 %v3002, %v3020
          %v3074 = vadd.f32 %v3003, %v3020
          %v3075 = vadd.f32 %v3004, %v3020
          %v3076 = vadd.f32 %v3005, %v3020
          %v3077 = vadd.f32 %v3006, %v3020
          %v3078 = vadd.f32 %v3007, %v3020
          %v3079 = vadd.f32 %v3008, %v3020
          %v3080 = vadd.f32 %v3009, %v3020
          %v3081 = vadd.f32 %v3010, %v3020
          %v3082 = vadd.f32 %v3011, %v3020
          %v3083 = vadd.f32 %v3012, %v3020
          %v3084 = vadd.f32 %v3013, %v3020
          %v3085 = vadd.f32 %v3014, %v3020
          %3086 = vst [vmem:[#allocation11] sm:$0xff] %v3022
          %3087 = vst [vmem:[#allocation11 + $0x8] sm:$0xff] %v3023
          %3088 = vst [vmem:[#allocation11 + $0x10] sm:$0xff] %v3024
          %3089 = vst [vmem:[#allocation11 + $0x18] sm:$0xff] %v3025
          %3090 = vst [vmem:[#allocation11 + $0x20] sm:$0xff] %v3026
          %3091 = vst [vmem:[#allocation11 + $0x28] sm:$0xff] %v3027
          %3092 = vst [vmem:[#allocation11 + $0x30] sm:$0xff] %v3028
          %3093 = vst [vmem:[#allocation11 + $0x38] sm:$0xff] %v3029
          %3094 = vst [vmem:[#allocation11 + $0x40] sm:$0xff] %v3030
          %3095 = vst [vmem:[#allocation11 + $0x48] sm:$0xff] %v3031
          %3096 = vst [vmem:[#allocation11 + $0x50] sm:$0xff] %v3032
          %3097 = vst [vmem:[#allocation11 + $0x58] sm:$0xff] %v3033
          %3098 = vst [vmem:[#allocation11 + $0x60] sm:$0xff] %v3034
          %3099 = vst [vmem:[#allocation11 + $0x68] sm:$0xff] %v3035
          %3100 = vst [vmem:[#allocation11 + $0x70] sm:$0xff] %v3036
          %3101 = vst [vmem:[#allocation11 + $0x78] sm:$0xff] %v3037
          %3102 = vst [vmem:[#allocation11 + $0x80] sm:$0xff] %v3038
          %3103 = vst [vmem:[#allocation11 + $0x88] sm:$0xff] %v3039
          %3104 = vst [vmem:[#allocation11 + $0x90] sm:$0xff] %v3040
          %3105 = vst [vmem:[#allocation11 + $0x98] sm:$0xff] %v3041
          %3106 = vst [vmem:[#allocation11 + $0xa0] sm:$0xff] %v3042
          %3107 = vst [vmem:[#allocation11 + $0xa8] sm:$0xff] %v3043
          %3108 = vst [vmem:[#allocation11 + $0xb0] sm:$0xff] %v3044
          %3109 = vst [vmem:[#allocation11 + $0xb8] sm:$0xff] %v3045
          %3110 = vst [vmem:[#allocation11 + $0xc0] sm:$0xff] %v3046
          %3111 = vst [vmem:[#allocation11 + $0xc8] sm:$0xff] %v3047
          %3112 = vst [vmem:[#allocation11 + $0xd0] sm:$0xff] %v3048
          %3113 = vst [vmem:[#allocation11 + $0xd8] sm:$0xff] %v3049
          %3114 = vst [vmem:[#allocation11 + $0xe0] sm:$0xff] %v3050
          %3115 = vst [vmem:[#allocation11 + $0xe8] sm:$0xff] %v3051
          %3116 = vst [vmem:[#allocation11 + $0xf0] sm:$0xff] %v3052
          %3117 = vst [vmem:[#allocation11 + $0xf8] sm:$0xff] %v3053
          %3118 = vst [vmem:[#allocation11 + $0x100] sm:$0xff] %v3054
          %3119 = vst [vmem:[#allocation11 + $0x108] sm:$0xff] %v3055
          %3120 = vst [vmem:[#allocation11 + $0x110] sm:$0xff] %v3056
          %3121 = vst [vmem:[#allocation11 + $0x118] sm:$0xff] %v3057
          %3122 = vst [vmem:[#allocation11 + $0x120] sm:$0xff] %v3058
          %3123 = vst [vmem:[#allocation11 + $0x128] sm:$0xff] %v3059
          %3124 = vst [vmem:[#allocation11 + $0x130] sm:$0xff] %v3060
          %3125 = vst [vmem:[#allocation11 + $0x138] sm:$0xff] %v3061
          %3126 = vst [vmem:[#allocation11 + $0x140] sm:$0xff] %v3062
          %3127 = vst [vmem:[#allocation11 + $0x148] sm:$0xff] %v3063
          %3128 = vst [vmem:[#allocation11 + $0x150] sm:$0xff] %v3064
          %3129 = vst [vmem:[#allocation11 + $0x158] sm:$0xff] %v3065
          %3130 = vst [vmem:[#allocation11 + $0x160] sm:$0xff] %v3066
          %3131 = vst [vmem:[#allocation11 + $0x168] sm:$0xff] %v3067
          %3132 = vst [vmem:[#allocation11 + $0x170] sm:$0xff] %v3068
          %3133 = vst [vmem:[#allocation11 + $0x178] sm:$0xff] %v3069
          %3134 = vst [vmem:[#allocation11 + $0x180] sm:$0xff] %v3070
          %3135 = vst [vmem:[#allocation11 + $0x188] sm:$0xff] %v3071
          %3136 = vst [vmem:[#allocation11 + $0x190] sm:$0xff] %v3072
          %3137 = vst [vmem:[#allocation11 + $0x198] sm:$0xff] %v3073
          %3138 = vst [vmem:[#allocation11 + $0x1a0] sm:$0xff] %v3074
          %3139 = vst [vmem:[#allocation11 + $0x1a8] sm:$0xff] %v3075
          %3140 = vst [vmem:[#allocation11 + $0x1b0] sm:$0xff] %v3076
          %3141 = vst [vmem:[#allocation11 + $0x1b8] sm:$0xff] %v3077
          %3142 = vst [vmem:[#allocation11 + $0x1c0] sm:$0xff] %v3078
          %3143 = vst [vmem:[#allocation11 + $0x1c8] sm:$0xff] %v3079
          %3144 = vst [vmem:[#allocation11 + $0x1d0] sm:$0xff] %v3080
          %3145 = vst [vmem:[#allocation11 + $0x1d8] sm:$0xff] %v3081
          %3146 = vst [vmem:[#allocation11 + $0x1e0] sm:$0xff] %v3082
          %3147 = vst [vmem:[#allocation11 + $0x1e8] sm:$0xff] %v3083
          %3148 = vst [vmem:[#allocation11 + $0x1f0] sm:$0xff] %v3084
          %3149 = vst [vmem:[#allocation11 + $0x1f8] sm:$0xff] %v3085
        $region72: #{tpu_custom_call.1} parent=43 // pred_fallthru
          _
        // Predicated region
        $region73: #{tpu_custom_call.1} parent=43 // pred_check
          %p3150 = pneg %p198
        $region74: #{tpu_custom_call.1} parent=43 // pred_check_branch
          %3152 = sbr.rel (%p3150) target = $region76
        $region75: #{tpu_custom_call.1} parent=43 // pred_region
          %s3154 = ssub.s32 8192, 8192
          %3155 = vsyncadd [#allocation7], %s3154
          %s3156 = sshll.u32 [#allocation11], 4
          %s3157 = int_to_ptr.vmem [resolvable:$true] %s3156
          %3162 = dma.vmem_to_hbm [thread:$0]  %s3157, 8192, %s6, [#allocation7], 128, 128, 8
        $region76: #{tpu_custom_call.1} parent=43 // pred_fallthru
          _
        // Predicated region
        $region77: #{tpu_custom_call.1} parent=43 // pred_check
          %p3163 = pneg %p198
        $region78: #{tpu_custom_call.1} parent=43 // pred_check_branch
          %3165 = sbr.rel (%p3163) target = $region80
        $region79: #{tpu_custom_call.1} parent=43 // pred_region
          %3166 = dma.done [#allocation7], 8192
        $region80: #{tpu_custom_call.1} parent=43 // pred_fallthru
          _
      $region44: #{tpu_custom_call.1} parent=5 // pred_fallthru
        _
      %p3167 = scmp.le.s32.totalorder 2, %s17
      // Predicated region
      $region81: #{tpu_custom_call.1} parent=5 // pred_check
        %p3168 = pneg %p3167
      $region82: #{tpu_custom_call.1} parent=5 // pred_check_branch
        %3170 = sbr.rel (%p3168) target = $region84
      $region83: #{tpu_custom_call.1} parent=5 // pred_region
        %s3171 = ssub.s32 %s17, 2
      $region84: #{tpu_custom_call.1} parent=5 // pred_fallthru
        _
    $region6: #{tpu_custom_call.1} parent=1 // loop_footer
      %s21 = sadd.s32 1, %s17
    $region7: #{tpu_custom_call.1} parent=1 // loop_footer_branch
      %16 = sbr.rel target = $region3
    $region8: #{tpu_custom_call.1} parent=1 // loop_exit
      _
    %3172 = vsyncpa [#allocation6], 1
    %s3173 = scalar_lea.sflag [#allocation6], 1
    %3174 = vsyncpa %s3173, 1
    %3175 = vsyncpa [#allocation9], 1
    %3176 = vsyncpa [#allocation7], 1
    %s3177 = scalar_lea.sflag [#allocation7], 1
    %3178 = vsyncpa %s3177, 1

</llo_original>
